<compile_context>
chip_gen: v6e
topology: v6e:2x2x1
jax: 0.10.0
libtpu: 0.0.40
codegen_flags: <defaults>
</compile_context>

<pallas_src>
import functools
import math

import jax
import jax.numpy as jnp
from jax.experimental import pallas as pl
from jax.experimental.pallas import tpu as pltpu

BN_EPS = 1e-5


def _round_up(x, m):
    return (x + m - 1) // m * m


# ---------------------------------------------------------------------------
# Pallas kernels
# ---------------------------------------------------------------------------
def _conv_bn_relu_kernel(x_ref, w_ref, mask_ref, g_ref, beta_ref, o_ref, *,
                         wq, eps, inv_m, compute_dtype):
    """Fused stride-2 5x5 conv (9 s2d-tap matmuls) + train-mode BatchNorm2d + ReLU.

      x_ref:    (R_in, Kp) f32   flattened space-to-depth input rows (R_in = R + 2*Wq + 2)
      w_ref:    (9, Kp, Cout)    tap-major repacked conv weights (compute dtype)
      mask_ref: (R, 1) f32       1.0 for rows that are real conv outputs, 0.0 for halo rows
      g_ref, beta_ref: (1, Cout) f32
      o_ref:    (R, Cout)        activation (bf16 on the perf path, f32 on the check path)
    """
    r = o_ref.shape[0]
    cout = o_ref.shape[1]

    # 9 accumulated matmuls; every tap is the same resident block shifted by a static row
    # offset, so the only input DMA is the one activation-sized block fetch.
    acc = jnp.zeros((r, cout), jnp.float32)
    for t in range(9):
        off = (t // 3) * wq + (t % 3)                       # static tap row offset
        xs = x_ref[pl.ds(off, r), :].astype(compute_dtype)  # bf16 MXU feed on the perf path
        acc = acc + jnp.dot(xs, w_ref[t], preferred_element_type=jnp.float32)

    # Train-mode batch statistics over the valid rows only (centered two-pass variance, f32).
    mask = mask_ref[...]
    mean = jnp.sum(acc * mask, axis=0, keepdims=True) * inv_m
    xc = acc - mean
    var = jnp.sum(xc * xc * mask, axis=0, keepdims=True) * inv_m
    a = g_ref[...] * jax.lax.rsqrt(var + eps)               # rsqrt on the EUP
    o_ref[...] = jnp.maximum(xc * a + beta_ref[...], 0.0).astype(o_ref.dtype)


def _heads_kernel(x_ref, w_ref, b_ref, o_ref):
    # x: (N, F); w: (F, Lp) f32 (fc_mu and fc_var concatenated, lane-padded); b: (1, Lp).
    x = x_ref[...].astype(jnp.float32)
    o_ref[...] = jnp.dot(x, w_ref[...], preferred_element_type=jnp.float32) + b_ref[...]


# ---------------------------------------------------------------------------
# JAX glue: space-to-depth layout, weight repacking, parameter handling
# ---------------------------------------------------------------------------
def conv_bn_relu(x_nhwc, w_oihw, gamma, beta, *, eps=BN_EPS, compute_dtype=jnp.bfloat16):
    """One Conv2d(k=5, s=2, p=2, bias folded away) + BatchNorm2d(batch stats) + ReLU layer."""
    N, H, W, Cin = x_nhwc.shape
    Cout = w_oihw.shape[0]
    Hout = (H - 1) // 2 + 1
    Wout = (W - 1) // 2 + 1
    Hq, Wq = Hout + 2, Wout + 2          # s2d grid including the 3x3 tap halo
    Kc = 4 * Cin
    Kp = _round_up(Kc, 128)              # lane-aligned contraction: unmasked MXU feed
    R = N * Hq * Wq                      # conv evaluated on the full s2d grid, halo rows masked
    R_in = R + 2 * Wq + 2                # rows reachable by the largest tap offset

    # Zero-pad (conv padding=2 plus halo) and space-to-depth by the stride, so the stride-2
    # conv becomes 9 stride-1 taps over contiguous rows.  This is the only HBM-side data prep
    # and it is ~activation-sized (not a 25x im2col expansion).
    xp = jnp.pad(x_nhwc.astype(jnp.float32),
                 ((0, 0), (2, 2 * Hq - H - 2), (2, 2 * Wq - W - 2), (0, 0)))
    xq = xp.reshape(N, Hq, 2, Wq, 2, Cin).transpose(0, 1, 3, 2, 4, 5).reshape(N, Hq, Wq, Kc)
    xflat = jnp.pad(xq.reshape(R, Kc), ((0, R_in - R), (0, Kp - Kc)))

    # PyTorch conv weight (Cout, Cin, 5, 5) -> 9 taps of (Kp, Cout) matching the s2d channel
    # order (ph, pw, cin); taps that fall outside the 5x5 kernel (kh==5 or kw==5) are zero.
    wt = jnp.transpose(w_oihw, (2, 3, 1, 0)).astype(compute_dtype)     # (kh, kw, Cin, Cout)
    wt = jnp.pad(wt, ((0, 1), (0, 1), (0, 0), (0, 0)))                 # (6, 6, Cin, Cout)
    w9 = wt.reshape(3, 2, 3, 2, Cin, Cout).transpose(0, 2, 1, 3, 4, 5).reshape(9, Kc, Cout)
    w9 = jnp.pad(w9, ((0, 0), (0, Kp - Kc), (0, 0)))

    # Row-validity mask: only (qh < Hout, qw < Wout) rows are real conv outputs.
    mrow = (jnp.arange(Hq) < Hout)[:, None] & (jnp.arange(Wq) < Wout)[None, :]
    mask = jnp.broadcast_to(mrow.reshape(1, Hq * Wq), (N, Hq * Wq)).reshape(R, 1)
    mask = mask.astype(jnp.float32)

    g = gamma.reshape(1, Cout).astype(jnp.float32)
    b = beta.reshape(1, Cout).astype(jnp.float32)

    kern = functools.partial(_conv_bn_relu_kernel, wq=Wq, eps=eps,
                             inv_m=1.0 / (N * Hout * Wout), compute_dtype=compute_dtype)
    y = pl.pallas_call(
        kern,
        out_shape=jax.ShapeDtypeStruct((R, Cout), compute_dtype),
        grid=(1,),      # whole layer resident in VMEM: one step, no recompute / re-read
        in_specs=[
            pl.BlockSpec((R_in, Kp), lambda i: (0, 0)),
            pl.BlockSpec((9, Kp, Cout), lambda i: (0, 0, 0)),
            pl.BlockSpec((R, 1), lambda i: (0, 0)),
            pl.BlockSpec((1, Cout), lambda i: (0, 0)),
            pl.BlockSpec((1, Cout), lambda i: (0, 0)),
        ],
        out_specs=pl.BlockSpec((R, Cout), lambda i: (0, 0)),   # narrow store: no 128-lane pad
        compiler_params=pltpu.CompilerParams(
            dimension_semantics=("arbitrary",),
            # These layers use ~0.2 MiB; leave plenty of headroom under v7x's 64 MiB while
            # allowing bigger resident layers on v5e/v6e (128 MiB physical).
            vmem_limit_bytes=64 * 1024 * 1024,
        ),
    )(xflat, w9, mask, g, b)

    return y.reshape(N, Hq, Wq, Cout)[:, :Hout, :Wout, :]


def linear_heads(x_flat, w_mu, b_mu, w_var, b_var, chw):
    """fc_mu and fc_var fused into one matmul with a lane-padded output.

    The torch heads expect a (C, H, W)-order flatten of an NCHW tensor; instead of transposing
    the NHWC activations, the weight columns are permuted at trace time (weights are static).
    """
    N, F = x_flat.shape
    L = w_mu.shape[0]
    C, Hr, Wr = chw

    def to_nhwc_cols(w):
        return w.reshape(L, C, Hr, Wr).transpose(0, 2, 3, 1).reshape(L, F)

    w_cat = jnp.concatenate([to_nhwc_cols(w_mu), to_nhwc_cols(w_var)], axis=0)  # (2L, F)
    b_cat = jnp.concatenate([b_mu, b_var], axis=0)                              # (2L,)
    Lp = _round_up(2 * L, 128)
    w_p = jnp.pad(w_cat.T.astype(jnp.float32), ((0, 0), (0, Lp - 2 * L)))       # (F, Lp)
    b_p = jnp.pad(b_cat.reshape(1, 2 * L).astype(jnp.float32), ((0, 0), (0, Lp - 2 * L)))

    out = pl.pallas_call(
        _heads_kernel,
        out_shape=jax.ShapeDtypeStruct((N, Lp), jnp.float32),
        grid=(1,),
        in_specs=[
            pl.BlockSpec((N, F), lambda i: (0, 0)),
            pl.BlockSpec((F, Lp), lambda i: (0, 0)),
            pl.BlockSpec((1, Lp), lambda i: (0, 0)),
        ],
        out_specs=pl.BlockSpec((N, Lp), lambda i: (0, 0)),
    )(x_flat, w_p, b_p)
    return out[:, :L], out[:, L:2 * L]


def conv_encoder_forward(x_nchw, params, *, compute_dtype=jnp.bfloat16):
    """Equivalent of ConvEncoder.forward: returns (mu, log_var)."""
    x = jnp.transpose(x_nchw, (0, 2, 3, 1))      # NCHW -> NHWC once, at the input
    for (w, _b, g, be) in params["convs"]:       # conv bias dropped: cancels under train-mode BN
        x = conv_bn_relu(x, w, g, be, compute_dtype=compute_dtype)
    N, Hr, Wr, C = x.shape
    x_flat = x.reshape(N, Hr * Wr * C)           # NHWC flatten; head weights permuted to match
    return linear_heads(x_flat, params["w_mu"], params["b_mu"],
                        params["w_var"], params["b_var"], (C, Hr, Wr))


# ---------------------------------------------------------------------------
# Pure-JAX reference (for correctness check only)
# ---------------------------------------------------------------------------
def _reference_forward(x_nchw, params):
    x = x_nchw
    for (w, b, g, be) in params["convs"]:
        y = jax.lax.conv_general_dilated(
            x, w, window_strides=(2, 2), padding=((2, 2), (2, 2)),
            dimension_numbers=("NCHW", "OIHW", "NCHW"))
        y = y + b[None, :, None, None]
        mean = jnp.mean(y, axis=(0, 2, 3), keepdims=True)
        var = jnp.mean((y - mean) ** 2, axis=(0, 2, 3), keepdims=True)
        y = (y - mean) * jax.lax.rsqrt(var + BN_EPS)
        y = g[None, :, None, None] * y + be[None, :, None, None]
        x = jnp.maximum(y, 0.0)
    xf = x.reshape(x.shape[0], -1)
    mu = xf @ params["w_mu"].T + params["b_mu"]
    lv = xf @ params["w_var"].T + params["b_var"]
    return mu, lv


# ---------------------------------------------------------------------------
if __name__ == "__main__":
    key = jax.random.PRNGKey(0)

    # Small shapes consistent with the module: ConvEncoder(x_dim=16*16, hidden_dims=[8, 16],
    # latent_dim=2, in_channels=1), batch=2.
    batch, in_channels = 2, 1
    H = W = 16
    x_dim = H * W
    hidden_dims = [8, 16]
    latent_dim = 2

    # Same bottleneck-resolution formula as the module's __init__.
    res_flattened = int(math.ceil(math.sqrt(x_dim) * 0.5 ** len(hidden_dims)))
    feat_dim = hidden_dims[-1] * res_flattened ** 2

    keys = jax.random.split(key, 16)
    convs = []
    cin = in_channels
    ki = 0
    for h in hidden_dims:
        w = jax.random.normal(keys[ki], (h, cin, 5, 5), jnp.float32) * (1.0 / math.sqrt(cin * 25))
        b = jax.random.normal(keys[ki + 1], (h,), jnp.float32) * 0.01
        gamma = jnp.ones((h,), jnp.float32)   # BatchNorm2d default init
        beta = jnp.zeros((h,), jnp.float32)
        convs.append((w, b, gamma, beta))
        cin = h
        ki += 2

    w_mu = jax.random.normal(keys[ki], (latent_dim, feat_dim), jnp.float32) * (1.0 / math.sqrt(feat_dim))
    b_mu = jax.random.normal(keys[ki + 1], (latent_dim,), jnp.float32) * 0.01
    w_var = jax.random.normal(keys[ki + 2], (latent_dim, feat_dim), jnp.float32) * (1.0 / math.sqrt(feat_dim))
    b_var = jax.random.normal(keys[ki + 3], (latent_dim,), jnp.float32) * 0.01
    params = {"convs": convs, "w_mu": w_mu, "b_mu": b_mu, "w_var": w_var, "b_var": b_var}

    x = jax.random.normal(keys[ki + 4], (batch, in_channels, H, W), jnp.float32)

    mu_ref, lv_ref = _reference_forward(x, params)

    # Performance path: bf16 MXU inputs + bf16 stored activations, f32 accumulation / BN math.
    fwd_bf16 = jax.jit(functools.partial(conv_encoder_forward, compute_dtype=jnp.bfloat16))
    mu, log_var = fwd_bf16(x, params)
    jax.block_until_ready((mu, log_var))
    assert mu.shape == (batch, latent_dim) and log_var.shape == (batch, latent_dim)
    assert jnp.allclose(mu, mu_ref, atol=5e-2, rtol=5e-2)
    assert jnp.allclose(log_var, lv_ref, atol=5e-2, rtol=5e-2)

    # Full-f32 path validates the kernel semantics tightly (incl. the bias-cancellation fold).
    fwd_f32 = jax.jit(functools.partial(conv_encoder_forward, compute_dtype=jnp.float32))
    mu32, lv32 = fwd_f32(x, params)
    jax.block_until_ready((mu32, lv32))
    assert jnp.allclose(mu32, mu_ref, atol=3e-3, rtol=3e-3)
    assert jnp.allclose(lv32, lv_ref, atol=3e-3, rtol=3e-3)

    print("KERNEL_OK")
</pallas_src>

<mosaic_0001>
module attributes {stable_mosaic.version = 11 : i64} {
  func.func @_conv_bn_relu_kernel(%arg0: i32, %arg1: memref<222x128xf32, #tpu.memory_space<vmem>>, %arg2: memref<9x128x8xbf16, #tpu.memory_space<vmem>>, %arg3: memref<200x1xf32, #tpu.memory_space<vmem>>, %arg4: memref<1x8xf32, #tpu.memory_space<vmem>>, %arg5: memref<1x8xf32, #tpu.memory_space<vmem>>, %arg6: memref<200x8xbf16, #tpu.memory_space<vmem>>) attributes {dimension_semantics = [#tpu.dimension_semantics<arbitrary>], iteration_bounds = array<i64: 1>, scalar_prefetch = 0 : i64, scratch_operands = 0 : i64, tpu.core_type = #tpu.core_type<tc>, window_params = [{pipeline_mode = #tpu.pipeline_mode<synchronous>, transform_indices = @transform_0, window_bounds = array<i64: 222, 128>}, {pipeline_mode = #tpu.pipeline_mode<synchronous>, transform_indices = @transform_1, window_bounds = array<i64: 9, 128, 8>}, {pipeline_mode = #tpu.pipeline_mode<synchronous>, transform_indices = @transform_2, window_bounds = array<i64: 200, 1>}, {pipeline_mode = #tpu.pipeline_mode<synchronous>, transform_indices = @transform_3, window_bounds = array<i64: 1, 8>}, {pipeline_mode = #tpu.pipeline_mode<synchronous>, transform_indices = @transform_4, window_bounds = array<i64: 1, 8>}, {pipeline_mode = #tpu.pipeline_mode<synchronous>, transform_indices = @transform_5, window_bounds = array<i64: 200, 8>}]} {
    %cst = arith.constant 0.000000e+00 : f32
    %0 = vector.broadcast %cst : f32 to vector<200x8xf32>
    %c0 = arith.constant 0 : index
    %c0_0 = arith.constant 0 : index
    %1 = vector.load %arg1[%c0, %c0_0] : memref<222x128xf32, #tpu.memory_space<vmem>>, vector<200x128xf32>
    %2 = arith.truncf %1 : vector<200x128xf32> to vector<200x128xbf16>
    %c0_1 = arith.constant 0 : index
    %c0_2 = arith.constant 0 : index
    %c0_3 = arith.constant 0 : index
    %3 = vector.load %arg2[%c0_1, %c0_2, %c0_3] : memref<9x128x8xbf16, #tpu.memory_space<vmem>>, vector<1x128x8xbf16>
    %4 = vector.shape_cast %3 : vector<1x128x8xbf16> to vector<128x8xbf16>
    %cst_4 = arith.constant dense<0.000000e+00> : vector<200x8xf32>
    %5 = tpu.matmul %2, %4, %cst_4 {dimension_numbers = #tpu.dot_dimension_numbers<[1], [0], [0], [1], [0, 0, 1, 1], [], []>} : vector<200x128xbf16>, vector<128x8xbf16>, vector<200x8xf32> -> vector<200x8xf32>
    %6 = arith.addf %0, %5 : vector<200x8xf32>
    %c1 = arith.constant 1 : index
    %c0_5 = arith.constant 0 : index
    %7 = vector.load %arg1[%c1, %c0_5] : memref<222x128xf32, #tpu.memory_space<vmem>>, vector<200x128xf32>
    %8 = arith.truncf %7 : vector<200x128xf32> to vector<200x128xbf16>
    %c1_6 = arith.constant 1 : index
    %c0_7 = arith.constant 0 : index
    %c0_8 = arith.constant 0 : index
    %9 = vector.load %arg2[%c1_6, %c0_7, %c0_8] : memref<9x128x8xbf16, #tpu.memory_space<vmem>>, vector<1x128x8xbf16>
    %10 = vector.shape_cast %9 : vector<1x128x8xbf16> to vector<128x8xbf16>
    %cst_9 = arith.constant dense<0.000000e+00> : vector<200x8xf32>
    %11 = tpu.matmul %8, %10, %cst_9 {dimension_numbers = #tpu.dot_dimension_numbers<[1], [0], [0], [1], [0, 0, 1, 1], [], []>} : vector<200x128xbf16>, vector<128x8xbf16>, vector<200x8xf32> -> vector<200x8xf32>
    %12 = arith.addf %6, %11 : vector<200x8xf32>
    %c2 = arith.constant 2 : index
    %c0_10 = arith.constant 0 : index
    %13 = vector.load %arg1[%c2, %c0_10] : memref<222x128xf32, #tpu.memory_space<vmem>>, vector<200x128xf32>
    %14 = arith.truncf %13 : vector<200x128xf32> to vector<200x128xbf16>
    %c2_11 = arith.constant 2 : index
    %c0_12 = arith.constant 0 : index
    %c0_13 = arith.constant 0 : index
    %15 = vector.load %arg2[%c2_11, %c0_12, %c0_13] : memref<9x128x8xbf16, #tpu.memory_space<vmem>>, vector<1x128x8xbf16>
    %16 = vector.shape_cast %15 : vector<1x128x8xbf16> to vector<128x8xbf16>
    %cst_14 = arith.constant dense<0.000000e+00> : vector<200x8xf32>
    %17 = tpu.matmul %14, %16, %cst_14 {dimension_numbers = #tpu.dot_dimension_numbers<[1], [0], [0], [1], [0, 0, 1, 1], [], []>} : vector<200x128xbf16>, vector<128x8xbf16>, vector<200x8xf32> -> vector<200x8xf32>
    %18 = arith.addf %12, %17 : vector<200x8xf32>
    %c10 = arith.constant 10 : index
    %c0_15 = arith.constant 0 : index
    %19 = vector.load %arg1[%c10, %c0_15] : memref<222x128xf32, #tpu.memory_space<vmem>>, vector<200x128xf32>
    %20 = arith.truncf %19 : vector<200x128xf32> to vector<200x128xbf16>
    %c3 = arith.constant 3 : index
    %c0_16 = arith.constant 0 : index
    %c0_17 = arith.constant 0 : index
    %21 = vector.load %arg2[%c3, %c0_16, %c0_17] : memref<9x128x8xbf16, #tpu.memory_space<vmem>>, vector<1x128x8xbf16>
    %22 = vector.shape_cast %21 : vector<1x128x8xbf16> to vector<128x8xbf16>
    %cst_18 = arith.constant dense<0.000000e+00> : vector<200x8xf32>
    %23 = tpu.matmul %20, %22, %cst_18 {dimension_numbers = #tpu.dot_dimension_numbers<[1], [0], [0], [1], [0, 0, 1, 1], [], []>} : vector<200x128xbf16>, vector<128x8xbf16>, vector<200x8xf32> -> vector<200x8xf32>
    %24 = arith.addf %18, %23 : vector<200x8xf32>
    %c11 = arith.constant 11 : index
    %c0_19 = arith.constant 0 : index
    %25 = vector.load %arg1[%c11, %c0_19] : memref<222x128xf32, #tpu.memory_space<vmem>>, vector<200x128xf32>
    %26 = arith.truncf %25 : vector<200x128xf32> to vector<200x128xbf16>
    %c4 = arith.constant 4 : index
    %c0_20 = arith.constant 0 : index
    %c0_21 = arith.constant 0 : index
    %27 = vector.load %arg2[%c4, %c0_20, %c0_21] : memref<9x128x8xbf16, #tpu.memory_space<vmem>>, vector<1x128x8xbf16>
    %28 = vector.shape_cast %27 : vector<1x128x8xbf16> to vector<128x8xbf16>
    %cst_22 = arith.constant dense<0.000000e+00> : vector<200x8xf32>
    %29 = tpu.matmul %26, %28, %cst_22 {dimension_numbers = #tpu.dot_dimension_numbers<[1], [0], [0], [1], [0, 0, 1, 1], [], []>} : vector<200x128xbf16>, vector<128x8xbf16>, vector<200x8xf32> -> vector<200x8xf32>
    %30 = arith.addf %24, %29 : vector<200x8xf32>
    %c12 = arith.constant 12 : index
    %c0_23 = arith.constant 0 : index
    %31 = vector.load %arg1[%c12, %c0_23] : memref<222x128xf32, #tpu.memory_space<vmem>>, vector<200x128xf32>
    %32 = arith.truncf %31 : vector<200x128xf32> to vector<200x128xbf16>
    %c5 = arith.constant 5 : index
    %c0_24 = arith.constant 0 : index
    %c0_25 = arith.constant 0 : index
    %33 = vector.load %arg2[%c5, %c0_24, %c0_25] : memref<9x128x8xbf16, #tpu.memory_space<vmem>>, vector<1x128x8xbf16>
    %34 = vector.shape_cast %33 : vector<1x128x8xbf16> to vector<128x8xbf16>
    %cst_26 = arith.constant dense<0.000000e+00> : vector<200x8xf32>
    %35 = tpu.matmul %32, %34, %cst_26 {dimension_numbers = #tpu.dot_dimension_numbers<[1], [0], [0], [1], [0, 0, 1, 1], [], []>} : vector<200x128xbf16>, vector<128x8xbf16>, vector<200x8xf32> -> vector<200x8xf32>
    %36 = arith.addf %30, %35 : vector<200x8xf32>
    %c20 = arith.constant 20 : index
    %c0_27 = arith.constant 0 : index
    %37 = vector.load %arg1[%c20, %c0_27] : memref<222x128xf32, #tpu.memory_space<vmem>>, vector<200x128xf32>
    %38 = arith.truncf %37 : vector<200x128xf32> to vector<200x128xbf16>
    %c6 = arith.constant 6 : index
    %c0_28 = arith.constant 0 : index
    %c0_29 = arith.constant 0 : index
    %39 = vector.load %arg2[%c6, %c0_28, %c0_29] : memref<9x128x8xbf16, #tpu.memory_space<vmem>>, vector<1x128x8xbf16>
    %40 = vector.shape_cast %39 : vector<1x128x8xbf16> to vector<128x8xbf16>
    %cst_30 = arith.constant dense<0.000000e+00> : vector<200x8xf32>
    %41 = tpu.matmul %38, %40, %cst_30 {dimension_numbers = #tpu.dot_dimension_numbers<[1], [0], [0], [1], [0, 0, 1, 1], [], []>} : vector<200x128xbf16>, vector<128x8xbf16>, vector<200x8xf32> -> vector<200x8xf32>
    %42 = arith.addf %36, %41 : vector<200x8xf32>
    %c21 = arith.constant 21 : index
    %c0_31 = arith.constant 0 : index
    %43 = vector.load %arg1[%c21, %c0_31] : memref<222x128xf32, #tpu.memory_space<vmem>>, vector<200x128xf32>
    %44 = arith.truncf %43 : vector<200x128xf32> to vector<200x128xbf16>
    %c7 = arith.constant 7 : index
    %c0_32 = arith.constant 0 : index
    %c0_33 = arith.constant 0 : index
    %45 = vector.load %arg2[%c7, %c0_32, %c0_33] : memref<9x128x8xbf16, #tpu.memory_space<vmem>>, vector<1x128x8xbf16>
    %46 = vector.shape_cast %45 : vector<1x128x8xbf16> to vector<128x8xbf16>
    %cst_34 = arith.constant dense<0.000000e+00> : vector<200x8xf32>
    %47 = tpu.matmul %44, %46, %cst_34 {dimension_numbers = #tpu.dot_dimension_numbers<[1], [0], [0], [1], [0, 0, 1, 1], [], []>} : vector<200x128xbf16>, vector<128x8xbf16>, vector<200x8xf32> -> vector<200x8xf32>
    %48 = arith.addf %42, %47 : vector<200x8xf32>
    %c22 = arith.constant 22 : index
    %c0_35 = arith.constant 0 : index
    %49 = vector.load %arg1[%c22, %c0_35] : memref<222x128xf32, #tpu.memory_space<vmem>>, vector<200x128xf32>
    %50 = arith.truncf %49 : vector<200x128xf32> to vector<200x128xbf16>
    %c8 = arith.constant 8 : index
    %c0_36 = arith.constant 0 : index
    %c0_37 = arith.constant 0 : index
    %51 = vector.load %arg2[%c8, %c0_36, %c0_37] : memref<9x128x8xbf16, #tpu.memory_space<vmem>>, vector<1x128x8xbf16>
    %52 = vector.shape_cast %51 : vector<1x128x8xbf16> to vector<128x8xbf16>
    %cst_38 = arith.constant dense<0.000000e+00> : vector<200x8xf32>
    %53 = tpu.matmul %50, %52, %cst_38 {dimension_numbers = #tpu.dot_dimension_numbers<[1], [0], [0], [1], [0, 0, 1, 1], [], []>} : vector<200x128xbf16>, vector<128x8xbf16>, vector<200x8xf32> -> vector<200x8xf32>
    %54 = arith.addf %48, %53 : vector<200x8xf32>
    %c0_39 = arith.constant 0 : index
    %c0_40 = arith.constant 0 : index
    %55 = vector.load %arg3[%c0_39, %c0_40] : memref<200x1xf32, #tpu.memory_space<vmem>>, vector<200x1xf32>
    %56 = vector.broadcast %55 : vector<200x1xf32> to vector<200x8xf32>
    %57 = arith.mulf %54, %56 : vector<200x8xf32>
    %cst_41 = arith.constant dense<0.000000e+00> : vector<8xf32>
    %58 = vector.multi_reduction <add>, %57, %cst_41 [0] : vector<200x8xf32> to vector<8xf32>
    %59 = vector.shape_cast %58 : vector<8xf32> to vector<1x8xf32>
    %cst_42 = arith.constant 7.812500e-03 : f32
    %60 = vector.broadcast %cst_42 : f32 to vector<1x8xf32>
    %61 = arith.mulf %59, %60 : vector<1x8xf32>
    %62 = vector.broadcast %61 : vector<1x8xf32> to vector<200x8xf32>
    %63 = arith.subf %54, %62 : vector<200x8xf32>
    %64 = arith.mulf %63, %63 : vector<200x8xf32>
    %65 = vector.broadcast %55 : vector<200x1xf32> to vector<200x8xf32>
    %66 = arith.mulf %64, %65 : vector<200x8xf32>
    %cst_43 = arith.constant dense<0.000000e+00> : vector<8xf32>
    %67 = vector.multi_reduction <add>, %66, %cst_43 [0] : vector<200x8xf32> to vector<8xf32>
    %68 = vector.shape_cast %67 : vector<8xf32> to vector<1x8xf32>
    %cst_44 = arith.constant 7.812500e-03 : f32
    %69 = vector.broadcast %cst_44 : f32 to vector<1x8xf32>
    %70 = arith.mulf %68, %69 : vector<1x8xf32>
    %c0_45 = arith.constant 0 : index
    %c0_46 = arith.constant 0 : index
    %71 = vector.load %arg4[%c0_45, %c0_46] : memref<1x8xf32, #tpu.memory_space<vmem>>, vector<1x8xf32>
    %cst_47 = arith.constant 9.99999974E-6 : f32
    %72 = vector.broadcast %cst_47 : f32 to vector<1x8xf32>
    %73 = arith.addf %70, %72 : vector<1x8xf32>
    %74 = math.rsqrt %73 : vector<1x8xf32>
    %75 = arith.mulf %71, %74 : vector<1x8xf32>
    %76 = vector.broadcast %75 : vector<1x8xf32> to vector<200x8xf32>
    %77 = arith.mulf %63, %76 : vector<200x8xf32>
    %c0_48 = arith.constant 0 : index
    %c0_49 = arith.constant 0 : index
    %78 = vector.load %arg5[%c0_48, %c0_49] : memref<1x8xf32, #tpu.memory_space<vmem>>, vector<1x8xf32>
    %79 = vector.broadcast %78 : vector<1x8xf32> to vector<200x8xf32>
    %80 = arith.addf %77, %79 : vector<200x8xf32>
    %cst_50 = arith.constant 0.000000e+00 : f32
    %81 = vector.broadcast %cst_50 : f32 to vector<200x8xf32>
    %82 = arith.maximumf %80, %81 : vector<200x8xf32>
    %83 = arith.truncf %82 : vector<200x8xf32> to vector<200x8xbf16>
    %c0_51 = arith.constant 0 : index
    %c0_52 = arith.constant 0 : index
    %84 = vector.load %arg6[%c0_51, %c0_52] : memref<200x8xbf16, #tpu.memory_space<vmem>>, vector<200x8xbf16>
    tpu.vector_store %arg6[%c0_51, %c0_52], %83 {strides = array<i32>} : memref<200x8xbf16, #tpu.memory_space<vmem>>, vector<200x8xbf16>,
    return
  }
  func.func @transform_0(%arg0: i32) -> (i32, i32) {
    %c0_i32 = arith.constant 0 : i32
    %c0_i32_0 = arith.constant 0 : i32
    %c0_i32_1 = arith.constant 0 : i32
    return %c0_i32, %c0_i32_0 : i32, i32
  }
  func.func @transform_1(%arg0: i32) -> (i32, i32, i32) {
    %c0_i32 = arith.constant 0 : i32
    %c0_i32_0 = arith.constant 0 : i32
    %c0_i32_1 = arith.constant 0 : i32
    %c0_i32_2 = arith.constant 0 : i32
    return %c0_i32, %c0_i32_0, %c0_i32_1 : i32, i32, i32
  }
  func.func @transform_2(%arg0: i32) -> (i32, i32) {
    %c0_i32 = arith.constant 0 : i32
    %c0_i32_0 = arith.constant 0 : i32
    %c0_i32_1 = arith.constant 0 : i32
    return %c0_i32, %c0_i32_0 : i32, i32
  }
  func.func @transform_3(%arg0: i32) -> (i32, i32) {
    %c0_i32 = arith.constant 0 : i32
    %c0_i32_0 = arith.constant 0 : i32
    %c0_i32_1 = arith.constant 0 : i32
    return %c0_i32, %c0_i32_0 : i32, i32
  }
  func.func @transform_4(%arg0: i32) -> (i32, i32) {
    %c0_i32 = arith.constant 0 : i32
    %c0_i32_0 = arith.constant 0 : i32
    %c0_i32_1 = arith.constant 0 : i32
    return %c0_i32, %c0_i32_0 : i32, i32
  }
  func.func @transform_5(%arg0: i32) -> (i32, i32) {
    %c0_i32 = arith.constant 0 : i32
    %c0_i32_0 = arith.constant 0 : i32
    %c0_i32_1 = arith.constant 0 : i32
    return %c0_i32, %c0_i32_0 : i32, i32
  }
}

module attributes {stable_mosaic.version = 11 : i64} {
  func.func @_conv_bn_relu_kernel(%arg0: i32, %arg1: memref<86x128xf32, #tpu.memory_space<vmem>>, %arg2: memref<9x128x16xbf16, #tpu.memory_space<vmem>>, %arg3: memref<72x1xf32, #tpu.memory_space<vmem>>, %arg4: memref<1x16xf32, #tpu.memory_space<vmem>>, %arg5: memref<1x16xf32, #tpu.memory_space<vmem>>, %arg6: memref<72x16xbf16, #tpu.memory_space<vmem>>) attributes {dimension_semantics = [#tpu.dimension_semantics<arbitrary>], iteration_bounds = array<i64: 1>, scalar_prefetch = 0 : i64, scratch_operands = 0 : i64, tpu.core_type = #tpu.core_type<tc>, window_params = [{pipeline_mode = #tpu.pipeline_mode<synchronous>, transform_indices = @transform_0, window_bounds = array<i64: 86, 128>}, {pipeline_mode = #tpu.pipeline_mode<synchronous>, transform_indices = @transform_1, window_bounds = array<i64: 9, 128, 16>}, {pipeline_mode = #tpu.pipeline_mode<synchronous>, transform_indices = @transform_2, window_bounds = array<i64: 72, 1>}, {pipeline_mode = #tpu.pipeline_mode<synchronous>, transform_indices = @transform_3, window_bounds = array<i64: 1, 16>}, {pipeline_mode = #tpu.pipeline_mode<synchronous>, transform_indices = @transform_4, window_bounds = array<i64: 1, 16>}, {pipeline_mode = #tpu.pipeline_mode<synchronous>, transform_indices = @transform_5, window_bounds = array<i64: 72, 16>}]} {
    %cst = arith.constant 0.000000e+00 : f32
    %0 = vector.broadcast %cst : f32 to vector<72x16xf32>
    %c0 = arith.constant 0 : index
    %c0_0 = arith.constant 0 : index
    %1 = vector.load %arg1[%c0, %c0_0] : memref<86x128xf32, #tpu.memory_space<vmem>>, vector<72x128xf32>
    %2 = arith.truncf %1 : vector<72x128xf32> to vector<72x128xbf16>
    %c0_1 = arith.constant 0 : index
    %c0_2 = arith.constant 0 : index
    %c0_3 = arith.constant 0 : index
    %3 = vector.load %arg2[%c0_1, %c0_2, %c0_3] : memref<9x128x16xbf16, #tpu.memory_space<vmem>>, vector<1x128x16xbf16>
    %4 = vector.shape_cast %3 : vector<1x128x16xbf16> to vector<128x16xbf16>
    %cst_4 = arith.constant dense<0.000000e+00> : vector<72x16xf32>
    %5 = tpu.matmul %2, %4, %cst_4 {dimension_numbers = #tpu.dot_dimension_numbers<[1], [0], [0], [1], [0, 0, 1, 1], [], []>} : vector<72x128xbf16>, vector<128x16xbf16>, vector<72x16xf32> -> vector<72x16xf32>
    %6 = arith.addf %0, %5 : vector<72x16xf32>
    %c1 = arith.constant 1 : index
    %c0_5 = arith.constant 0 : index
    %7 = vector.load %arg1[%c1, %c0_5] : memref<86x128xf32, #tpu.memory_space<vmem>>, vector<72x128xf32>
    %8 = arith.truncf %7 : vector<72x128xf32> to vector<72x128xbf16>
    %c1_6 = arith.constant 1 : index
    %c0_7 = arith.constant 0 : index
    %c0_8 = arith.constant 0 : index
    %9 = vector.load %arg2[%c1_6, %c0_7, %c0_8] : memref<9x128x16xbf16, #tpu.memory_space<vmem>>, vector<1x128x16xbf16>
    %10 = vector.shape_cast %9 : vector<1x128x16xbf16> to vector<128x16xbf16>
    %cst_9 = arith.constant dense<0.000000e+00> : vector<72x16xf32>
    %11 = tpu.matmul %8, %10, %cst_9 {dimension_numbers = #tpu.dot_dimension_numbers<[1], [0], [0], [1], [0, 0, 1, 1], [], []>} : vector<72x128xbf16>, vector<128x16xbf16>, vector<72x16xf32> -> vector<72x16xf32>
    %12 = arith.addf %6, %11 : vector<72x16xf32>
    %c2 = arith.constant 2 : index
    %c0_10 = arith.constant 0 : index
    %13 = vector.load %arg1[%c2, %c0_10] : memref<86x128xf32, #tpu.memory_space<vmem>>, vector<72x128xf32>
    %14 = arith.truncf %13 : vector<72x128xf32> to vector<72x128xbf16>
    %c2_11 = arith.constant 2 : index
    %c0_12 = arith.constant 0 : index
    %c0_13 = arith.constant 0 : index
    %15 = vector.load %arg2[%c2_11, %c0_12, %c0_13] : memref<9x128x16xbf16, #tpu.memory_space<vmem>>, vector<1x128x16xbf16>
    %16 = vector.shape_cast %15 : vector<1x128x16xbf16> to vector<128x16xbf16>
    %cst_14 = arith.constant dense<0.000000e+00> : vector<72x16xf32>
    %17 = tpu.matmul %14, %16, %cst_14 {dimension_numbers = #tpu.dot_dimension_numbers<[1], [0], [0], [1], [0, 0, 1, 1], [], []>} : vector<72x128xbf16>, vector<128x16xbf16>, vector<72x16xf32> -> vector<72x16xf32>
    %18 = arith.addf %12, %17 : vector<72x16xf32>
    %c6 = arith.constant 6 : index
    %c0_15 = arith.constant 0 : index
    %19 = vector.load %arg1[%c6, %c0_15] : memref<86x128xf32, #tpu.memory_space<vmem>>, vector<72x128xf32>
    %20 = arith.truncf %19 : vector<72x128xf32> to vector<72x128xbf16>
    %c3 = arith.constant 3 : index
    %c0_16 = arith.constant 0 : index
    %c0_17 = arith.constant 0 : index
    %21 = vector.load %arg2[%c3, %c0_16, %c0_17] : memref<9x128x16xbf16, #tpu.memory_space<vmem>>, vector<1x128x16xbf16>
    %22 = vector.shape_cast %21 : vector<1x128x16xbf16> to vector<128x16xbf16>
    %cst_18 = arith.constant dense<0.000000e+00> : vector<72x16xf32>
    %23 = tpu.matmul %20, %22, %cst_18 {dimension_numbers = #tpu.dot_dimension_numbers<[1], [0], [0], [1], [0, 0, 1, 1], [], []>} : vector<72x128xbf16>, vector<128x16xbf16>, vector<72x16xf32> -> vector<72x16xf32>
    %24 = arith.addf %18, %23 : vector<72x16xf32>
    %c7 = arith.constant 7 : index
    %c0_19 = arith.constant 0 : index
    %25 = vector.load %arg1[%c7, %c0_19] : memref<86x128xf32, #tpu.memory_space<vmem>>, vector<72x128xf32>
    %26 = arith.truncf %25 : vector<72x128xf32> to vector<72x128xbf16>
    %c4 = arith.constant 4 : index
    %c0_20 = arith.constant 0 : index
    %c0_21 = arith.constant 0 : index
    %27 = vector.load %arg2[%c4, %c0_20, %c0_21] : memref<9x128x16xbf16, #tpu.memory_space<vmem>>, vector<1x128x16xbf16>
    %28 = vector.shape_cast %27 : vector<1x128x16xbf16> to vector<128x16xbf16>
    %cst_22 = arith.constant dense<0.000000e+00> : vector<72x16xf32>
    %29 = tpu.matmul %26, %28, %cst_22 {dimension_numbers = #tpu.dot_dimension_numbers<[1], [0], [0], [1], [0, 0, 1, 1], [], []>} : vector<72x128xbf16>, vector<128x16xbf16>, vector<72x16xf32> -> vector<72x16xf32>
    %30 = arith.addf %24, %29 : vector<72x16xf32>
    %c8 = arith.constant 8 : index
    %c0_23 = arith.constant 0 : index
    %31 = vector.load %arg1[%c8, %c0_23] : memref<86x128xf32, #tpu.memory_space<vmem>>, vector<72x128xf32>
    %32 = arith.truncf %31 : vector<72x128xf32> to vector<72x128xbf16>
    %c5 = arith.constant 5 : index
    %c0_24 = arith.constant 0 : index
    %c0_25 = arith.constant 0 : index
    %33 = vector.load %arg2[%c5, %c0_24, %c0_25] : memref<9x128x16xbf16, #tpu.memory_space<vmem>>, vector<1x128x16xbf16>
    %34 = vector.shape_cast %33 : vector<1x128x16xbf16> to vector<128x16xbf16>
    %cst_26 = arith.constant dense<0.000000e+00> : vector<72x16xf32>
    %35 = tpu.matmul %32, %34, %cst_26 {dimension_numbers = #tpu.dot_dimension_numbers<[1], [0], [0], [1], [0, 0, 1, 1], [], []>} : vector<72x128xbf16>, vector<128x16xbf16>, vector<72x16xf32> -> vector<72x16xf32>
    %36 = arith.addf %30, %35 : vector<72x16xf32>
    %c12 = arith.constant 12 : index
    %c0_27 = arith.constant 0 : index
    %37 = vector.load %arg1[%c12, %c0_27] : memref<86x128xf32, #tpu.memory_space<vmem>>, vector<72x128xf32>
    %38 = arith.truncf %37 : vector<72x128xf32> to vector<72x128xbf16>
    %c6_28 = arith.constant 6 : index
    %c0_29 = arith.constant 0 : index
    %c0_30 = arith.constant 0 : index
    %39 = vector.load %arg2[%c6_28, %c0_29, %c0_30] : memref<9x128x16xbf16, #tpu.memory_space<vmem>>, vector<1x128x16xbf16>
    %40 = vector.shape_cast %39 : vector<1x128x16xbf16> to vector<128x16xbf16>
    %cst_31 = arith.constant dense<0.000000e+00> : vector<72x16xf32>
    %41 = tpu.matmul %38, %40, %cst_31 {dimension_numbers = #tpu.dot_dimension_numbers<[1], [0], [0], [1], [0, 0, 1, 1], [], []>} : vector<72x128xbf16>, vector<128x16xbf16>, vector<72x16xf32> -> vector<72x16xf32>
    %42 = arith.addf %36, %41 : vector<72x16xf32>
    %c13 = arith.constant 13 : index
    %c0_32 = arith.constant 0 : index
    %43 = vector.load %arg1[%c13, %c0_32] : memref<86x128xf32, #tpu.memory_space<vmem>>, vector<72x128xf32>
    %44 = arith.truncf %43 : vector<72x128xf32> to vector<72x128xbf16>
    %c7_33 = arith.constant 7 : index
    %c0_34 = arith.constant 0 : index
    %c0_35 = arith.constant 0 : index
    %45 = vector.load %arg2[%c7_33, %c0_34, %c0_35] : memref<9x128x16xbf16, #tpu.memory_space<vmem>>, vector<1x128x16xbf16>
    %46 = vector.shape_cast %45 : vector<1x128x16xbf16> to vector<128x16xbf16>
    %cst_36 = arith.constant dense<0.000000e+00> : vector<72x16xf32>
    %47 = tpu.matmul %44, %46, %cst_36 {dimension_numbers = #tpu.dot_dimension_numbers<[1], [0], [0], [1], [0, 0, 1, 1], [], []>} : vector<72x128xbf16>, vector<128x16xbf16>, vector<72x16xf32> -> vector<72x16xf32>
    %48 = arith.addf %42, %47 : vector<72x16xf32>
    %c14 = arith.constant 14 : index
    %c0_37 = arith.constant 0 : index
    %49 = vector.load %arg1[%c14, %c0_37] : memref<86x128xf32, #tpu.memory_space<vmem>>, vector<72x128xf32>
    %50 = arith.truncf %49 : vector<72x128xf32> to vector<72x128xbf16>
    %c8_38 = arith.constant 8 : index
    %c0_39 = arith.constant 0 : index
    %c0_40 = arith.constant 0 : index
    %51 = vector.load %arg2[%c8_38, %c0_39, %c0_40] : memref<9x128x16xbf16, #tpu.memory_space<vmem>>, vector<1x128x16xbf16>
    %52 = vector.shape_cast %51 : vector<1x128x16xbf16> to vector<128x16xbf16>
    %cst_41 = arith.constant dense<0.000000e+00> : vector<72x16xf32>
    %53 = tpu.matmul %50, %52, %cst_41 {dimension_numbers = #tpu.dot_dimension_numbers<[1], [0], [0], [1], [0, 0, 1, 1], [], []>} : vector<72x128xbf16>, vector<128x16xbf16>, vector<72x16xf32> -> vector<72x16xf32>
    %54 = arith.addf %48, %53 : vector<72x16xf32>
    %c0_42 = arith.constant 0 : index
    %c0_43 = arith.constant 0 : index
    %55 = vector.load %arg3[%c0_42, %c0_43] : memref<72x1xf32, #tpu.memory_space<vmem>>, vector<72x1xf32>
    %56 = vector.broadcast %55 : vector<72x1xf32> to vector<72x16xf32>
    %57 = arith.mulf %54, %56 : vector<72x16xf32>
    %cst_44 = arith.constant dense<0.000000e+00> : vector<16xf32>
    %58 = vector.multi_reduction <add>, %57, %cst_44 [0] : vector<72x16xf32> to vector<16xf32>
    %59 = vector.shape_cast %58 : vector<16xf32> to vector<1x16xf32>
    %cst_45 = arith.constant 3.125000e-02 : f32
    %60 = vector.broadcast %cst_45 : f32 to vector<1x16xf32>
    %61 = arith.mulf %59, %60 : vector<1x16xf32>
    %62 = vector.broadcast %61 : vector<1x16xf32> to vector<72x16xf32>
    %63 = arith.subf %54, %62 : vector<72x16xf32>
    %64 = arith.mulf %63, %63 : vector<72x16xf32>
    %65 = vector.broadcast %55 : vector<72x1xf32> to vector<72x16xf32>
    %66 = arith.mulf %64, %65 : vector<72x16xf32>
    %cst_46 = arith.constant dense<0.000000e+00> : vector<16xf32>
    %67 = vector.multi_reduction <add>, %66, %cst_46 [0] : vector<72x16xf32> to vector<16xf32>
    %68 = vector.shape_cast %67 : vector<16xf32> to vector<1x16xf32>
    %cst_47 = arith.constant 3.125000e-02 : f32
    %69 = vector.broadcast %cst_47 : f32 to vector<1x16xf32>
    %70 = arith.mulf %68, %69 : vector<1x16xf32>
    %c0_48 = arith.constant 0 : index
    %c0_49 = arith.constant 0 : index
    %71 = vector.load %arg4[%c0_48, %c0_49] : memref<1x16xf32, #tpu.memory_space<vmem>>, vector<1x16xf32>
    %cst_50 = arith.constant 9.99999974E-6 : f32
    %72 = vector.broadcast %cst_50 : f32 to vector<1x16xf32>
    %73 = arith.addf %70, %72 : vector<1x16xf32>
    %74 = math.rsqrt %73 : vector<1x16xf32>
    %75 = arith.mulf %71, %74 : vector<1x16xf32>
    %76 = vector.broadcast %75 : vector<1x16xf32> to vector<72x16xf32>
    %77 = arith.mulf %63, %76 : vector<72x16xf32>
    %c0_51 = arith.constant 0 : index
    %c0_52 = arith.constant 0 : index
    %78 = vector.load %arg5[%c0_51, %c0_52] : memref<1x16xf32, #tpu.memory_space<vmem>>, vector<1x16xf32>
    %79 = vector.broadcast %78 : vector<1x16xf32> to vector<72x16xf32>
    %80 = arith.addf %77, %79 : vector<72x16xf32>
    %cst_53 = arith.constant 0.000000e+00 : f32
    %81 = vector.broadcast %cst_53 : f32 to vector<72x16xf32>
    %82 = arith.maximumf %80, %81 : vector<72x16xf32>
    %83 = arith.truncf %82 : vector<72x16xf32> to vector<72x16xbf16>
    %c0_54 = arith.constant 0 : index
    %c0_55 = arith.constant 0 : index
    %84 = vector.load %arg6[%c0_54, %c0_55] : memref<72x16xbf16, #tpu.memory_space<vmem>>, vector<72x16xbf16>
    tpu.vector_store %arg6[%c0_54, %c0_55], %83 {strides = array<i32>} : memref<72x16xbf16, #tpu.memory_space<vmem>>, vector<72x16xbf16>,
    return
  }
  func.func @transform_0(%arg0: i32) -> (i32, i32) {
    %c0_i32 = arith.constant 0 : i32
    %c0_i32_0 = arith.constant 0 : i32
    %c0_i32_1 = arith.constant 0 : i32
    return %c0_i32, %c0_i32_0 : i32, i32
  }
  func.func @transform_1(%arg0: i32) -> (i32, i32, i32) {
    %c0_i32 = arith.constant 0 : i32
    %c0_i32_0 = arith.constant 0 : i32
    %c0_i32_1 = arith.constant 0 : i32
    %c0_i32_2 = arith.constant 0 : i32
    return %c0_i32, %c0_i32_0, %c0_i32_1 : i32, i32, i32
  }
  func.func @transform_2(%arg0: i32) -> (i32, i32) {
    %c0_i32 = arith.constant 0 : i32
    %c0_i32_0 = arith.constant 0 : i32
    %c0_i32_1 = arith.constant 0 : i32
    return %c0_i32, %c0_i32_0 : i32, i32
  }
  func.func @transform_3(%arg0: i32) -> (i32, i32) {
    %c0_i32 = arith.constant 0 : i32
    %c0_i32_0 = arith.constant 0 : i32
    %c0_i32_1 = arith.constant 0 : i32
    return %c0_i32, %c0_i32_0 : i32, i32
  }
  func.func @transform_4(%arg0: i32) -> (i32, i32) {
    %c0_i32 = arith.constant 0 : i32
    %c0_i32_0 = arith.constant 0 : i32
    %c0_i32_1 = arith.constant 0 : i32
    return %c0_i32, %c0_i32_0 : i32, i32
  }
  func.func @transform_5(%arg0: i32) -> (i32, i32) {
    %c0_i32 = arith.constant 0 : i32
    %c0_i32_0 = arith.constant 0 : i32
    %c0_i32_1 = arith.constant 0 : i32
    return %c0_i32, %c0_i32_0 : i32, i32
  }
}

module attributes {stable_mosaic.version = 11 : i64} {
  func.func @_heads_kernel(%arg0: i32, %arg1: memref<2x256xbf16, #tpu.memory_space<vmem>>, %arg2: memref<256x128xf32, #tpu.memory_space<vmem>>, %arg3: memref<1x128xf32, #tpu.memory_space<vmem>>, %arg4: memref<2x128xf32, #tpu.memory_space<vmem>>) attributes {dimension_semantics = [#tpu.dimension_semantics<arbitrary>], iteration_bounds = array<i64: 1>, scalar_prefetch = 0 : i64, scratch_operands = 0 : i64, tpu.core_type = #tpu.core_type<tc>, window_params = [{pipeline_mode = #tpu.pipeline_mode<synchronous>, transform_indices = @transform_0, window_bounds = array<i64: 2, 256>}, {pipeline_mode = #tpu.pipeline_mode<synchronous>, transform_indices = @transform_1, window_bounds = array<i64: 256, 128>}, {pipeline_mode = #tpu.pipeline_mode<synchronous>, transform_indices = @transform_2, window_bounds = array<i64: 1, 128>}, {pipeline_mode = #tpu.pipeline_mode<synchronous>, transform_indices = @transform_3, window_bounds = array<i64: 2, 128>}]} {
    %c0 = arith.constant 0 : index
    %c0_0 = arith.constant 0 : index
    %0 = vector.load %arg1[%c0, %c0_0] : memref<2x256xbf16, #tpu.memory_space<vmem>>, vector<2x256xbf16>
    %1 = arith.extf %0 : vector<2x256xbf16> to vector<2x256xf32>
    %c0_1 = arith.constant 0 : index
    %c0_2 = arith.constant 0 : index
    %2 = vector.load %arg2[%c0_1, %c0_2] : memref<256x128xf32, #tpu.memory_space<vmem>>, vector<256x128xf32>
    %cst = arith.constant dense<0.000000e+00> : vector<2x128xf32>
    %3 = tpu.matmul %1, %2, %cst {dimension_numbers = #tpu.dot_dimension_numbers<[1], [0], [0], [1], [0, 0, 1, 1], [], []>} : vector<2x256xf32>, vector<256x128xf32>, vector<2x128xf32> -> vector<2x128xf32>
    %c0_3 = arith.constant 0 : index
    %c0_4 = arith.constant 0 : index
    %4 = vector.load %arg3[%c0_3, %c0_4] : memref<1x128xf32, #tpu.memory_space<vmem>>, vector<1x128xf32>
    %5 = vector.broadcast %4 : vector<1x128xf32> to vector<2x128xf32>
    %6 = arith.addf %3, %5 : vector<2x128xf32>
    %c0_5 = arith.constant 0 : index
    %c0_6 = arith.constant 0 : index
    %7 = vector.load %arg4[%c0_5, %c0_6] : memref<2x128xf32, #tpu.memory_space<vmem>>, vector<2x128xf32>
    tpu.vector_store %arg4[%c0_5, %c0_6], %6 {strides = array<i32>} : memref<2x128xf32, #tpu.memory_space<vmem>>, vector<2x128xf32>,
    return
  }
  func.func @transform_0(%arg0: i32) -> (i32, i32) {
    %c0_i32 = arith.constant 0 : i32
    %c0_i32_0 = arith.constant 0 : i32
    %c0_i32_1 = arith.constant 0 : i32
    return %c0_i32, %c0_i32_0 : i32, i32
  }
  func.func @transform_1(%arg0: i32) -> (i32, i32) {
    %c0_i32 = arith.constant 0 : i32
    %c0_i32_0 = arith.constant 0 : i32
    %c0_i32_1 = arith.constant 0 : i32
    return %c0_i32, %c0_i32_0 : i32, i32
  }
  func.func @transform_2(%arg0: i32) -> (i32, i32) {
    %c0_i32 = arith.constant 0 : i32
    %c0_i32_0 = arith.constant 0 : i32
    %c0_i32_1 = arith.constant 0 : i32
    return %c0_i32, %c0_i32_0 : i32, i32
  }
  func.func @transform_3(%arg0: i32) -> (i32, i32) {
    %c0_i32 = arith.constant 0 : i32
    %c0_i32_0 = arith.constant 0 : i32
    %c0_i32_1 = arith.constant 0 : i32
    return %c0_i32, %c0_i32_0 : i32, i32
  }
}

</mosaic_0001>

<llo_original>
// kernel: conv_encoder_forward.5
$region0: #{conv_encoder_forward.5}
  #allocation0 [shape = 'u32[]', space=smem, size = 0x4, offset = 0x4, fixed_abs, tag = 'smem constant byte address 0x4 - core index']
  #allocation1 [shape = 'u32[144,128]{1,0:T(1,128)}', space=vmem, size = 0x12000, scoped, tag = 'internal scratch']
  %s0 = inlined_call_operand.vmem [shape: bf16[2,256], index: 0, kind: input, shape index: {}]
  %s1 = inlined_call_operand.vmem [shape: f32[256,128], index: 1, kind: input, shape index: {}]
  %s2 = inlined_call_operand.vmem [shape: f32[1,128], index: 2, kind: input, shape index: {}]
  %s3 = inlined_call_operand.vmem [shape: f32[2,128], index: 3, kind: output, shape index: {}]
  %s4 = sld [smem:[#allocation0]]
  $region22: #{conv_encoder_forward.5} parent=0
    _
  %s6 = ssub.s32 1, %s4
  %s7 = scalar_select 0, %s6, %s4
  // Predicated region
  $region2: #{conv_encoder_forward.5} parent=0 // pred_check
    _
  $region3: #{conv_encoder_forward.5} parent=0 // pred_check_branch
    %9 = sbr.rel (0) target = $region5
  $region4: #{conv_encoder_forward.5} parent=0 // pred_region
    _
  $region5: #{conv_encoder_forward.5} parent=0 // pred_fallthru
    _
  // Predicated region
  $region6: #{conv_encoder_forward.5} parent=0 // pred_check
    _
  $region7: #{conv_encoder_forward.5} parent=0 // pred_check_branch
    %11 = sbr.rel (0) target = $region9
  $region8: #{conv_encoder_forward.5} parent=0 // pred_region
    _
  $region9: #{conv_encoder_forward.5} parent=0 // pred_fallthru
    _
  // Predicated region
  $region10: #{conv_encoder_forward.5} parent=0 // pred_check
    _
  $region11: #{conv_encoder_forward.5} parent=0 // pred_check_branch
    %13 = sbr.rel (0) target = $region13
  $region12: #{conv_encoder_forward.5} parent=0 // pred_region
    _
  $region13: #{conv_encoder_forward.5} parent=0 // pred_fallthru
    _
  %v14 = vld [vmem:[%s0] sm:$0x3]
  %v15 = vunpack.c.l.bf16 %v14
  %v16 = vld [vmem:[%s1] sm:$0xff]
  %v17 = vld [vmem:[%s1 + $0x8] sm:$0xff]
  %v18 = vld [vmem:[%s1 + $0x10] sm:$0xff]
  %v19 = vld [vmem:[%s1 + $0x18] sm:$0xff]
  %v20 = vld [vmem:[%s1 + $0x20] sm:$0xff]
  %v21 = vld [vmem:[%s1 + $0x28] sm:$0xff]
  %v22 = vld [vmem:[%s1 + $0x30] sm:$0xff]
  %v23 = vld [vmem:[%s1 + $0x38] sm:$0xff]
  %v24 = vld [vmem:[%s1 + $0x40] sm:$0xff]
  %v25 = vld [vmem:[%s1 + $0x48] sm:$0xff]
  %v26 = vld [vmem:[%s1 + $0x50] sm:$0xff]
  %v27 = vld [vmem:[%s1 + $0x58] sm:$0xff]
  %v28 = vld [vmem:[%s1 + $0x60] sm:$0xff]
  %v29 = vld [vmem:[%s1 + $0x68] sm:$0xff]
  %v30 = vld [vmem:[%s1 + $0x70] sm:$0xff]
  %v31 = vld [vmem:[%s1 + $0x78] sm:$0xff]
  %v32 = vld [vmem:[%s1 + $0x80] sm:$0xff]
  %v33 = vld [vmem:[%s1 + $0x88] sm:$0xff]
  %v34 = vld [vmem:[%s1 + $0x90] sm:$0xff]
  %v35 = vld [vmem:[%s1 + $0x98] sm:$0xff]
  %v36 = vld [vmem:[%s1 + $0xa0] sm:$0xff]
  %v37 = vld [vmem:[%s1 + $0xa8] sm:$0xff]
  %v38 = vld [vmem:[%s1 + $0xb0] sm:$0xff]
  %v39 = vld [vmem:[%s1 + $0xb8] sm:$0xff]
  %v40 = vld [vmem:[%s1 + $0xc0] sm:$0xff]
  %v41 = vld [vmem:[%s1 + $0xc8] sm:$0xff]
  %v42 = vld [vmem:[%s1 + $0xd0] sm:$0xff]
  %v43 = vld [vmem:[%s1 + $0xd8] sm:$0xff]
  %v44 = vld [vmem:[%s1 + $0xe0] sm:$0xff]
  %v45 = vld [vmem:[%s1 + $0xe8] sm:$0xff]
  %v46 = vld [vmem:[%s1 + $0xf0] sm:$0xff]
  %v47 = vld [vmem:[%s1 + $0xf8] sm:$0xff]
  %v48 = vld [vmem:[%s2] sm:$0x1]
  %v50 = vlaneseq
  %v51 = vshrl.u32 %v50, 7
  %v52 = vsub.s32 0, %v51
  %v53 = vrot.slane %v48, %v52
  %v57 = vunpack.c.l.s4 1983009808
  %v58 = vunpack.c.0.s8 %v57
  %v59 = vlaneseq
  %v60 = vshrl.u32 %v59, 7
  %v61 = vsub.s32 %v58, %v60
  %v62 = vrot.slane %v15, %v61
  %v63 = vcombine.high %v62, %v62
  %66 = vmatprep.subr.mxu0 0.0
  %67 = vmatpush1.msra.mxu0 %v31
  %68 = vmatprep.subr.mxu0 0.0
  %69 = vmatpush1.msra.mxu0 %v30
  %70 = vmatprep.subr.mxu0 0.0
  %71 = vmatpush1.msra.mxu0 %v29
  %72 = vmatprep.subr.mxu0 0.0
  %73 = vmatpush1.msra.mxu0 %v28
  %74 = vmatprep.subr.mxu0 0.0
  %75 = vmatpush1.msra.mxu0 %v27
  %76 = vmatprep.subr.mxu0 0.0
  %77 = vmatpush1.msra.mxu0 %v26
  %78 = vmatprep.subr.mxu0 0.0
  %79 = vmatpush1.msra.mxu0 %v25
  %80 = vmatprep.subr.mxu0 0.0
  %81 = vmatpush1.msra.mxu0 %v24
  %82 = vmatprep.subr.mxu0 0.0
  %83 = vmatpush1.msra.mxu0 %v23
  %84 = vmatprep.subr.mxu0 0.0
  %85 = vmatpush1.msra.mxu0 %v22
  %86 = vmatprep.subr.mxu0 0.0
  %87 = vmatpush1.msra.mxu0 %v21
  %88 = vmatprep.subr.mxu0 0.0
  %89 = vmatpush1.msra.mxu0 %v20
  %90 = vmatprep.subr.mxu0 0.0
  %91 = vmatpush1.msra.mxu0 %v19
  %92 = vmatprep.subr.mxu0 0.0
  %93 = vmatpush1.msra.mxu0 %v18
  %94 = vmatprep.subr.mxu0 0.0
  %95 = vmatpush1.msra.mxu0 %v17
  %96 = vmatprep.subr.mxu0 0.0
  %97 = vmatpush1.msra.mxu0 %v16
  %98 = vmatprep.subr.mxu0 0.0
  %99 = vmatpush2.msra.mxu0 %v47
  %100 = vmatprep.subr.mxu0 0.0
  %101 = vmatpush2.msra.mxu0 %v46
  %102 = vmatprep.subr.mxu0 0.0
  %103 = vmatpush2.msra.mxu0 %v45
  %104 = vmatprep.subr.mxu0 0.0
  %105 = vmatpush2.msra.mxu0 %v44
  %106 = vmatprep.subr.mxu0 0.0
  %107 = vmatpush2.msra.mxu0 %v43
  %108 = vmatprep.subr.mxu0 0.0
  %109 = vmatpush2.msra.mxu0 %v42
  %110 = vmatprep.subr.mxu0 0.0
  %111 = vmatpush2.msra.mxu0 %v41
  %112 = vmatprep.subr.mxu0 0.0
  %113 = vmatpush2.msra.mxu0 %v40
  %114 = vmatprep.subr.mxu0 0.0
  %115 = vmatpush2.msra.mxu0 %v39
  %116 = vmatprep.subr.mxu0 0.0
  %117 = vmatpush2.msra.mxu0 %v38
  %118 = vmatprep.subr.mxu0 0.0
  %119 = vmatpush2.msra.mxu0 %v37
  %120 = vmatprep.subr.mxu0 0.0
  %121 = vmatpush2.msra.mxu0 %v36
  %122 = vmatprep.subr.mxu0 0.0
  %123 = vmatpush2.msra.mxu0 %v35
  %124 = vmatprep.subr.mxu0 0.0
  %125 = vmatpush2.msra.mxu0 %v34
  %126 = vmatprep.subr.mxu0 0.0
  %127 = vmatpush2.msra.mxu0 %v33
  %128 = vmatprep.subr.mxu0 0.0
  %129 = vmatpush2.msra.mxu0 %v32
  %130 = vmatprep.mubr.f32.mxu0 %v63
  %131 = vmatmul.mubr.f32.gmra.mxu0 %v62
  %v132 = vpop.f32.mrf.mxu0
  %v133 = vadd.f32 %v53, %v132
  %v134 = vpop.f32.mrf.mxu0
  %135 = vdwg.mxu0
  %136 = vst [vmem:[%s3] sm:$0x3] %v133
  // Predicated region
  $region14: #{conv_encoder_forward.5} parent=0 // pred_check
    _
  $region15: #{conv_encoder_forward.5} parent=0 // pred_check_branch
    %138 = sbr.rel (0) target = $region17
  $region16: #{conv_encoder_forward.5} parent=0 // pred_region
    _
  $region17: #{conv_encoder_forward.5} parent=0 // pred_fallthru
    _
  // Predicated region
  $region18: #{conv_encoder_forward.5} parent=0 // pred_check
    _
  $region19: #{conv_encoder_forward.5} parent=0 // pred_check_branch
    %140 = sbr.rel (0) target = $region21
  $region20: #{conv_encoder_forward.5} parent=0 // pred_region
    _
  $region21: #{conv_encoder_forward.5} parent=0 // pred_fallthru
    _

// kernel: conv_encoder_forward.3
$region0: #{conv_encoder_forward.3}
  #allocation0 [shape = 'u32[]', space=smem, size = 0x4, offset = 0x4, fixed_abs, tag = 'smem constant byte address 0x4 - core index']
  #allocation1 [shape = 'u32[144,128]{1,0:T(1,128)}', space=vmem, size = 0x12000, scoped, tag = 'internal scratch']
  %s0 = inlined_call_operand.vmem [shape: f32[222,128], index: 0, kind: input, shape index: {}]
  %s1 = inlined_call_operand.vmem [shape: bf16[9,128,8], index: 1, kind: input, shape index: {}]
  %s2 = inlined_call_operand.vmem [shape: f32[200,1], index: 2, kind: input, shape index: {}]
  %s3 = inlined_call_operand.vmem [shape: f32[1,8], index: 3, kind: input, shape index: {}]
  %s4 = inlined_call_operand.vmem [shape: f32[1,8], index: 4, kind: input, shape index: {}]
  %s5 = inlined_call_operand.vmem [shape: bf16[200,8], index: 5, kind: output, shape index: {}]
  %s6 = sld [smem:[#allocation0]]
  $region30: #{conv_encoder_forward.3} parent=0
    _
  %s8 = ssub.s32 1, %s6
  %s9 = scalar_select 0, %s8, %s6
  // Predicated region
  $region2: #{conv_encoder_forward.3} parent=0 // pred_check
    _
  $region3: #{conv_encoder_forward.3} parent=0 // pred_check_branch
    %11 = sbr.rel (0) target = $region5
  $region4: #{conv_encoder_forward.3} parent=0 // pred_region
    _
  $region5: #{conv_encoder_forward.3} parent=0 // pred_fallthru
    _
  // Predicated region
  $region6: #{conv_encoder_forward.3} parent=0 // pred_check
    _
  $region7: #{conv_encoder_forward.3} parent=0 // pred_check_branch
    %13 = sbr.rel (0) target = $region9
  $region8: #{conv_encoder_forward.3} parent=0 // pred_region
    _
  $region9: #{conv_encoder_forward.3} parent=0 // pred_fallthru
    _
  // Predicated region
  $region10: #{conv_encoder_forward.3} parent=0 // pred_check
    _
  $region11: #{conv_encoder_forward.3} parent=0 // pred_check_branch
    %15 = sbr.rel (0) target = $region13
  $region12: #{conv_encoder_forward.3} parent=0 // pred_region
    _
  $region13: #{conv_encoder_forward.3} parent=0 // pred_fallthru
    _
  // Predicated region
  $region14: #{conv_encoder_forward.3} parent=0 // pred_check
    _
  $region15: #{conv_encoder_forward.3} parent=0 // pred_check_branch
    %17 = sbr.rel (0) target = $region17
  $region16: #{conv_encoder_forward.3} parent=0 // pred_region
    _
  $region17: #{conv_encoder_forward.3} parent=0 // pred_fallthru
    _
  // Predicated region
  $region18: #{conv_encoder_forward.3} parent=0 // pred_check
    _
  $region19: #{conv_encoder_forward.3} parent=0 // pred_check_branch
    %19 = sbr.rel (0) target = $region21
  $region20: #{conv_encoder_forward.3} parent=0 // pred_region
    _
  $region21: #{conv_encoder_forward.3} parent=0 // pred_fallthru
    _
  %v21 = vld [vmem:[%s0] sm:$0xff]
  %v22 = vld [vmem:[%s0 + $0x8] sm:$0xff]
  %v23 = vld [vmem:[%s0 + $0x10] sm:$0xff]
  %v24 = vld [vmem:[%s0 + $0x18] sm:$0xff]
  %v25 = vld [vmem:[%s0 + $0x20] sm:$0xff]
  %v26 = vld [vmem:[%s0 + $0x28] sm:$0xff]
  %v27 = vld [vmem:[%s0 + $0x30] sm:$0xff]
  %v28 = vld [vmem:[%s0 + $0x38] sm:$0xff]
  %v29 = vld [vmem:[%s0 + $0x40] sm:$0xff]
  %v30 = vld [vmem:[%s0 + $0x48] sm:$0xff]
  %v31 = vld [vmem:[%s0 + $0x50] sm:$0xff]
  %v32 = vld [vmem:[%s0 + $0x58] sm:$0xff]
  %v33 = vld [vmem:[%s0 + $0x60] sm:$0xff]
  %v34 = vld [vmem:[%s0 + $0x68] sm:$0xff]
  %v35 = vld [vmem:[%s0 + $0x70] sm:$0xff]
  %v36 = vld [vmem:[%s0 + $0x78] sm:$0xff]
  %v37 = vld [vmem:[%s0 + $0x80] sm:$0xff]
  %v38 = vld [vmem:[%s0 + $0x88] sm:$0xff]
  %v39 = vld [vmem:[%s0 + $0x90] sm:$0xff]
  %v40 = vld [vmem:[%s0 + $0x98] sm:$0xff]
  %v41 = vld [vmem:[%s0 + $0xa0] sm:$0xff]
  %v42 = vld [vmem:[%s0 + $0xa8] sm:$0xff]
  %v43 = vld [vmem:[%s0 + $0xb0] sm:$0xff]
  %v44 = vld [vmem:[%s0 + $0xb8] sm:$0xff]
  %v45 = vld [vmem:[%s0 + $0xc0] sm:$0xff]
  %v46 = vpack.c.bf16 %v22, %v21
  %v47 = vpack.c.bf16 %v24, %v23
  %v48 = vpack.c.bf16 %v26, %v25
  %v49 = vpack.c.bf16 %v28, %v27
  %v50 = vpack.c.bf16 %v30, %v29
  %v51 = vpack.c.bf16 %v32, %v31
  %v52 = vpack.c.bf16 %v34, %v33
  %v53 = vpack.c.bf16 %v36, %v35
  %v54 = vpack.c.bf16 %v38, %v37
  %v55 = vpack.c.bf16 %v40, %v39
  %v56 = vpack.c.bf16 %v42, %v41
  %v57 = vpack.c.bf16 %v44, %v43
  %v58 = vpack.c.bf16 %v45, %v45
  %v59 = vld [vmem:[%s1] sm:$0xf]
  %v60 = vld [vmem:[%s1 + $0x4] sm:$0xf]
  %v61 = vld [vmem:[%s1 + $0x8] sm:$0xf]
  %v62 = vld [vmem:[%s1 + $0xc] sm:$0xf]
  %v63 = vld [vmem:[%s1 + $0x10] sm:$0xf]
  %v64 = vld [vmem:[%s1 + $0x14] sm:$0xf]
  %v65 = vld [vmem:[%s1 + $0x18] sm:$0xf]
  %v66 = vld [vmem:[%s1 + $0x1c] sm:$0xf]
  %v67 = vld [vmem:[%s1 + $0x20] sm:$0xf]
  %v68 = vld [vmem:[%s1 + $0x24] sm:$0xf]
  %v69 = vld [vmem:[%s1 + $0x28] sm:$0xf]
  %v70 = vld [vmem:[%s1 + $0x2c] sm:$0xf]
  %v71 = vld [vmem:[%s1 + $0x30] sm:$0xf]
  %v72 = vld [vmem:[%s1 + $0x34] sm:$0xf]
  %v73 = vld [vmem:[%s1 + $0x38] sm:$0xf]
  %v74 = vld [vmem:[%s1 + $0x3c] sm:$0xf]
  %v75 = vld [vmem:[%s0 + $0x1] sm:$0xff]
  %v76 = vld [vmem:[%s0 + $0x9] sm:$0xff]
  %v77 = vld [vmem:[%s0 + $0x11] sm:$0xff]
  %v78 = vld [vmem:[%s0 + $0x19] sm:$0xff]
  %v79 = vld [vmem:[%s0 + $0x21] sm:$0xff]
  %v80 = vld [vmem:[%s0 + $0x29] sm:$0xff]
  %v81 = vld [vmem:[%s0 + $0x31] sm:$0xff]
  %v82 = vld [vmem:[%s0 + $0x39] sm:$0xff]
  %v83 = vld [vmem:[%s0 + $0x41] sm:$0xff]
  %v84 = vld [vmem:[%s0 + $0x49] sm:$0xff]
  %v85 = vld [vmem:[%s0 + $0x51] sm:$0xff]
  %v86 = vld [vmem:[%s0 + $0x59] sm:$0xff]
  %v87 = vld [vmem:[%s0 + $0x61] sm:$0xff]
  %v88 = vld [vmem:[%s0 + $0x69] sm:$0xff]
  %v89 = vld [vmem:[%s0 + $0x71] sm:$0xff]
  %v90 = vld [vmem:[%s0 + $0x79] sm:$0xff]
  %v91 = vld [vmem:[%s0 + $0x81] sm:$0xff]
  %v92 = vld [vmem:[%s0 + $0x89] sm:$0xff]
  %v93 = vld [vmem:[%s0 + $0x91] sm:$0xff]
  %v94 = vld [vmem:[%s0 + $0x99] sm:$0xff]
  %v95 = vld [vmem:[%s0 + $0xa1] sm:$0xff]
  %v96 = vld [vmem:[%s0 + $0xa9] sm:$0xff]
  %v97 = vld [vmem:[%s0 + $0xb1] sm:$0xff]
  %v98 = vld [vmem:[%s0 + $0xb9] sm:$0xff]
  %v99 = vld [vmem:[%s0 + $0xc1] sm:$0xff]
  %v100 = vpack.c.bf16 %v76, %v75
  %v101 = vpack.c.bf16 %v78, %v77
  %v102 = vpack.c.bf16 %v80, %v79
  %v103 = vpack.c.bf16 %v82, %v81
  %v104 = vpack.c.bf16 %v84, %v83
  %v105 = vpack.c.bf16 %v86, %v85
  %v106 = vpack.c.bf16 %v88, %v87
  %v107 = vpack.c.bf16 %v90, %v89
  %v108 = vpack.c.bf16 %v92, %v91
  %v109 = vpack.c.bf16 %v94, %v93
  %v110 = vpack.c.bf16 %v96, %v95
  %v111 = vpack.c.bf16 %v98, %v97
  %v112 = vpack.c.bf16 %v99, %v99
  %s113 = scalar_lea.vmem %s1, 64
  %v114 = vld [vmem:[%s113] sm:$0xf]
  %v115 = vld [vmem:[%s113 + $0x4] sm:$0xf]
  %v116 = vld [vmem:[%s113 + $0x8] sm:$0xf]
  %v117 = vld [vmem:[%s113 + $0xc] sm:$0xf]
  %v118 = vld [vmem:[%s113 + $0x10] sm:$0xf]
  %v119 = vld [vmem:[%s113 + $0x14] sm:$0xf]
  %v120 = vld [vmem:[%s113 + $0x18] sm:$0xf]
  %v121 = vld [vmem:[%s113 + $0x1c] sm:$0xf]
  %v122 = vld [vmem:[%s113 + $0x20] sm:$0xf]
  %v123 = vld [vmem:[%s113 + $0x24] sm:$0xf]
  %v124 = vld [vmem:[%s113 + $0x28] sm:$0xf]
  %v125 = vld [vmem:[%s113 + $0x2c] sm:$0xf]
  %v126 = vld [vmem:[%s113 + $0x30] sm:$0xf]
  %v127 = vld [vmem:[%s113 + $0x34] sm:$0xf]
  %v128 = vld [vmem:[%s113 + $0x38] sm:$0xf]
  %v129 = vld [vmem:[%s113 + $0x3c] sm:$0xf]
  %v146 = vunpack.c.l.b16 %v114
  %v147 = vunpack.c.l.b16 %v115
  %v148 = vunpack.c.l.b16 %v116
  %v149 = vunpack.c.l.b16 %v117
  %v150 = vunpack.c.l.b16 %v118
  %v151 = vunpack.c.l.b16 %v119
  %v152 = vunpack.c.l.b16 %v120
  %v153 = vunpack.c.l.b16 %v121
  %v154 = vunpack.c.l.b16 %v122
  %v155 = vunpack.c.l.b16 %v123
  %v156 = vunpack.c.l.b16 %v124
  %v157 = vunpack.c.l.b16 %v125
  %v158 = vunpack.c.l.b16 %v126
  %v159 = vunpack.c.l.b16 %v127
  %v160 = vunpack.c.l.b16 %v128
  %v161 = vunpack.c.l.b16 %v129
  %v162 = vpack.c.b16 %v147, %v146
  %v163 = vpack.c.b16 %v149, %v148
  %v164 = vpack.c.b16 %v151, %v150
  %v165 = vpack.c.b16 %v153, %v152
  %v166 = vpack.c.b16 %v155, %v154
  %v167 = vpack.c.b16 %v157, %v156
  %v168 = vpack.c.b16 %v159, %v158
  %v169 = vpack.c.b16 %v161, %v160
  %178 = vmatprep.subr.bf16.mxu0 0
  %179 = vmatpush1.bf16.msra.mxu0 %v169
  %180 = vmatprep.subr.bf16.mxu0 0
  %181 = vmatpush1.bf16.msra.mxu0 %v168
  %182 = vmatprep.subr.bf16.mxu0 0
  %183 = vmatpush1.bf16.msra.mxu0 %v167
  %184 = vmatprep.subr.bf16.mxu0 0
  %185 = vmatpush1.bf16.msra.mxu0 %v166
  %186 = vmatprep.subr.bf16.mxu0 0
  %187 = vmatpush1.bf16.msra.mxu0 %v165
  %188 = vmatprep.subr.bf16.mxu0 0
  %189 = vmatpush1.bf16.msra.mxu0 %v164
  %190 = vmatprep.subr.bf16.mxu0 0
  %191 = vmatpush1.bf16.msra.mxu0 %v163
  %192 = vmatprep.subr.bf16.mxu0 0
  %193 = vmatpush1.bf16.msra.mxu0 %v162
  %194 = vmatprep.subr.bf16.mxu0 0
  %195 = vmatpush2.bf16.msra.mxu0 0
  %196 = vmatprep.subr.bf16.mxu0 0
  %197 = vmatpush2.bf16.msra.mxu0 0
  %198 = vmatprep.subr.bf16.mxu0 0
  %199 = vmatpush2.bf16.msra.mxu0 0
  %200 = vmatprep.subr.bf16.mxu0 0
  %201 = vmatpush2.bf16.msra.mxu0 0
  %202 = vmatprep.subr.bf16.mxu0 0
  %203 = vmatpush2.bf16.msra.mxu0 0
  %204 = vmatprep.subr.bf16.mxu0 0
  %205 = vmatpush2.bf16.msra.mxu0 0
  %206 = vmatprep.subr.bf16.mxu0 0
  %207 = vmatpush2.bf16.msra.mxu0 0
  %208 = vmatprep.subr.bf16.mxu0 0
  %209 = vmatpush2.bf16.msra.mxu0 0
  %210 = vmatprep.mubr.bf16.mxu0 0
  %211 = vmatmul.mubr.bf16.gmra.mxu0 %v100
  %v212 = vpop.f32.mrf.mxu0
  %v213 = vadd.f32 0.0, %v212
  %v214 = vpop.f32.mrf.mxu0
  %v215 = vpop.f32.mrf.mxu0
  %v216 = vadd.f32 0.0, %v215
  %v217 = vpop.f32.mrf.mxu0
  %218 = vmatprep.mubr.bf16.mxu0 0
  %219 = vmatmul.mubr.bf16.gmra.mxu0 %v101
  %v220 = vpop.f32.mrf.mxu0
  %v221 = vadd.f32 0.0, %v220
  %v222 = vpop.f32.mrf.mxu0
  %v223 = vpop.f32.mrf.mxu0
  %v224 = vadd.f32 0.0, %v223
  %v225 = vpop.f32.mrf.mxu0
  %226 = vmatprep.mubr.bf16.mxu0 0
  %227 = vmatmul.mubr.bf16.gmra.mxu0 %v102
  %v228 = vpop.f32.mrf.mxu0
  %v229 = vadd.f32 0.0, %v228
  %v230 = vpop.f32.mrf.mxu0
  %v231 = vpop.f32.mrf.mxu0
  %v232 = vadd.f32 0.0, %v231
  %v233 = vpop.f32.mrf.mxu0
  %234 = vmatprep.mubr.bf16.mxu0 0
  %235 = vmatmul.mubr.bf16.gmra.mxu0 %v103
  %v236 = vpop.f32.mrf.mxu0
  %v237 = vadd.f32 0.0, %v236
  %v238 = vpop.f32.mrf.mxu0
  %v239 = vpop.f32.mrf.mxu0
  %v240 = vadd.f32 0.0, %v239
  %v241 = vpop.f32.mrf.mxu0
  %242 = vmatprep.mubr.bf16.mxu0 0
  %243 = vmatmul.mubr.bf16.gmra.mxu0 %v104
  %v244 = vpop.f32.mrf.mxu0
  %v245 = vadd.f32 0.0, %v244
  %v246 = vpop.f32.mrf.mxu0
  %v247 = vpop.f32.mrf.mxu0
  %v248 = vadd.f32 0.0, %v247
  %v249 = vpop.f32.mrf.mxu0
  %250 = vmatprep.mubr.bf16.mxu0 0
  %251 = vmatmul.mubr.bf16.gmra.mxu0 %v105
  %v252 = vpop.f32.mrf.mxu0
  %v253 = vadd.f32 0.0, %v252
  %v254 = vpop.f32.mrf.mxu0
  %v255 = vpop.f32.mrf.mxu0
  %v256 = vadd.f32 0.0, %v255
  %v257 = vpop.f32.mrf.mxu0
  %258 = vmatprep.mubr.bf16.mxu0 0
  %259 = vmatmul.mubr.bf16.gmra.mxu0 %v106
  %v260 = vpop.f32.mrf.mxu0
  %v261 = vadd.f32 0.0, %v260
  %v262 = vpop.f32.mrf.mxu0
  %v263 = vpop.f32.mrf.mxu0
  %v264 = vadd.f32 0.0, %v263
  %v265 = vpop.f32.mrf.mxu0
  %266 = vmatprep.mubr.bf16.mxu0 0
  %267 = vmatmul.mubr.bf16.gmra.mxu0 %v107
  %v268 = vpop.f32.mrf.mxu0
  %v269 = vadd.f32 0.0, %v268
  %v270 = vpop.f32.mrf.mxu0
  %v271 = vpop.f32.mrf.mxu0
  %v272 = vadd.f32 0.0, %v271
  %v273 = vpop.f32.mrf.mxu0
  %274 = vmatprep.mubr.bf16.mxu0 0
  %275 = vmatmul.mubr.bf16.gmra.mxu0 %v108
  %v276 = vpop.f32.mrf.mxu0
  %v277 = vadd.f32 0.0, %v276
  %v278 = vpop.f32.mrf.mxu0
  %v279 = vpop.f32.mrf.mxu0
  %v280 = vadd.f32 0.0, %v279
  %v281 = vpop.f32.mrf.mxu0
  %282 = vmatprep.mubr.bf16.mxu0 0
  %283 = vmatmul.mubr.bf16.gmra.mxu0 %v109
  %v284 = vpop.f32.mrf.mxu0
  %v285 = vadd.f32 0.0, %v284
  %v286 = vpop.f32.mrf.mxu0
  %v287 = vpop.f32.mrf.mxu0
  %v288 = vadd.f32 0.0, %v287
  %v289 = vpop.f32.mrf.mxu0
  %290 = vmatprep.mubr.bf16.mxu0 0
  %291 = vmatmul.mubr.bf16.gmra.mxu0 %v110
  %v292 = vpop.f32.mrf.mxu0
  %v293 = vadd.f32 0.0, %v292
  %v294 = vpop.f32.mrf.mxu0
  %v295 = vpop.f32.mrf.mxu0
  %v296 = vadd.f32 0.0, %v295
  %v297 = vpop.f32.mrf.mxu0
  %298 = vmatprep.mubr.bf16.mxu0 0
  %299 = vmatmul.mubr.bf16.gmra.mxu0 %v111
  %v300 = vpop.f32.mrf.mxu0
  %v301 = vadd.f32 0.0, %v300
  %v302 = vpop.f32.mrf.mxu0
  %v303 = vpop.f32.mrf.mxu0
  %v304 = vadd.f32 0.0, %v303
  %v305 = vpop.f32.mrf.mxu0
  %306 = vmatprep.mubr.bf16.mxu0 0
  %307 = vmatmul.mubr.bf16.gmra.mxu0 %v112
  %v308 = vpop.f32.mrf.mxu0
  %v309 = vadd.f32 0.0, %v308
  %v310 = vpop.f32.mrf.mxu0
  %v311 = vpop.f32.mrf.mxu0
  %v312 = vpop.f32.mrf.mxu0
  %313 = vdwg.mxu0
  %v330 = vunpack.c.l.b16 %v59
  %v331 = vunpack.c.l.b16 %v60
  %v332 = vunpack.c.l.b16 %v61
  %v333 = vunpack.c.l.b16 %v62
  %v334 = vunpack.c.l.b16 %v63
  %v335 = vunpack.c.l.b16 %v64
  %v336 = vunpack.c.l.b16 %v65
  %v337 = vunpack.c.l.b16 %v66
  %v338 = vunpack.c.l.b16 %v67
  %v339 = vunpack.c.l.b16 %v68
  %v340 = vunpack.c.l.b16 %v69
  %v341 = vunpack.c.l.b16 %v70
  %v342 = vunpack.c.l.b16 %v71
  %v343 = vunpack.c.l.b16 %v72
  %v344 = vunpack.c.l.b16 %v73
  %v345 = vunpack.c.l.b16 %v74
  %v346 = vpack.c.b16 %v331, %v330
  %v347 = vpack.c.b16 %v333, %v332
  %v348 = vpack.c.b16 %v335, %v334
  %v349 = vpack.c.b16 %v337, %v336
  %v350 = vpack.c.b16 %v339, %v338
  %v351 = vpack.c.b16 %v341, %v340
  %v352 = vpack.c.b16 %v343, %v342
  %v353 = vpack.c.b16 %v345, %v344
  %362 = vmatprep.subr.bf16.mxu0 0
  %363 = vmatpush1.bf16.msra.mxu0 %v353
  %364 = vmatprep.subr.bf16.mxu0 0
  %365 = vmatpush1.bf16.msra.mxu0 %v352
  %366 = vmatprep.subr.bf16.mxu0 0
  %367 = vmatpush1.bf16.msra.mxu0 %v351
  %368 = vmatprep.subr.bf16.mxu0 0
  %369 = vmatpush1.bf16.msra.mxu0 %v350
  %370 = vmatprep.subr.bf16.mxu0 0
  %371 = vmatpush1.bf16.msra.mxu0 %v349
  %372 = vmatprep.subr.bf16.mxu0 0
  %373 = vmatpush1.bf16.msra.mxu0 %v348
  %374 = vmatprep.subr.bf16.mxu0 0
  %375 = vmatpush1.bf16.msra.mxu0 %v347
  %376 = vmatprep.subr.bf16.mxu0 0
  %377 = vmatpush1.bf16.msra.mxu0 %v346
  %378 = vmatprep.subr.bf16.mxu0 0
  %379 = vmatpush2.bf16.msra.mxu0 0
  %380 = vmatprep.subr.bf16.mxu0 0
  %381 = vmatpush2.bf16.msra.mxu0 0
  %382 = vmatprep.subr.bf16.mxu0 0
  %383 = vmatpush2.bf16.msra.mxu0 0
  %384 = vmatprep.subr.bf16.mxu0 0
  %385 = vmatpush2.bf16.msra.mxu0 0
  %386 = vmatprep.subr.bf16.mxu0 0
  %387 = vmatpush2.bf16.msra.mxu0 0
  %388 = vmatprep.subr.bf16.mxu0 0
  %389 = vmatpush2.bf16.msra.mxu0 0
  %390 = vmatprep.subr.bf16.mxu0 0
  %391 = vmatpush2.bf16.msra.mxu0 0
  %392 = vmatprep.subr.bf16.mxu0 0
  %393 = vmatpush2.bf16.msra.mxu0 0
  %394 = vmatprep.mubr.bf16.mxu0 0
  %395 = vmatmul.mubr.bf16.gmra.mxu0 %v46
  %v396 = vpop.f32.mrf.mxu0
  %v397 = vadd.f32 %v213, %v396
  %v398 = vpop.f32.mrf.mxu0
  %v399 = vpop.f32.mrf.mxu0
  %v400 = vadd.f32 %v216, %v399
  %v401 = vpop.f32.mrf.mxu0
  %402 = vmatprep.mubr.bf16.mxu0 0
  %403 = vmatmul.mubr.bf16.gmra.mxu0 %v47
  %v404 = vpop.f32.mrf.mxu0
  %v405 = vadd.f32 %v221, %v404
  %v406 = vpop.f32.mrf.mxu0
  %v407 = vpop.f32.mrf.mxu0
  %v408 = vadd.f32 %v224, %v407
  %v409 = vpop.f32.mrf.mxu0
  %410 = vmatprep.mubr.bf16.mxu0 0
  %411 = vmatmul.mubr.bf16.gmra.mxu0 %v48
  %v412 = vpop.f32.mrf.mxu0
  %v413 = vadd.f32 %v229, %v412
  %v414 = vpop.f32.mrf.mxu0
  %v415 = vpop.f32.mrf.mxu0
  %v416 = vadd.f32 %v232, %v415
  %v417 = vpop.f32.mrf.mxu0
  %418 = vmatprep.mubr.bf16.mxu0 0
  %419 = vmatmul.mubr.bf16.gmra.mxu0 %v49
  %v420 = vpop.f32.mrf.mxu0
  %v421 = vadd.f32 %v237, %v420
  %v422 = vpop.f32.mrf.mxu0
  %v423 = vpop.f32.mrf.mxu0
  %v424 = vadd.f32 %v240, %v423
  %v425 = vpop.f32.mrf.mxu0
  %426 = vmatprep.mubr.bf16.mxu0 0
  %427 = vmatmul.mubr.bf16.gmra.mxu0 %v50
  %v428 = vpop.f32.mrf.mxu0
  %v429 = vadd.f32 %v245, %v428
  %v430 = vpop.f32.mrf.mxu0
  %v431 = vpop.f32.mrf.mxu0
  %v432 = vadd.f32 %v248, %v431
  %v433 = vpop.f32.mrf.mxu0
  %434 = vmatprep.mubr.bf16.mxu0 0
  %435 = vmatmul.mubr.bf16.gmra.mxu0 %v51
  %v436 = vpop.f32.mrf.mxu0
  %v437 = vadd.f32 %v253, %v436
  %v438 = vpop.f32.mrf.mxu0
  %v439 = vpop.f32.mrf.mxu0
  %v440 = vadd.f32 %v256, %v439
  %v441 = vpop.f32.mrf.mxu0
  %442 = vmatprep.mubr.bf16.mxu0 0
  %443 = vmatmul.mubr.bf16.gmra.mxu0 %v52
  %v444 = vpop.f32.mrf.mxu0
  %v445 = vadd.f32 %v261, %v444
  %v446 = vpop.f32.mrf.mxu0
  %v447 = vpop.f32.mrf.mxu0
  %v448 = vadd.f32 %v264, %v447
  %v449 = vpop.f32.mrf.mxu0
  %450 = vmatprep.mubr.bf16.mxu0 0
  %451 = vmatmul.mubr.bf16.gmra.mxu0 %v53
  %v452 = vpop.f32.mrf.mxu0
  %v453 = vadd.f32 %v269, %v452
  %v454 = vpop.f32.mrf.mxu0
  %v455 = vpop.f32.mrf.mxu0
  %v456 = vadd.f32 %v272, %v455
  %v457 = vpop.f32.mrf.mxu0
  %458 = vmatprep.mubr.bf16.mxu0 0
  %459 = vmatmul.mubr.bf16.gmra.mxu0 %v54
  %v460 = vpop.f32.mrf.mxu0
  %v461 = vadd.f32 %v277, %v460
  %v462 = vpop.f32.mrf.mxu0
  %v463 = vpop.f32.mrf.mxu0
  %v464 = vadd.f32 %v280, %v463
  %v465 = vpop.f32.mrf.mxu0
  %466 = vmatprep.mubr.bf16.mxu0 0
  %467 = vmatmul.mubr.bf16.gmra.mxu0 %v55
  %v468 = vpop.f32.mrf.mxu0
  %v469 = vadd.f32 %v285, %v468
  %v470 = vpop.f32.mrf.mxu0
  %v471 = vpop.f32.mrf.mxu0
  %v472 = vadd.f32 %v288, %v471
  %v473 = vpop.f32.mrf.mxu0
  %474 = vmatprep.mubr.bf16.mxu0 0
  %475 = vmatmul.mubr.bf16.gmra.mxu0 %v56
  %v476 = vpop.f32.mrf.mxu0
  %v477 = vadd.f32 %v293, %v476
  %v478 = vpop.f32.mrf.mxu0
  %v479 = vpop.f32.mrf.mxu0
  %v480 = vadd.f32 %v296, %v479
  %v481 = vpop.f32.mrf.mxu0
  %482 = vmatprep.mubr.bf16.mxu0 0
  %483 = vmatmul.mubr.bf16.gmra.mxu0 %v57
  %v484 = vpop.f32.mrf.mxu0
  %v485 = vadd.f32 %v301, %v484
  %v486 = vpop.f32.mrf.mxu0
  %v487 = vpop.f32.mrf.mxu0
  %v488 = vadd.f32 %v304, %v487
  %v489 = vpop.f32.mrf.mxu0
  %490 = vmatprep.mubr.bf16.mxu0 0
  %491 = vmatmul.mubr.bf16.gmra.mxu0 %v58
  %v492 = vpop.f32.mrf.mxu0
  %v493 = vadd.f32 %v309, %v492
  %v494 = vpop.f32.mrf.mxu0
  %v495 = vpop.f32.mrf.mxu0
  %v496 = vpop.f32.mrf.mxu0
  %497 = vdwg.mxu0
  %v498 = vld [vmem:[%s0 + $0x2] sm:$0xff]
  %v499 = vld [vmem:[%s0 + $0xa] sm:$0xff]
  %v500 = vld [vmem:[%s0 + $0x12] sm:$0xff]
  %v501 = vld [vmem:[%s0 + $0x1a] sm:$0xff]
  %v502 = vld [vmem:[%s0 + $0x22] sm:$0xff]
  %v503 = vld [vmem:[%s0 + $0x2a] sm:$0xff]
  %v504 = vld [vmem:[%s0 + $0x32] sm:$0xff]
  %v505 = vld [vmem:[%s0 + $0x3a] sm:$0xff]
  %v506 = vld [vmem:[%s0 + $0x42] sm:$0xff]
  %v507 = vld [vmem:[%s0 + $0x4a] sm:$0xff]
  %v508 = vld [vmem:[%s0 + $0x52] sm:$0xff]
  %v509 = vld [vmem:[%s0 + $0x5a] sm:$0xff]
  %v510 = vld [vmem:[%s0 + $0x62] sm:$0xff]
  %v511 = vld [vmem:[%s0 + $0x6a] sm:$0xff]
  %v512 = vld [vmem:[%s0 + $0x72] sm:$0xff]
  %v513 = vld [vmem:[%s0 + $0x7a] sm:$0xff]
  %v514 = vld [vmem:[%s0 + $0x82] sm:$0xff]
  %v515 = vld [vmem:[%s0 + $0x8a] sm:$0xff]
  %v516 = vld [vmem:[%s0 + $0x92] sm:$0xff]
  %v517 = vld [vmem:[%s0 + $0x9a] sm:$0xff]
  %v518 = vld [vmem:[%s0 + $0xa2] sm:$0xff]
  %v519 = vld [vmem:[%s0 + $0xaa] sm:$0xff]
  %v520 = vld [vmem:[%s0 + $0xb2] sm:$0xff]
  %v521 = vld [vmem:[%s0 + $0xba] sm:$0xff]
  %v522 = vld [vmem:[%s0 + $0xc2] sm:$0xff]
  %v523 = vpack.c.bf16 %v499, %v498
  %v524 = vpack.c.bf16 %v501, %v500
  %v525 = vpack.c.bf16 %v503, %v502
  %v526 = vpack.c.bf16 %v505, %v504
  %v527 = vpack.c.bf16 %v507, %v506
  %v528 = vpack.c.bf16 %v509, %v508
  %v529 = vpack.c.bf16 %v511, %v510
  %v530 = vpack.c.bf16 %v513, %v512
  %v531 = vpack.c.bf16 %v515, %v514
  %v532 = vpack.c.bf16 %v517, %v516
  %v533 = vpack.c.bf16 %v519, %v518
  %v534 = vpack.c.bf16 %v521, %v520
  %v535 = vpack.c.bf16 %v522, %v522
  %s536 = scalar_lea.vmem %s1, 128
  %v537 = vld [vmem:[%s536] sm:$0xf]
  %v538 = vld [vmem:[%s536 + $0x4] sm:$0xf]
  %v539 = vld [vmem:[%s536 + $0x8] sm:$0xf]
  %v540 = vld [vmem:[%s536 + $0xc] sm:$0xf]
  %v541 = vld [vmem:[%s536 + $0x10] sm:$0xf]
  %v542 = vld [vmem:[%s536 + $0x14] sm:$0xf]
  %v543 = vld [vmem:[%s536 + $0x18] sm:$0xf]
  %v544 = vld [vmem:[%s536 + $0x1c] sm:$0xf]
  %v545 = vld [vmem:[%s536 + $0x20] sm:$0xf]
  %v546 = vld [vmem:[%s536 + $0x24] sm:$0xf]
  %v547 = vld [vmem:[%s536 + $0x28] sm:$0xf]
  %v548 = vld [vmem:[%s536 + $0x2c] sm:$0xf]
  %v549 = vld [vmem:[%s536 + $0x30] sm:$0xf]
  %v550 = vld [vmem:[%s536 + $0x34] sm:$0xf]
  %v551 = vld [vmem:[%s536 + $0x38] sm:$0xf]
  %v552 = vld [vmem:[%s536 + $0x3c] sm:$0xf]
  %v569 = vunpack.c.l.b16 %v537
  %v570 = vunpack.c.l.b16 %v538
  %v571 = vunpack.c.l.b16 %v539
  %v572 = vunpack.c.l.b16 %v540
  %v573 = vunpack.c.l.b16 %v541
  %v574 = vunpack.c.l.b16 %v542
  %v575 = vunpack.c.l.b16 %v543
  %v576 = vunpack.c.l.b16 %v544
  %v577 = vunpack.c.l.b16 %v545
  %v578 = vunpack.c.l.b16 %v546
  %v579 = vunpack.c.l.b16 %v547
  %v580 = vunpack.c.l.b16 %v548
  %v581 = vunpack.c.l.b16 %v549
  %v582 = vunpack.c.l.b16 %v550
  %v583 = vunpack.c.l.b16 %v551
  %v584 = vunpack.c.l.b16 %v552
  %v585 = vpack.c.b16 %v570, %v569
  %v586 = vpack.c.b16 %v572, %v571
  %v587 = vpack.c.b16 %v574, %v573
  %v588 = vpack.c.b16 %v576, %v575
  %v589 = vpack.c.b16 %v578, %v577
  %v590 = vpack.c.b16 %v580, %v579
  %v591 = vpack.c.b16 %v582, %v581
  %v592 = vpack.c.b16 %v584, %v583
  %601 = vmatprep.subr.bf16.mxu0 0
  %602 = vmatpush1.bf16.msra.mxu0 %v592
  %603 = vmatprep.subr.bf16.mxu0 0
  %604 = vmatpush1.bf16.msra.mxu0 %v591
  %605 = vmatprep.subr.bf16.mxu0 0
  %606 = vmatpush1.bf16.msra.mxu0 %v590
  %607 = vmatprep.subr.bf16.mxu0 0
  %608 = vmatpush1.bf16.msra.mxu0 %v589
  %609 = vmatprep.subr.bf16.mxu0 0
  %610 = vmatpush1.bf16.msra.mxu0 %v588
  %611 = vmatprep.subr.bf16.mxu0 0
  %612 = vmatpush1.bf16.msra.mxu0 %v587
  %613 = vmatprep.subr.bf16.mxu0 0
  %614 = vmatpush1.bf16.msra.mxu0 %v586
  %615 = vmatprep.subr.bf16.mxu0 0
  %616 = vmatpush1.bf16.msra.mxu0 %v585
  %617 = vmatprep.subr.bf16.mxu0 0
  %618 = vmatpush2.bf16.msra.mxu0 0
  %619 = vmatprep.subr.bf16.mxu0 0
  %620 = vmatpush2.bf16.msra.mxu0 0
  %621 = vmatprep.subr.bf16.mxu0 0
  %622 = vmatpush2.bf16.msra.mxu0 0
  %623 = vmatprep.subr.bf16.mxu0 0
  %624 = vmatpush2.bf16.msra.mxu0 0
  %625 = vmatprep.subr.bf16.mxu0 0
  %626 = vmatpush2.bf16.msra.mxu0 0
  %627 = vmatprep.subr.bf16.mxu0 0
  %628 = vmatpush2.bf16.msra.mxu0 0
  %629 = vmatprep.subr.bf16.mxu0 0
  %630 = vmatpush2.bf16.msra.mxu0 0
  %631 = vmatprep.subr.bf16.mxu0 0
  %632 = vmatpush2.bf16.msra.mxu0 0
  %633 = vmatprep.mubr.bf16.mxu0 0
  %634 = vmatmul.mubr.bf16.gmra.mxu0 %v523
  %v635 = vpop.f32.mrf.mxu0
  %v636 = vadd.f32 0.0, %v635
  %v637 = vpop.f32.mrf.mxu0
  %v638 = vpop.f32.mrf.mxu0
  %v639 = vadd.f32 0.0, %v638
  %v640 = vpop.f32.mrf.mxu0
  %641 = vmatprep.mubr.bf16.mxu0 0
  %642 = vmatmul.mubr.bf16.gmra.mxu0 %v524
  %v643 = vpop.f32.mrf.mxu0
  %v644 = vadd.f32 0.0, %v643
  %v645 = vpop.f32.mrf.mxu0
  %v646 = vpop.f32.mrf.mxu0
  %v647 = vadd.f32 0.0, %v646
  %v648 = vpop.f32.mrf.mxu0
  %649 = vmatprep.mubr.bf16.mxu0 0
  %650 = vmatmul.mubr.bf16.gmra.mxu0 %v525
  %v651 = vpop.f32.mrf.mxu0
  %v652 = vadd.f32 0.0, %v651
  %v653 = vpop.f32.mrf.mxu0
  %v654 = vpop.f32.mrf.mxu0
  %v655 = vadd.f32 0.0, %v654
  %v656 = vpop.f32.mrf.mxu0
  %657 = vmatprep.mubr.bf16.mxu0 0
  %658 = vmatmul.mubr.bf16.gmra.mxu0 %v526
  %v659 = vpop.f32.mrf.mxu0
  %v660 = vadd.f32 0.0, %v659
  %v661 = vpop.f32.mrf.mxu0
  %v662 = vpop.f32.mrf.mxu0
  %v663 = vadd.f32 0.0, %v662
  %v664 = vpop.f32.mrf.mxu0
  %665 = vmatprep.mubr.bf16.mxu0 0
  %666 = vmatmul.mubr.bf16.gmra.mxu0 %v527
  %v667 = vpop.f32.mrf.mxu0
  %v668 = vadd.f32 0.0, %v667
  %v669 = vpop.f32.mrf.mxu0
  %v670 = vpop.f32.mrf.mxu0
  %v671 = vadd.f32 0.0, %v670
  %v672 = vpop.f32.mrf.mxu0
  %673 = vmatprep.mubr.bf16.mxu0 0
  %674 = vmatmul.mubr.bf16.gmra.mxu0 %v528
  %v675 = vpop.f32.mrf.mxu0
  %v676 = vadd.f32 0.0, %v675
  %v677 = vpop.f32.mrf.mxu0
  %v678 = vpop.f32.mrf.mxu0
  %v679 = vadd.f32 0.0, %v678
  %v680 = vpop.f32.mrf.mxu0
  %681 = vmatprep.mubr.bf16.mxu0 0
  %682 = vmatmul.mubr.bf16.gmra.mxu0 %v529
  %v683 = vpop.f32.mrf.mxu0
  %v684 = vadd.f32 0.0, %v683
  %v685 = vpop.f32.mrf.mxu0
  %v686 = vpop.f32.mrf.mxu0
  %v687 = vadd.f32 0.0, %v686
  %v688 = vpop.f32.mrf.mxu0
  %689 = vmatprep.mubr.bf16.mxu0 0
  %690 = vmatmul.mubr.bf16.gmra.mxu0 %v530
  %v691 = vpop.f32.mrf.mxu0
  %v692 = vadd.f32 0.0, %v691
  %v693 = vpop.f32.mrf.mxu0
  %v694 = vpop.f32.mrf.mxu0
  %v695 = vadd.f32 0.0, %v694
  %v696 = vpop.f32.mrf.mxu0
  %697 = vmatprep.mubr.bf16.mxu0 0
  %698 = vmatmul.mubr.bf16.gmra.mxu0 %v531
  %v699 = vpop.f32.mrf.mxu0
  %v700 = vadd.f32 0.0, %v699
  %v701 = vpop.f32.mrf.mxu0
  %v702 = vpop.f32.mrf.mxu0
  %v703 = vadd.f32 0.0, %v702
  %v704 = vpop.f32.mrf.mxu0
  %705 = vmatprep.mubr.bf16.mxu0 0
  %706 = vmatmul.mubr.bf16.gmra.mxu0 %v532
  %v707 = vpop.f32.mrf.mxu0
  %v708 = vadd.f32 0.0, %v707
  %v709 = vpop.f32.mrf.mxu0
  %v710 = vpop.f32.mrf.mxu0
  %v711 = vadd.f32 0.0, %v710
  %v712 = vpop.f32.mrf.mxu0
  %713 = vmatprep.mubr.bf16.mxu0 0
  %714 = vmatmul.mubr.bf16.gmra.mxu0 %v533
  %v715 = vpop.f32.mrf.mxu0
  %v716 = vadd.f32 0.0, %v715
  %v717 = vpop.f32.mrf.mxu0
  %v718 = vpop.f32.mrf.mxu0
  %v719 = vadd.f32 0.0, %v718
  %v720 = vpop.f32.mrf.mxu0
  %721 = vmatprep.mubr.bf16.mxu0 0
  %722 = vmatmul.mubr.bf16.gmra.mxu0 %v534
  %v723 = vpop.f32.mrf.mxu0
  %v724 = vadd.f32 0.0, %v723
  %v725 = vpop.f32.mrf.mxu0
  %v726 = vpop.f32.mrf.mxu0
  %v727 = vadd.f32 0.0, %v726
  %v728 = vpop.f32.mrf.mxu0
  %729 = vmatprep.mubr.bf16.mxu0 0
  %730 = vmatmul.mubr.bf16.gmra.mxu0 %v535
  %v731 = vpop.f32.mrf.mxu0
  %v732 = vadd.f32 0.0, %v731
  %v733 = vpop.f32.mrf.mxu0
  %v734 = vpop.f32.mrf.mxu0
  %v735 = vpop.f32.mrf.mxu0
  %736 = vdwg.mxu0
  %v737 = vadd.f32 %v397, %v636
  %v738 = vadd.f32 %v400, %v639
  %v739 = vadd.f32 %v405, %v644
  %v740 = vadd.f32 %v408, %v647
  %v741 = vadd.f32 %v413, %v652
  %v742 = vadd.f32 %v416, %v655
  %v743 = vadd.f32 %v421, %v660
  %v744 = vadd.f32 %v424, %v663
  %v745 = vadd.f32 %v429, %v668
  %v746 = vadd.f32 %v432, %v671
  %v747 = vadd.f32 %v437, %v676
  %v748 = vadd.f32 %v440, %v679
  %v749 = vadd.f32 %v445, %v684
  %v750 = vadd.f32 %v448, %v687
  %v751 = vadd.f32 %v453, %v692
  %v752 = vadd.f32 %v456, %v695
  %v753 = vadd.f32 %v461, %v700
  %v754 = vadd.f32 %v464, %v703
  %v755 = vadd.f32 %v469, %v708
  %v756 = vadd.f32 %v472, %v711
  %v757 = vadd.f32 %v477, %v716
  %v758 = vadd.f32 %v480, %v719
  %v759 = vadd.f32 %v485, %v724
  %v760 = vadd.f32 %v488, %v727
  %v761 = vadd.f32 %v493, %v732
  %v762 = vld [vmem:[%s0 + $0xa] sm:$0xff]
  %v763 = vld [vmem:[%s0 + $0x12] sm:$0xff]
  %v764 = vld [vmem:[%s0 + $0x1a] sm:$0xff]
  %v765 = vld [vmem:[%s0 + $0x22] sm:$0xff]
  %v766 = vld [vmem:[%s0 + $0x2a] sm:$0xff]
  %v767 = vld [vmem:[%s0 + $0x32] sm:$0xff]
  %v768 = vld [vmem:[%s0 + $0x3a] sm:$0xff]
  %v769 = vld [vmem:[%s0 + $0x42] sm:$0xff]
  %v770 = vld [vmem:[%s0 + $0x4a] sm:$0xff]
  %v771 = vld [vmem:[%s0 + $0x52] sm:$0xff]
  %v772 = vld [vmem:[%s0 + $0x5a] sm:$0xff]
  %v773 = vld [vmem:[%s0 + $0x62] sm:$0xff]
  %v774 = vld [vmem:[%s0 + $0x6a] sm:$0xff]
  %v775 = vld [vmem:[%s0 + $0x72] sm:$0xff]
  %v776 = vld [vmem:[%s0 + $0x7a] sm:$0xff]
  %v777 = vld [vmem:[%s0 + $0x82] sm:$0xff]
  %v778 = vld [vmem:[%s0 + $0x8a] sm:$0xff]
  %v779 = vld [vmem:[%s0 + $0x92] sm:$0xff]
  %v780 = vld [vmem:[%s0 + $0x9a] sm:$0xff]
  %v781 = vld [vmem:[%s0 + $0xa2] sm:$0xff]
  %v782 = vld [vmem:[%s0 + $0xaa] sm:$0xff]
  %v783 = vld [vmem:[%s0 + $0xb2] sm:$0xff]
  %v784 = vld [vmem:[%s0 + $0xba] sm:$0xff]
  %v785 = vld [vmem:[%s0 + $0xc2] sm:$0xff]
  %v786 = vld [vmem:[%s0 + $0xca] sm:$0xff]
  %v787 = vpack.c.bf16 %v763, %v762
  %v788 = vpack.c.bf16 %v765, %v764
  %v789 = vpack.c.bf16 %v767, %v766
  %v790 = vpack.c.bf16 %v769, %v768
  %v791 = vpack.c.bf16 %v771, %v770
  %v792 = vpack.c.bf16 %v773, %v772
  %v793 = vpack.c.bf16 %v775, %v774
  %v794 = vpack.c.bf16 %v777, %v776
  %v795 = vpack.c.bf16 %v779, %v778
  %v796 = vpack.c.bf16 %v781, %v780
  %v797 = vpack.c.bf16 %v783, %v782
  %v798 = vpack.c.bf16 %v785, %v784
  %v799 = vpack.c.bf16 %v786, %v786
  %s800 = scalar_lea.vmem %s1, 192
  %v801 = vld [vmem:[%s800] sm:$0xf]
  %v802 = vld [vmem:[%s800 + $0x4] sm:$0xf]
  %v803 = vld [vmem:[%s800 + $0x8] sm:$0xf]
  %v804 = vld [vmem:[%s800 + $0xc] sm:$0xf]
  %v805 = vld [vmem:[%s800 + $0x10] sm:$0xf]
  %v806 = vld [vmem:[%s800 + $0x14] sm:$0xf]
  %v807 = vld [vmem:[%s800 + $0x18] sm:$0xf]
  %v808 = vld [vmem:[%s800 + $0x1c] sm:$0xf]
  %v809 = vld [vmem:[%s800 + $0x20] sm:$0xf]
  %v810 = vld [vmem:[%s800 + $0x24] sm:$0xf]
  %v811 = vld [vmem:[%s800 + $0x28] sm:$0xf]
  %v812 = vld [vmem:[%s800 + $0x2c] sm:$0xf]
  %v813 = vld [vmem:[%s800 + $0x30] sm:$0xf]
  %v814 = vld [vmem:[%s800 + $0x34] sm:$0xf]
  %v815 = vld [vmem:[%s800 + $0x38] sm:$0xf]
  %v816 = vld [vmem:[%s800 + $0x3c] sm:$0xf]
  %v833 = vunpack.c.l.b16 %v801
  %v834 = vunpack.c.l.b16 %v802
  %v835 = vunpack.c.l.b16 %v803
  %v836 = vunpack.c.l.b16 %v804
  %v837 = vunpack.c.l.b16 %v805
  %v838 = vunpack.c.l.b16 %v806
  %v839 = vunpack.c.l.b16 %v807
  %v840 = vunpack.c.l.b16 %v808
  %v841 = vunpack.c.l.b16 %v809
  %v842 = vunpack.c.l.b16 %v810
  %v843 = vunpack.c.l.b16 %v811
  %v844 = vunpack.c.l.b16 %v812
  %v845 = vunpack.c.l.b16 %v813
  %v846 = vunpack.c.l.b16 %v814
  %v847 = vunpack.c.l.b16 %v815
  %v848 = vunpack.c.l.b16 %v816
  %v849 = vpack.c.b16 %v834, %v833
  %v850 = vpack.c.b16 %v836, %v835
  %v851 = vpack.c.b16 %v838, %v837
  %v852 = vpack.c.b16 %v840, %v839
  %v853 = vpack.c.b16 %v842, %v841
  %v854 = vpack.c.b16 %v844, %v843
  %v855 = vpack.c.b16 %v846, %v845
  %v856 = vpack.c.b16 %v848, %v847
  %865 = vmatprep.subr.bf16.mxu0 0
  %866 = vmatpush1.bf16.msra.mxu0 %v856
  %867 = vmatprep.subr.bf16.mxu0 0
  %868 = vmatpush1.bf16.msra.mxu0 %v855
  %869 = vmatprep.subr.bf16.mxu0 0
  %870 = vmatpush1.bf16.msra.mxu0 %v854
  %871 = vmatprep.subr.bf16.mxu0 0
  %872 = vmatpush1.bf16.msra.mxu0 %v853
  %873 = vmatprep.subr.bf16.mxu0 0
  %874 = vmatpush1.bf16.msra.mxu0 %v852
  %875 = vmatprep.subr.bf16.mxu0 0
  %876 = vmatpush1.bf16.msra.mxu0 %v851
  %877 = vmatprep.subr.bf16.mxu0 0
  %878 = vmatpush1.bf16.msra.mxu0 %v850
  %879 = vmatprep.subr.bf16.mxu0 0
  %880 = vmatpush1.bf16.msra.mxu0 %v849
  %881 = vmatprep.subr.bf16.mxu0 0
  %882 = vmatpush2.bf16.msra.mxu0 0
  %883 = vmatprep.subr.bf16.mxu0 0
  %884 = vmatpush2.bf16.msra.mxu0 0
  %885 = vmatprep.subr.bf16.mxu0 0
  %886 = vmatpush2.bf16.msra.mxu0 0
  %887 = vmatprep.subr.bf16.mxu0 0
  %888 = vmatpush2.bf16.msra.mxu0 0
  %889 = vmatprep.subr.bf16.mxu0 0
  %890 = vmatpush2.bf16.msra.mxu0 0
  %891 = vmatprep.subr.bf16.mxu0 0
  %892 = vmatpush2.bf16.msra.mxu0 0
  %893 = vmatprep.subr.bf16.mxu0 0
  %894 = vmatpush2.bf16.msra.mxu0 0
  %895 = vmatprep.subr.bf16.mxu0 0
  %896 = vmatpush2.bf16.msra.mxu0 0
  %897 = vmatprep.mubr.bf16.mxu0 0
  %898 = vmatmul.mubr.bf16.gmra.mxu0 %v787
  %v899 = vpop.f32.mrf.mxu0
  %v900 = vadd.f32 0.0, %v899
  %v901 = vpop.f32.mrf.mxu0
  %v902 = vpop.f32.mrf.mxu0
  %v903 = vadd.f32 0.0, %v902
  %v904 = vpop.f32.mrf.mxu0
  %905 = vmatprep.mubr.bf16.mxu0 0
  %906 = vmatmul.mubr.bf16.gmra.mxu0 %v788
  %v907 = vpop.f32.mrf.mxu0
  %v908 = vadd.f32 0.0, %v907
  %v909 = vpop.f32.mrf.mxu0
  %v910 = vpop.f32.mrf.mxu0
  %v911 = vadd.f32 0.0, %v910
  %v912 = vpop.f32.mrf.mxu0
  %913 = vmatprep.mubr.bf16.mxu0 0
  %914 = vmatmul.mubr.bf16.gmra.mxu0 %v789
  %v915 = vpop.f32.mrf.mxu0
  %v916 = vadd.f32 0.0, %v915
  %v917 = vpop.f32.mrf.mxu0
  %v918 = vpop.f32.mrf.mxu0
  %v919 = vadd.f32 0.0, %v918
  %v920 = vpop.f32.mrf.mxu0
  %921 = vmatprep.mubr.bf16.mxu0 0
  %922 = vmatmul.mubr.bf16.gmra.mxu0 %v790
  %v923 = vpop.f32.mrf.mxu0
  %v924 = vadd.f32 0.0, %v923
  %v925 = vpop.f32.mrf.mxu0
  %v926 = vpop.f32.mrf.mxu0
  %v927 = vadd.f32 0.0, %v926
  %v928 = vpop.f32.mrf.mxu0
  %929 = vmatprep.mubr.bf16.mxu0 0
  %930 = vmatmul.mubr.bf16.gmra.mxu0 %v791
  %v931 = vpop.f32.mrf.mxu0
  %v932 = vadd.f32 0.0, %v931
  %v933 = vpop.f32.mrf.mxu0
  %v934 = vpop.f32.mrf.mxu0
  %v935 = vadd.f32 0.0, %v934
  %v936 = vpop.f32.mrf.mxu0
  %937 = vmatprep.mubr.bf16.mxu0 0
  %938 = vmatmul.mubr.bf16.gmra.mxu0 %v792
  %v939 = vpop.f32.mrf.mxu0
  %v940 = vadd.f32 0.0, %v939
  %v941 = vpop.f32.mrf.mxu0
  %v942 = vpop.f32.mrf.mxu0
  %v943 = vadd.f32 0.0, %v942
  %v944 = vpop.f32.mrf.mxu0
  %945 = vmatprep.mubr.bf16.mxu0 0
  %946 = vmatmul.mubr.bf16.gmra.mxu0 %v793
  %v947 = vpop.f32.mrf.mxu0
  %v948 = vadd.f32 0.0, %v947
  %v949 = vpop.f32.mrf.mxu0
  %v950 = vpop.f32.mrf.mxu0
  %v951 = vadd.f32 0.0, %v950
  %v952 = vpop.f32.mrf.mxu0
  %953 = vmatprep.mubr.bf16.mxu0 0
  %954 = vmatmul.mubr.bf16.gmra.mxu0 %v794
  %v955 = vpop.f32.mrf.mxu0
  %v956 = vadd.f32 0.0, %v955
  %v957 = vpop.f32.mrf.mxu0
  %v958 = vpop.f32.mrf.mxu0
  %v959 = vadd.f32 0.0, %v958
  %v960 = vpop.f32.mrf.mxu0
  %961 = vmatprep.mubr.bf16.mxu0 0
  %962 = vmatmul.mubr.bf16.gmra.mxu0 %v795
  %v963 = vpop.f32.mrf.mxu0
  %v964 = vadd.f32 0.0, %v963
  %v965 = vpop.f32.mrf.mxu0
  %v966 = vpop.f32.mrf.mxu0
  %v967 = vadd.f32 0.0, %v966
  %v968 = vpop.f32.mrf.mxu0
  %969 = vmatprep.mubr.bf16.mxu0 0
  %970 = vmatmul.mubr.bf16.gmra.mxu0 %v796
  %v971 = vpop.f32.mrf.mxu0
  %v972 = vadd.f32 0.0, %v971
  %v973 = vpop.f32.mrf.mxu0
  %v974 = vpop.f32.mrf.mxu0
  %v975 = vadd.f32 0.0, %v974
  %v976 = vpop.f32.mrf.mxu0
  %977 = vmatprep.mubr.bf16.mxu0 0
  %978 = vmatmul.mubr.bf16.gmra.mxu0 %v797
  %v979 = vpop.f32.mrf.mxu0
  %v980 = vadd.f32 0.0, %v979
  %v981 = vpop.f32.mrf.mxu0
  %v982 = vpop.f32.mrf.mxu0
  %v983 = vadd.f32 0.0, %v982
  %v984 = vpop.f32.mrf.mxu0
  %985 = vmatprep.mubr.bf16.mxu0 0
  %986 = vmatmul.mubr.bf16.gmra.mxu0 %v798
  %v987 = vpop.f32.mrf.mxu0
  %v988 = vadd.f32 0.0, %v987
  %v989 = vpop.f32.mrf.mxu0
  %v990 = vpop.f32.mrf.mxu0
  %v991 = vadd.f32 0.0, %v990
  %v992 = vpop.f32.mrf.mxu0
  %993 = vmatprep.mubr.bf16.mxu0 0
  %994 = vmatmul.mubr.bf16.gmra.mxu0 %v799
  %v995 = vpop.f32.mrf.mxu0
  %v996 = vadd.f32 0.0, %v995
  %v997 = vpop.f32.mrf.mxu0
  %v998 = vpop.f32.mrf.mxu0
  %v999 = vpop.f32.mrf.mxu0
  %1000 = vdwg.mxu0
  %v1001 = vadd.f32 %v737, %v900
  %v1002 = vadd.f32 %v738, %v903
  %v1003 = vadd.f32 %v739, %v908
  %v1004 = vadd.f32 %v740, %v911
  %v1005 = vadd.f32 %v741, %v916
  %v1006 = vadd.f32 %v742, %v919
  %v1007 = vadd.f32 %v743, %v924
  %v1008 = vadd.f32 %v744, %v927
  %v1009 = vadd.f32 %v745, %v932
  %v1010 = vadd.f32 %v746, %v935
  %v1011 = vadd.f32 %v747, %v940
  %v1012 = vadd.f32 %v748, %v943
  %v1013 = vadd.f32 %v749, %v948
  %v1014 = vadd.f32 %v750, %v951
  %v1015 = vadd.f32 %v751, %v956
  %v1016 = vadd.f32 %v752, %v959
  %v1017 = vadd.f32 %v753, %v964
  %v1018 = vadd.f32 %v754, %v967
  %v1019 = vadd.f32 %v755, %v972
  %v1020 = vadd.f32 %v756, %v975
  %v1021 = vadd.f32 %v757, %v980
  %v1022 = vadd.f32 %v758, %v983
  %v1023 = vadd.f32 %v759, %v988
  %v1024 = vadd.f32 %v760, %v991
  %v1025 = vadd.f32 %v761, %v996
  %v1026 = vld [vmem:[%s0 + $0xb] sm:$0xff]
  %v1027 = vld [vmem:[%s0 + $0x13] sm:$0xff]
  %v1028 = vld [vmem:[%s0 + $0x1b] sm:$0xff]
  %v1029 = vld [vmem:[%s0 + $0x23] sm:$0xff]
  %v1030 = vld [vmem:[%s0 + $0x2b] sm:$0xff]
  %v1031 = vld [vmem:[%s0 + $0x33] sm:$0xff]
  %v1032 = vld [vmem:[%s0 + $0x3b] sm:$0xff]
  %v1033 = vld [vmem:[%s0 + $0x43] sm:$0xff]
  %v1034 = vld [vmem:[%s0 + $0x4b] sm:$0xff]
  %v1035 = vld [vmem:[%s0 + $0x53] sm:$0xff]
  %v1036 = vld [vmem:[%s0 + $0x5b] sm:$0xff]
  %v1037 = vld [vmem:[%s0 + $0x63] sm:$0xff]
  %v1038 = vld [vmem:[%s0 + $0x6b] sm:$0xff]
  %v1039 = vld [vmem:[%s0 + $0x73] sm:$0xff]
  %v1040 = vld [vmem:[%s0 + $0x7b] sm:$0xff]
  %v1041 = vld [vmem:[%s0 + $0x83] sm:$0xff]
  %v1042 = vld [vmem:[%s0 + $0x8b] sm:$0xff]
  %v1043 = vld [vmem:[%s0 + $0x93] sm:$0xff]
  %v1044 = vld [vmem:[%s0 + $0x9b] sm:$0xff]
  %v1045 = vld [vmem:[%s0 + $0xa3] sm:$0xff]
  %v1046 = vld [vmem:[%s0 + $0xab] sm:$0xff]
  %v1047 = vld [vmem:[%s0 + $0xb3] sm:$0xff]
  %v1048 = vld [vmem:[%s0 + $0xbb] sm:$0xff]
  %v1049 = vld [vmem:[%s0 + $0xc3] sm:$0xff]
  %v1050 = vld [vmem:[%s0 + $0xcb] sm:$0xff]
  %v1051 = vpack.c.bf16 %v1027, %v1026
  %v1052 = vpack.c.bf16 %v1029, %v1028
  %v1053 = vpack.c.bf16 %v1031, %v1030
  %v1054 = vpack.c.bf16 %v1033, %v1032
  %v1055 = vpack.c.bf16 %v1035, %v1034
  %v1056 = vpack.c.bf16 %v1037, %v1036
  %v1057 = vpack.c.bf16 %v1039, %v1038
  %v1058 = vpack.c.bf16 %v1041, %v1040
  %v1059 = vpack.c.bf16 %v1043, %v1042
  %v1060 = vpack.c.bf16 %v1045, %v1044
  %v1061 = vpack.c.bf16 %v1047, %v1046
  %v1062 = vpack.c.bf16 %v1049, %v1048
  %v1063 = vpack.c.bf16 %v1050, %v1050
  %s1064 = scalar_lea.vmem %s1, 256
  %v1065 = vld [vmem:[%s1064] sm:$0xf]
  %v1066 = vld [vmem:[%s1064 + $0x4] sm:$0xf]
  %v1067 = vld [vmem:[%s1064 + $0x8] sm:$0xf]
  %v1068 = vld [vmem:[%s1064 + $0xc] sm:$0xf]
  %v1069 = vld [vmem:[%s1064 + $0x10] sm:$0xf]
  %v1070 = vld [vmem:[%s1064 + $0x14] sm:$0xf]
  %v1071 = vld [vmem:[%s1064 + $0x18] sm:$0xf]
  %v1072 = vld [vmem:[%s1064 + $0x1c] sm:$0xf]
  %v1073 = vld [vmem:[%s1064 + $0x20] sm:$0xf]
  %v1074 = vld [vmem:[%s1064 + $0x24] sm:$0xf]
  %v1075 = vld [vmem:[%s1064 + $0x28] sm:$0xf]
  %v1076 = vld [vmem:[%s1064 + $0x2c] sm:$0xf]
  %v1077 = vld [vmem:[%s1064 + $0x30] sm:$0xf]
  %v1078 = vld [vmem:[%s1064 + $0x34] sm:$0xf]
  %v1079 = vld [vmem:[%s1064 + $0x38] sm:$0xf]
  %v1080 = vld [vmem:[%s1064 + $0x3c] sm:$0xf]
  %v1097 = vunpack.c.l.b16 %v1065
  %v1098 = vunpack.c.l.b16 %v1066
  %v1099 = vunpack.c.l.b16 %v1067
  %v1100 = vunpack.c.l.b16 %v1068
  %v1101 = vunpack.c.l.b16 %v1069
  %v1102 = vunpack.c.l.b16 %v1070
  %v1103 = vunpack.c.l.b16 %v1071
  %v1104 = vunpack.c.l.b16 %v1072
  %v1105 = vunpack.c.l.b16 %v1073
  %v1106 = vunpack.c.l.b16 %v1074
  %v1107 = vunpack.c.l.b16 %v1075
  %v1108 = vunpack.c.l.b16 %v1076
  %v1109 = vunpack.c.l.b16 %v1077
  %v1110 = vunpack.c.l.b16 %v1078
  %v1111 = vunpack.c.l.b16 %v1079
  %v1112 = vunpack.c.l.b16 %v1080
  %v1113 = vpack.c.b16 %v1098, %v1097
  %v1114 = vpack.c.b16 %v1100, %v1099
  %v1115 = vpack.c.b16 %v1102, %v1101
  %v1116 = vpack.c.b16 %v1104, %v1103
  %v1117 = vpack.c.b16 %v1106, %v1105
  %v1118 = vpack.c.b16 %v1108, %v1107
  %v1119 = vpack.c.b16 %v1110, %v1109
  %v1120 = vpack.c.b16 %v1112, %v1111
  %1129 = vmatprep.subr.bf16.mxu0 0
  %1130 = vmatpush1.bf16.msra.mxu0 %v1120
  %1131 = vmatprep.subr.bf16.mxu0 0
  %1132 = vmatpush1.bf16.msra.mxu0 %v1119
  %1133 = vmatprep.subr.bf16.mxu0 0
  %1134 = vmatpush1.bf16.msra.mxu0 %v1118
  %1135 = vmatprep.subr.bf16.mxu0 0
  %1136 = vmatpush1.bf16.msra.mxu0 %v1117
  %1137 = vmatprep.subr.bf16.mxu0 0
  %1138 = vmatpush1.bf16.msra.mxu0 %v1116
  %1139 = vmatprep.subr.bf16.mxu0 0
  %1140 = vmatpush1.bf16.msra.mxu0 %v1115
  %1141 = vmatprep.subr.bf16.mxu0 0
  %1142 = vmatpush1.bf16.msra.mxu0 %v1114
  %1143 = vmatprep.subr.bf16.mxu0 0
  %1144 = vmatpush1.bf16.msra.mxu0 %v1113
  %1145 = vmatprep.subr.bf16.mxu0 0
  %1146 = vmatpush2.bf16.msra.mxu0 0
  %1147 = vmatprep.subr.bf16.mxu0 0
  %1148 = vmatpush2.bf16.msra.mxu0 0
  %1149 = vmatprep.subr.bf16.mxu0 0
  %1150 = vmatpush2.bf16.msra.mxu0 0
  %1151 = vmatprep.subr.bf16.mxu0 0
  %1152 = vmatpush2.bf16.msra.mxu0 0
  %1153 = vmatprep.subr.bf16.mxu0 0
  %1154 = vmatpush2.bf16.msra.mxu0 0
  %1155 = vmatprep.subr.bf16.mxu0 0
  %1156 = vmatpush2.bf16.msra.mxu0 0
  %1157 = vmatprep.subr.bf16.mxu0 0
  %1158 = vmatpush2.bf16.msra.mxu0 0
  %1159 = vmatprep.subr.bf16.mxu0 0
  %1160 = vmatpush2.bf16.msra.mxu0 0
  %1161 = vmatprep.mubr.bf16.mxu0 0
  %1162 = vmatmul.mubr.bf16.gmra.mxu0 %v1051
  %v1163 = vpop.f32.mrf.mxu0
  %v1164 = vadd.f32 0.0, %v1163
  %v1165 = vpop.f32.mrf.mxu0
  %v1166 = vpop.f32.mrf.mxu0
  %v1167 = vadd.f32 0.0, %v1166
  %v1168 = vpop.f32.mrf.mxu0
  %1169 = vmatprep.mubr.bf16.mxu0 0
  %1170 = vmatmul.mubr.bf16.gmra.mxu0 %v1052
  %v1171 = vpop.f32.mrf.mxu0
  %v1172 = vadd.f32 0.0, %v1171
  %v1173 = vpop.f32.mrf.mxu0
  %v1174 = vpop.f32.mrf.mxu0
  %v1175 = vadd.f32 0.0, %v1174
  %v1176 = vpop.f32.mrf.mxu0
  %1177 = vmatprep.mubr.bf16.mxu0 0
  %1178 = vmatmul.mubr.bf16.gmra.mxu0 %v1053
  %v1179 = vpop.f32.mrf.mxu0
  %v1180 = vadd.f32 0.0, %v1179
  %v1181 = vpop.f32.mrf.mxu0
  %v1182 = vpop.f32.mrf.mxu0
  %v1183 = vadd.f32 0.0, %v1182
  %v1184 = vpop.f32.mrf.mxu0
  %1185 = vmatprep.mubr.bf16.mxu0 0
  %1186 = vmatmul.mubr.bf16.gmra.mxu0 %v1054
  %v1187 = vpop.f32.mrf.mxu0
  %v1188 = vadd.f32 0.0, %v1187
  %v1189 = vpop.f32.mrf.mxu0
  %v1190 = vpop.f32.mrf.mxu0
  %v1191 = vadd.f32 0.0, %v1190
  %v1192 = vpop.f32.mrf.mxu0
  %1193 = vmatprep.mubr.bf16.mxu0 0
  %1194 = vmatmul.mubr.bf16.gmra.mxu0 %v1055
  %v1195 = vpop.f32.mrf.mxu0
  %v1196 = vadd.f32 0.0, %v1195
  %v1197 = vpop.f32.mrf.mxu0
  %v1198 = vpop.f32.mrf.mxu0
  %v1199 = vadd.f32 0.0, %v1198
  %v1200 = vpop.f32.mrf.mxu0
  %1201 = vmatprep.mubr.bf16.mxu0 0
  %1202 = vmatmul.mubr.bf16.gmra.mxu0 %v1056
  %v1203 = vpop.f32.mrf.mxu0
  %v1204 = vadd.f32 0.0, %v1203
  %v1205 = vpop.f32.mrf.mxu0
  %v1206 = vpop.f32.mrf.mxu0
  %v1207 = vadd.f32 0.0, %v1206
  %v1208 = vpop.f32.mrf.mxu0
  %1209 = vmatprep.mubr.bf16.mxu0 0
  %1210 = vmatmul.mubr.bf16.gmra.mxu0 %v1057
  %v1211 = vpop.f32.mrf.mxu0
  %v1212 = vadd.f32 0.0, %v1211
  %v1213 = vpop.f32.mrf.mxu0
  %v1214 = vpop.f32.mrf.mxu0
  %v1215 = vadd.f32 0.0, %v1214
  %v1216 = vpop.f32.mrf.mxu0
  %1217 = vmatprep.mubr.bf16.mxu0 0
  %1218 = vmatmul.mubr.bf16.gmra.mxu0 %v1058
  %v1219 = vpop.f32.mrf.mxu0
  %v1220 = vadd.f32 0.0, %v1219
  %v1221 = vpop.f32.mrf.mxu0
  %v1222 = vpop.f32.mrf.mxu0
  %v1223 = vadd.f32 0.0, %v1222
  %v1224 = vpop.f32.mrf.mxu0
  %1225 = vmatprep.mubr.bf16.mxu0 0
  %1226 = vmatmul.mubr.bf16.gmra.mxu0 %v1059
  %v1227 = vpop.f32.mrf.mxu0
  %v1228 = vadd.f32 0.0, %v1227
  %v1229 = vpop.f32.mrf.mxu0
  %v1230 = vpop.f32.mrf.mxu0
  %v1231 = vadd.f32 0.0, %v1230
  %v1232 = vpop.f32.mrf.mxu0
  %1233 = vmatprep.mubr.bf16.mxu0 0
  %1234 = vmatmul.mubr.bf16.gmra.mxu0 %v1060
  %v1235 = vpop.f32.mrf.mxu0
  %v1236 = vadd.f32 0.0, %v1235
  %v1237 = vpop.f32.mrf.mxu0
  %v1238 = vpop.f32.mrf.mxu0
  %v1239 = vadd.f32 0.0, %v1238
  %v1240 = vpop.f32.mrf.mxu0
  %1241 = vmatprep.mubr.bf16.mxu0 0
  %1242 = vmatmul.mubr.bf16.gmra.mxu0 %v1061
  %v1243 = vpop.f32.mrf.mxu0
  %v1244 = vadd.f32 0.0, %v1243
  %v1245 = vpop.f32.mrf.mxu0
  %v1246 = vpop.f32.mrf.mxu0
  %v1247 = vadd.f32 0.0, %v1246
  %v1248 = vpop.f32.mrf.mxu0
  %1249 = vmatprep.mubr.bf16.mxu0 0
  %1250 = vmatmul.mubr.bf16.gmra.mxu0 %v1062
  %v1251 = vpop.f32.mrf.mxu0
  %v1252 = vadd.f32 0.0, %v1251
  %v1253 = vpop.f32.mrf.mxu0
  %v1254 = vpop.f32.mrf.mxu0
  %v1255 = vadd.f32 0.0, %v1254
  %v1256 = vpop.f32.mrf.mxu0
  %1257 = vmatprep.mubr.bf16.mxu0 0
  %1258 = vmatmul.mubr.bf16.gmra.mxu0 %v1063
  %v1259 = vpop.f32.mrf.mxu0
  %v1260 = vadd.f32 0.0, %v1259
  %v1261 = vpop.f32.mrf.mxu0
  %v1262 = vpop.f32.mrf.mxu0
  %v1263 = vpop.f32.mrf.mxu0
  %1264 = vdwg.mxu0
  %v1265 = vadd.f32 %v1001, %v1164
  %v1266 = vadd.f32 %v1002, %v1167
  %v1267 = vadd.f32 %v1003, %v1172
  %v1268 = vadd.f32 %v1004, %v1175
  %v1269 = vadd.f32 %v1005, %v1180
  %v1270 = vadd.f32 %v1006, %v1183
  %v1271 = vadd.f32 %v1007, %v1188
  %v1272 = vadd.f32 %v1008, %v1191
  %v1273 = vadd.f32 %v1009, %v1196
  %v1274 = vadd.f32 %v1010, %v1199
  %v1275 = vadd.f32 %v1011, %v1204
  %v1276 = vadd.f32 %v1012, %v1207
  %v1277 = vadd.f32 %v1013, %v1212
  %v1278 = vadd.f32 %v1014, %v1215
  %v1279 = vadd.f32 %v1015, %v1220
  %v1280 = vadd.f32 %v1016, %v1223
  %v1281 = vadd.f32 %v1017, %v1228
  %v1282 = vadd.f32 %v1018, %v1231
  %v1283 = vadd.f32 %v1019, %v1236
  %v1284 = vadd.f32 %v1020, %v1239
  %v1285 = vadd.f32 %v1021, %v1244
  %v1286 = vadd.f32 %v1022, %v1247
  %v1287 = vadd.f32 %v1023, %v1252
  %v1288 = vadd.f32 %v1024, %v1255
  %v1289 = vadd.f32 %v1025, %v1260
  %v1290 = vld [vmem:[%s0 + $0xc] sm:$0xff]
  %v1291 = vld [vmem:[%s0 + $0x14] sm:$0xff]
  %v1292 = vld [vmem:[%s0 + $0x1c] sm:$0xff]
  %v1293 = vld [vmem:[%s0 + $0x24] sm:$0xff]
  %v1294 = vld [vmem:[%s0 + $0x2c] sm:$0xff]
  %v1295 = vld [vmem:[%s0 + $0x34] sm:$0xff]
  %v1296 = vld [vmem:[%s0 + $0x3c] sm:$0xff]
  %v1297 = vld [vmem:[%s0 + $0x44] sm:$0xff]
  %v1298 = vld [vmem:[%s0 + $0x4c] sm:$0xff]
  %v1299 = vld [vmem:[%s0 + $0x54] sm:$0xff]
  %v1300 = vld [vmem:[%s0 + $0x5c] sm:$0xff]
  %v1301 = vld [vmem:[%s0 + $0x64] sm:$0xff]
  %v1302 = vld [vmem:[%s0 + $0x6c] sm:$0xff]
  %v1303 = vld [vmem:[%s0 + $0x74] sm:$0xff]
  %v1304 = vld [vmem:[%s0 + $0x7c] sm:$0xff]
  %v1305 = vld [vmem:[%s0 + $0x84] sm:$0xff]
  %v1306 = vld [vmem:[%s0 + $0x8c] sm:$0xff]
  %v1307 = vld [vmem:[%s0 + $0x94] sm:$0xff]
  %v1308 = vld [vmem:[%s0 + $0x9c] sm:$0xff]
  %v1309 = vld [vmem:[%s0 + $0xa4] sm:$0xff]
  %v1310 = vld [vmem:[%s0 + $0xac] sm:$0xff]
  %v1311 = vld [vmem:[%s0 + $0xb4] sm:$0xff]
  %v1312 = vld [vmem:[%s0 + $0xbc] sm:$0xff]
  %v1313 = vld [vmem:[%s0 + $0xc4] sm:$0xff]
  %v1314 = vld [vmem:[%s0 + $0xcc] sm:$0xff]
  %v1315 = vpack.c.bf16 %v1291, %v1290
  %v1316 = vpack.c.bf16 %v1293, %v1292
  %v1317 = vpack.c.bf16 %v1295, %v1294
  %v1318 = vpack.c.bf16 %v1297, %v1296
  %v1319 = vpack.c.bf16 %v1299, %v1298
  %v1320 = vpack.c.bf16 %v1301, %v1300
  %v1321 = vpack.c.bf16 %v1303, %v1302
  %v1322 = vpack.c.bf16 %v1305, %v1304
  %v1323 = vpack.c.bf16 %v1307, %v1306
  %v1324 = vpack.c.bf16 %v1309, %v1308
  %v1325 = vpack.c.bf16 %v1311, %v1310
  %v1326 = vpack.c.bf16 %v1313, %v1312
  %v1327 = vpack.c.bf16 %v1314, %v1314
  %s1328 = scalar_lea.vmem %s1, 320
  %v1329 = vld [vmem:[%s1328] sm:$0xf]
  %v1330 = vld [vmem:[%s1328 + $0x4] sm:$0xf]
  %v1331 = vld [vmem:[%s1328 + $0x8] sm:$0xf]
  %v1332 = vld [vmem:[%s1328 + $0xc] sm:$0xf]
  %v1333 = vld [vmem:[%s1328 + $0x10] sm:$0xf]
  %v1334 = vld [vmem:[%s1328 + $0x14] sm:$0xf]
  %v1335 = vld [vmem:[%s1328 + $0x18] sm:$0xf]
  %v1336 = vld [vmem:[%s1328 + $0x1c] sm:$0xf]
  %v1337 = vld [vmem:[%s1328 + $0x20] sm:$0xf]
  %v1338 = vld [vmem:[%s1328 + $0x24] sm:$0xf]
  %v1339 = vld [vmem:[%s1328 + $0x28] sm:$0xf]
  %v1340 = vld [vmem:[%s1328 + $0x2c] sm:$0xf]
  %v1341 = vld [vmem:[%s1328 + $0x30] sm:$0xf]
  %v1342 = vld [vmem:[%s1328 + $0x34] sm:$0xf]
  %v1343 = vld [vmem:[%s1328 + $0x38] sm:$0xf]
  %v1344 = vld [vmem:[%s1328 + $0x3c] sm:$0xf]
  %v1361 = vunpack.c.l.b16 %v1329
  %v1362 = vunpack.c.l.b16 %v1330
  %v1363 = vunpack.c.l.b16 %v1331
  %v1364 = vunpack.c.l.b16 %v1332
  %v1365 = vunpack.c.l.b16 %v1333
  %v1366 = vunpack.c.l.b16 %v1334
  %v1367 = vunpack.c.l.b16 %v1335
  %v1368 = vunpack.c.l.b16 %v1336
  %v1369 = vunpack.c.l.b16 %v1337
  %v1370 = vunpack.c.l.b16 %v1338
  %v1371 = vunpack.c.l.b16 %v1339
  %v1372 = vunpack.c.l.b16 %v1340
  %v1373 = vunpack.c.l.b16 %v1341
  %v1374 = vunpack.c.l.b16 %v1342
  %v1375 = vunpack.c.l.b16 %v1343
  %v1376 = vunpack.c.l.b16 %v1344
  %v1377 = vpack.c.b16 %v1362, %v1361
  %v1378 = vpack.c.b16 %v1364, %v1363
  %v1379 = vpack.c.b16 %v1366, %v1365
  %v1380 = vpack.c.b16 %v1368, %v1367
  %v1381 = vpack.c.b16 %v1370, %v1369
  %v1382 = vpack.c.b16 %v1372, %v1371
  %v1383 = vpack.c.b16 %v1374, %v1373
  %v1384 = vpack.c.b16 %v1376, %v1375
  %1393 = vmatprep.subr.bf16.mxu0 0
  %1394 = vmatpush1.bf16.msra.mxu0 %v1384
  %1395 = vmatprep.subr.bf16.mxu0 0
  %1396 = vmatpush1.bf16.msra.mxu0 %v1383
  %1397 = vmatprep.subr.bf16.mxu0 0
  %1398 = vmatpush1.bf16.msra.mxu0 %v1382
  %1399 = vmatprep.subr.bf16.mxu0 0
  %1400 = vmatpush1.bf16.msra.mxu0 %v1381
  %1401 = vmatprep.subr.bf16.mxu0 0
  %1402 = vmatpush1.bf16.msra.mxu0 %v1380
  %1403 = vmatprep.subr.bf16.mxu0 0
  %1404 = vmatpush1.bf16.msra.mxu0 %v1379
  %1405 = vmatprep.subr.bf16.mxu0 0
  %1406 = vmatpush1.bf16.msra.mxu0 %v1378
  %1407 = vmatprep.subr.bf16.mxu0 0
  %1408 = vmatpush1.bf16.msra.mxu0 %v1377
  %1409 = vmatprep.subr.bf16.mxu0 0
  %1410 = vmatpush2.bf16.msra.mxu0 0
  %1411 = vmatprep.subr.bf16.mxu0 0
  %1412 = vmatpush2.bf16.msra.mxu0 0
  %1413 = vmatprep.subr.bf16.mxu0 0
  %1414 = vmatpush2.bf16.msra.mxu0 0
  %1415 = vmatprep.subr.bf16.mxu0 0
  %1416 = vmatpush2.bf16.msra.mxu0 0
  %1417 = vmatprep.subr.bf16.mxu0 0
  %1418 = vmatpush2.bf16.msra.mxu0 0
  %1419 = vmatprep.subr.bf16.mxu0 0
  %1420 = vmatpush2.bf16.msra.mxu0 0
  %1421 = vmatprep.subr.bf16.mxu0 0
  %1422 = vmatpush2.bf16.msra.mxu0 0
  %1423 = vmatprep.subr.bf16.mxu0 0
  %1424 = vmatpush2.bf16.msra.mxu0 0
  %1425 = vmatprep.mubr.bf16.mxu0 0
  %1426 = vmatmul.mubr.bf16.gmra.mxu0 %v1315
  %v1427 = vpop.f32.mrf.mxu0
  %v1428 = vadd.f32 0.0, %v1427
  %v1429 = vpop.f32.mrf.mxu0
  %v1430 = vpop.f32.mrf.mxu0
  %v1431 = vadd.f32 0.0, %v1430
  %v1432 = vpop.f32.mrf.mxu0
  %1433 = vmatprep.mubr.bf16.mxu0 0
  %1434 = vmatmul.mubr.bf16.gmra.mxu0 %v1316
  %v1435 = vpop.f32.mrf.mxu0
  %v1436 = vadd.f32 0.0, %v1435
  %v1437 = vpop.f32.mrf.mxu0
  %v1438 = vpop.f32.mrf.mxu0
  %v1439 = vadd.f32 0.0, %v1438
  %v1440 = vpop.f32.mrf.mxu0
  %1441 = vmatprep.mubr.bf16.mxu0 0
  %1442 = vmatmul.mubr.bf16.gmra.mxu0 %v1317
  %v1443 = vpop.f32.mrf.mxu0
  %v1444 = vadd.f32 0.0, %v1443
  %v1445 = vpop.f32.mrf.mxu0
  %v1446 = vpop.f32.mrf.mxu0
  %v1447 = vadd.f32 0.0, %v1446
  %v1448 = vpop.f32.mrf.mxu0
  %1449 = vmatprep.mubr.bf16.mxu0 0
  %1450 = vmatmul.mubr.bf16.gmra.mxu0 %v1318
  %v1451 = vpop.f32.mrf.mxu0
  %v1452 = vadd.f32 0.0, %v1451
  %v1453 = vpop.f32.mrf.mxu0
  %v1454 = vpop.f32.mrf.mxu0
  %v1455 = vadd.f32 0.0, %v1454
  %v1456 = vpop.f32.mrf.mxu0
  %1457 = vmatprep.mubr.bf16.mxu0 0
  %1458 = vmatmul.mubr.bf16.gmra.mxu0 %v1319
  %v1459 = vpop.f32.mrf.mxu0
  %v1460 = vadd.f32 0.0, %v1459
  %v1461 = vpop.f32.mrf.mxu0
  %v1462 = vpop.f32.mrf.mxu0
  %v1463 = vadd.f32 0.0, %v1462
  %v1464 = vpop.f32.mrf.mxu0
  %1465 = vmatprep.mubr.bf16.mxu0 0
  %1466 = vmatmul.mubr.bf16.gmra.mxu0 %v1320
  %v1467 = vpop.f32.mrf.mxu0
  %v1468 = vadd.f32 0.0, %v1467
  %v1469 = vpop.f32.mrf.mxu0
  %v1470 = vpop.f32.mrf.mxu0
  %v1471 = vadd.f32 0.0, %v1470
  %v1472 = vpop.f32.mrf.mxu0
  %1473 = vmatprep.mubr.bf16.mxu0 0
  %1474 = vmatmul.mubr.bf16.gmra.mxu0 %v1321
  %v1475 = vpop.f32.mrf.mxu0
  %v1476 = vadd.f32 0.0, %v1475
  %v1477 = vpop.f32.mrf.mxu0
  %v1478 = vpop.f32.mrf.mxu0
  %v1479 = vadd.f32 0.0, %v1478
  %v1480 = vpop.f32.mrf.mxu0
  %1481 = vmatprep.mubr.bf16.mxu0 0
  %1482 = vmatmul.mubr.bf16.gmra.mxu0 %v1322
  %v1483 = vpop.f32.mrf.mxu0
  %v1484 = vadd.f32 0.0, %v1483
  %v1485 = vpop.f32.mrf.mxu0
  %v1486 = vpop.f32.mrf.mxu0
  %v1487 = vadd.f32 0.0, %v1486
  %v1488 = vpop.f32.mrf.mxu0
  %1489 = vmatprep.mubr.bf16.mxu0 0
  %1490 = vmatmul.mubr.bf16.gmra.mxu0 %v1323
  %v1491 = vpop.f32.mrf.mxu0
  %v1492 = vadd.f32 0.0, %v1491
  %v1493 = vpop.f32.mrf.mxu0
  %v1494 = vpop.f32.mrf.mxu0
  %v1495 = vadd.f32 0.0, %v1494
  %v1496 = vpop.f32.mrf.mxu0
  %1497 = vmatprep.mubr.bf16.mxu0 0
  %1498 = vmatmul.mubr.bf16.gmra.mxu0 %v1324
  %v1499 = vpop.f32.mrf.mxu0
  %v1500 = vadd.f32 0.0, %v1499
  %v1501 = vpop.f32.mrf.mxu0
  %v1502 = vpop.f32.mrf.mxu0
  %v1503 = vadd.f32 0.0, %v1502
  %v1504 = vpop.f32.mrf.mxu0
  %1505 = vmatprep.mubr.bf16.mxu0 0
  %1506 = vmatmul.mubr.bf16.gmra.mxu0 %v1325
  %v1507 = vpop.f32.mrf.mxu0
  %v1508 = vadd.f32 0.0, %v1507
  %v1509 = vpop.f32.mrf.mxu0
  %v1510 = vpop.f32.mrf.mxu0
  %v1511 = vadd.f32 0.0, %v1510
  %v1512 = vpop.f32.mrf.mxu0
  %1513 = vmatprep.mubr.bf16.mxu0 0
  %1514 = vmatmul.mubr.bf16.gmra.mxu0 %v1326
  %v1515 = vpop.f32.mrf.mxu0
  %v1516 = vadd.f32 0.0, %v1515
  %v1517 = vpop.f32.mrf.mxu0
  %v1518 = vpop.f32.mrf.mxu0
  %v1519 = vadd.f32 0.0, %v1518
  %v1520 = vpop.f32.mrf.mxu0
  %1521 = vmatprep.mubr.bf16.mxu0 0
  %1522 = vmatmul.mubr.bf16.gmra.mxu0 %v1327
  %v1523 = vpop.f32.mrf.mxu0
  %v1524 = vadd.f32 0.0, %v1523
  %v1525 = vpop.f32.mrf.mxu0
  %v1526 = vpop.f32.mrf.mxu0
  %v1527 = vpop.f32.mrf.mxu0
  %1528 = vdwg.mxu0
  %v1529 = vadd.f32 %v1265, %v1428
  %v1530 = vadd.f32 %v1266, %v1431
  %v1531 = vadd.f32 %v1267, %v1436
  %v1532 = vadd.f32 %v1268, %v1439
  %v1533 = vadd.f32 %v1269, %v1444
  %v1534 = vadd.f32 %v1270, %v1447
  %v1535 = vadd.f32 %v1271, %v1452
  %v1536 = vadd.f32 %v1272, %v1455
  %v1537 = vadd.f32 %v1273, %v1460
  %v1538 = vadd.f32 %v1274, %v1463
  %v1539 = vadd.f32 %v1275, %v1468
  %v1540 = vadd.f32 %v1276, %v1471
  %v1541 = vadd.f32 %v1277, %v1476
  %v1542 = vadd.f32 %v1278, %v1479
  %v1543 = vadd.f32 %v1279, %v1484
  %v1544 = vadd.f32 %v1280, %v1487
  %v1545 = vadd.f32 %v1281, %v1492
  %v1546 = vadd.f32 %v1282, %v1495
  %v1547 = vadd.f32 %v1283, %v1500
  %v1548 = vadd.f32 %v1284, %v1503
  %v1549 = vadd.f32 %v1285, %v1508
  %v1550 = vadd.f32 %v1286, %v1511
  %v1551 = vadd.f32 %v1287, %v1516
  %v1552 = vadd.f32 %v1288, %v1519
  %v1553 = vadd.f32 %v1289, %v1524
  %v1554 = vld [vmem:[%s0 + $0x14] sm:$0xff]
  %v1555 = vld [vmem:[%s0 + $0x1c] sm:$0xff]
  %v1556 = vld [vmem:[%s0 + $0x24] sm:$0xff]
  %v1557 = vld [vmem:[%s0 + $0x2c] sm:$0xff]
  %v1558 = vld [vmem:[%s0 + $0x34] sm:$0xff]
  %v1559 = vld [vmem:[%s0 + $0x3c] sm:$0xff]
  %v1560 = vld [vmem:[%s0 + $0x44] sm:$0xff]
  %v1561 = vld [vmem:[%s0 + $0x4c] sm:$0xff]
  %v1562 = vld [vmem:[%s0 + $0x54] sm:$0xff]
  %v1563 = vld [vmem:[%s0 + $0x5c] sm:$0xff]
  %v1564 = vld [vmem:[%s0 + $0x64] sm:$0xff]
  %v1565 = vld [vmem:[%s0 + $0x6c] sm:$0xff]
  %v1566 = vld [vmem:[%s0 + $0x74] sm:$0xff]
  %v1567 = vld [vmem:[%s0 + $0x7c] sm:$0xff]
  %v1568 = vld [vmem:[%s0 + $0x84] sm:$0xff]
  %v1569 = vld [vmem:[%s0 + $0x8c] sm:$0xff]
  %v1570 = vld [vmem:[%s0 + $0x94] sm:$0xff]
  %v1571 = vld [vmem:[%s0 + $0x9c] sm:$0xff]
  %v1572 = vld [vmem:[%s0 + $0xa4] sm:$0xff]
  %v1573 = vld [vmem:[%s0 + $0xac] sm:$0xff]
  %v1574 = vld [vmem:[%s0 + $0xb4] sm:$0xff]
  %v1575 = vld [vmem:[%s0 + $0xbc] sm:$0xff]
  %v1576 = vld [vmem:[%s0 + $0xc4] sm:$0xff]
  %v1577 = vld [vmem:[%s0 + $0xcc] sm:$0xff]
  %v1578 = vld [vmem:[%s0 + $0xd4] sm:$0xff]
  %v1579 = vpack.c.bf16 %v1555, %v1554
  %v1580 = vpack.c.bf16 %v1557, %v1556
  %v1581 = vpack.c.bf16 %v1559, %v1558
  %v1582 = vpack.c.bf16 %v1561, %v1560
  %v1583 = vpack.c.bf16 %v1563, %v1562
  %v1584 = vpack.c.bf16 %v1565, %v1564
  %v1585 = vpack.c.bf16 %v1567, %v1566
  %v1586 = vpack.c.bf16 %v1569, %v1568
  %v1587 = vpack.c.bf16 %v1571, %v1570
  %v1588 = vpack.c.bf16 %v1573, %v1572
  %v1589 = vpack.c.bf16 %v1575, %v1574
  %v1590 = vpack.c.bf16 %v1577, %v1576
  %v1591 = vpack.c.bf16 %v1578, %v1578
  %s1592 = scalar_lea.vmem %s1, 384
  %v1593 = vld [vmem:[%s1592] sm:$0xf]
  %v1594 = vld [vmem:[%s1592 + $0x4] sm:$0xf]
  %v1595 = vld [vmem:[%s1592 + $0x8] sm:$0xf]
  %v1596 = vld [vmem:[%s1592 + $0xc] sm:$0xf]
  %v1597 = vld [vmem:[%s1592 + $0x10] sm:$0xf]
  %v1598 = vld [vmem:[%s1592 + $0x14] sm:$0xf]
  %v1599 = vld [vmem:[%s1592 + $0x18] sm:$0xf]
  %v1600 = vld [vmem:[%s1592 + $0x1c] sm:$0xf]
  %v1601 = vld [vmem:[%s1592 + $0x20] sm:$0xf]
  %v1602 = vld [vmem:[%s1592 + $0x24] sm:$0xf]
  %v1603 = vld [vmem:[%s1592 + $0x28] sm:$0xf]
  %v1604 = vld [vmem:[%s1592 + $0x2c] sm:$0xf]
  %v1605 = vld [vmem:[%s1592 + $0x30] sm:$0xf]
  %v1606 = vld [vmem:[%s1592 + $0x34] sm:$0xf]
  %v1607 = vld [vmem:[%s1592 + $0x38] sm:$0xf]
  %v1608 = vld [vmem:[%s1592 + $0x3c] sm:$0xf]
  %v1625 = vunpack.c.l.b16 %v1593
  %v1626 = vunpack.c.l.b16 %v1594
  %v1627 = vunpack.c.l.b16 %v1595
  %v1628 = vunpack.c.l.b16 %v1596
  %v1629 = vunpack.c.l.b16 %v1597
  %v1630 = vunpack.c.l.b16 %v1598
  %v1631 = vunpack.c.l.b16 %v1599
  %v1632 = vunpack.c.l.b16 %v1600
  %v1633 = vunpack.c.l.b16 %v1601
  %v1634 = vunpack.c.l.b16 %v1602
  %v1635 = vunpack.c.l.b16 %v1603
  %v1636 = vunpack.c.l.b16 %v1604
  %v1637 = vunpack.c.l.b16 %v1605
  %v1638 = vunpack.c.l.b16 %v1606
  %v1639 = vunpack.c.l.b16 %v1607
  %v1640 = vunpack.c.l.b16 %v1608
  %v1641 = vpack.c.b16 %v1626, %v1625
  %v1642 = vpack.c.b16 %v1628, %v1627
  %v1643 = vpack.c.b16 %v1630, %v1629
  %v1644 = vpack.c.b16 %v1632, %v1631
  %v1645 = vpack.c.b16 %v1634, %v1633
  %v1646 = vpack.c.b16 %v1636, %v1635
  %v1647 = vpack.c.b16 %v1638, %v1637
  %v1648 = vpack.c.b16 %v1640, %v1639
  %1657 = vmatprep.subr.bf16.mxu0 0
  %1658 = vmatpush1.bf16.msra.mxu0 %v1648
  %1659 = vmatprep.subr.bf16.mxu0 0
  %1660 = vmatpush1.bf16.msra.mxu0 %v1647
  %1661 = vmatprep.subr.bf16.mxu0 0
  %1662 = vmatpush1.bf16.msra.mxu0 %v1646
  %1663 = vmatprep.subr.bf16.mxu0 0
  %1664 = vmatpush1.bf16.msra.mxu0 %v1645
  %1665 = vmatprep.subr.bf16.mxu0 0
  %1666 = vmatpush1.bf16.msra.mxu0 %v1644
  %1667 = vmatprep.subr.bf16.mxu0 0
  %1668 = vmatpush1.bf16.msra.mxu0 %v1643
  %1669 = vmatprep.subr.bf16.mxu0 0
  %1670 = vmatpush1.bf16.msra.mxu0 %v1642
  %1671 = vmatprep.subr.bf16.mxu0 0
  %1672 = vmatpush1.bf16.msra.mxu0 %v1641
  %1673 = vmatprep.subr.bf16.mxu0 0
  %1674 = vmatpush2.bf16.msra.mxu0 0
  %1675 = vmatprep.subr.bf16.mxu0 0
  %1676 = vmatpush2.bf16.msra.mxu0 0
  %1677 = vmatprep.subr.bf16.mxu0 0
  %1678 = vmatpush2.bf16.msra.mxu0 0
  %1679 = vmatprep.subr.bf16.mxu0 0
  %1680 = vmatpush2.bf16.msra.mxu0 0
  %1681 = vmatprep.subr.bf16.mxu0 0
  %1682 = vmatpush2.bf16.msra.mxu0 0
  %1683 = vmatprep.subr.bf16.mxu0 0
  %1684 = vmatpush2.bf16.msra.mxu0 0
  %1685 = vmatprep.subr.bf16.mxu0 0
  %1686 = vmatpush2.bf16.msra.mxu0 0
  %1687 = vmatprep.subr.bf16.mxu0 0
  %1688 = vmatpush2.bf16.msra.mxu0 0
  %1689 = vmatprep.mubr.bf16.mxu0 0
  %1690 = vmatmul.mubr.bf16.gmra.mxu0 %v1579
  %v1691 = vpop.f32.mrf.mxu0
  %v1692 = vadd.f32 0.0, %v1691
  %v1693 = vpop.f32.mrf.mxu0
  %v1694 = vpop.f32.mrf.mxu0
  %v1695 = vadd.f32 0.0, %v1694
  %v1696 = vpop.f32.mrf.mxu0
  %1697 = vmatprep.mubr.bf16.mxu0 0
  %1698 = vmatmul.mubr.bf16.gmra.mxu0 %v1580
  %v1699 = vpop.f32.mrf.mxu0
  %v1700 = vadd.f32 0.0, %v1699
  %v1701 = vpop.f32.mrf.mxu0
  %v1702 = vpop.f32.mrf.mxu0
  %v1703 = vadd.f32 0.0, %v1702
  %v1704 = vpop.f32.mrf.mxu0
  %1705 = vmatprep.mubr.bf16.mxu0 0
  %1706 = vmatmul.mubr.bf16.gmra.mxu0 %v1581
  %v1707 = vpop.f32.mrf.mxu0
  %v1708 = vadd.f32 0.0, %v1707
  %v1709 = vpop.f32.mrf.mxu0
  %v1710 = vpop.f32.mrf.mxu0
  %v1711 = vadd.f32 0.0, %v1710
  %v1712 = vpop.f32.mrf.mxu0
  %1713 = vmatprep.mubr.bf16.mxu0 0
  %1714 = vmatmul.mubr.bf16.gmra.mxu0 %v1582
  %v1715 = vpop.f32.mrf.mxu0
  %v1716 = vadd.f32 0.0, %v1715
  %v1717 = vpop.f32.mrf.mxu0
  %v1718 = vpop.f32.mrf.mxu0
  %v1719 = vadd.f32 0.0, %v1718
  %v1720 = vpop.f32.mrf.mxu0
  %1721 = vmatprep.mubr.bf16.mxu0 0
  %1722 = vmatmul.mubr.bf16.gmra.mxu0 %v1583
  %v1723 = vpop.f32.mrf.mxu0
  %v1724 = vadd.f32 0.0, %v1723
  %v1725 = vpop.f32.mrf.mxu0
  %v1726 = vpop.f32.mrf.mxu0
  %v1727 = vadd.f32 0.0, %v1726
  %v1728 = vpop.f32.mrf.mxu0
  %1729 = vmatprep.mubr.bf16.mxu0 0
  %1730 = vmatmul.mubr.bf16.gmra.mxu0 %v1584
  %v1731 = vpop.f32.mrf.mxu0
  %v1732 = vadd.f32 0.0, %v1731
  %v1733 = vpop.f32.mrf.mxu0
  %v1734 = vpop.f32.mrf.mxu0
  %v1735 = vadd.f32 0.0, %v1734
  %v1736 = vpop.f32.mrf.mxu0
  %1737 = vmatprep.mubr.bf16.mxu0 0
  %1738 = vmatmul.mubr.bf16.gmra.mxu0 %v1585
  %v1739 = vpop.f32.mrf.mxu0
  %v1740 = vadd.f32 0.0, %v1739
  %v1741 = vpop.f32.mrf.mxu0
  %v1742 = vpop.f32.mrf.mxu0
  %v1743 = vadd.f32 0.0, %v1742
  %v1744 = vpop.f32.mrf.mxu0
  %1745 = vmatprep.mubr.bf16.mxu0 0
  %1746 = vmatmul.mubr.bf16.gmra.mxu0 %v1586
  %v1747 = vpop.f32.mrf.mxu0
  %v1748 = vadd.f32 0.0, %v1747
  %v1749 = vpop.f32.mrf.mxu0
  %v1750 = vpop.f32.mrf.mxu0
  %v1751 = vadd.f32 0.0, %v1750
  %v1752 = vpop.f32.mrf.mxu0
  %1753 = vmatprep.mubr.bf16.mxu0 0
  %1754 = vmatmul.mubr.bf16.gmra.mxu0 %v1587
  %v1755 = vpop.f32.mrf.mxu0
  %v1756 = vadd.f32 0.0, %v1755
  %v1757 = vpop.f32.mrf.mxu0
  %v1758 = vpop.f32.mrf.mxu0
  %v1759 = vadd.f32 0.0, %v1758
  %v1760 = vpop.f32.mrf.mxu0
  %1761 = vmatprep.mubr.bf16.mxu0 0
  %1762 = vmatmul.mubr.bf16.gmra.mxu0 %v1588
  %v1763 = vpop.f32.mrf.mxu0
  %v1764 = vadd.f32 0.0, %v1763
  %v1765 = vpop.f32.mrf.mxu0
  %v1766 = vpop.f32.mrf.mxu0
  %v1767 = vadd.f32 0.0, %v1766
  %v1768 = vpop.f32.mrf.mxu0
  %1769 = vmatprep.mubr.bf16.mxu0 0
  %1770 = vmatmul.mubr.bf16.gmra.mxu0 %v1589
  %v1771 = vpop.f32.mrf.mxu0
  %v1772 = vadd.f32 0.0, %v1771
  %v1773 = vpop.f32.mrf.mxu0
  %v1774 = vpop.f32.mrf.mxu0
  %v1775 = vadd.f32 0.0, %v1774
  %v1776 = vpop.f32.mrf.mxu0
  %1777 = vmatprep.mubr.bf16.mxu0 0
  %1778 = vmatmul.mubr.bf16.gmra.mxu0 %v1590
  %v1779 = vpop.f32.mrf.mxu0
  %v1780 = vadd.f32 0.0, %v1779
  %v1781 = vpop.f32.mrf.mxu0
  %v1782 = vpop.f32.mrf.mxu0
  %v1783 = vadd.f32 0.0, %v1782
  %v1784 = vpop.f32.mrf.mxu0
  %1785 = vmatprep.mubr.bf16.mxu0 0
  %1786 = vmatmul.mubr.bf16.gmra.mxu0 %v1591
  %v1787 = vpop.f32.mrf.mxu0
  %v1788 = vadd.f32 0.0, %v1787
  %v1789 = vpop.f32.mrf.mxu0
  %v1790 = vpop.f32.mrf.mxu0
  %v1791 = vpop.f32.mrf.mxu0
  %1792 = vdwg.mxu0
  %v1793 = vadd.f32 %v1529, %v1692
  %v1794 = vadd.f32 %v1530, %v1695
  %v1795 = vadd.f32 %v1531, %v1700
  %v1796 = vadd.f32 %v1532, %v1703
  %v1797 = vadd.f32 %v1533, %v1708
  %v1798 = vadd.f32 %v1534, %v1711
  %v1799 = vadd.f32 %v1535, %v1716
  %v1800 = vadd.f32 %v1536, %v1719
  %v1801 = vadd.f32 %v1537, %v1724
  %v1802 = vadd.f32 %v1538, %v1727
  %v1803 = vadd.f32 %v1539, %v1732
  %v1804 = vadd.f32 %v1540, %v1735
  %v1805 = vadd.f32 %v1541, %v1740
  %v1806 = vadd.f32 %v1542, %v1743
  %v1807 = vadd.f32 %v1543, %v1748
  %v1808 = vadd.f32 %v1544, %v1751
  %v1809 = vadd.f32 %v1545, %v1756
  %v1810 = vadd.f32 %v1546, %v1759
  %v1811 = vadd.f32 %v1547, %v1764
  %v1812 = vadd.f32 %v1548, %v1767
  %v1813 = vadd.f32 %v1549, %v1772
  %v1814 = vadd.f32 %v1550, %v1775
  %v1815 = vadd.f32 %v1551, %v1780
  %v1816 = vadd.f32 %v1552, %v1783
  %v1817 = vadd.f32 %v1553, %v1788
  %v1818 = vld [vmem:[%s0 + $0x15] sm:$0xff]
  %v1819 = vld [vmem:[%s0 + $0x1d] sm:$0xff]
  %v1820 = vld [vmem:[%s0 + $0x25] sm:$0xff]
  %v1821 = vld [vmem:[%s0 + $0x2d] sm:$0xff]
  %v1822 = vld [vmem:[%s0 + $0x35] sm:$0xff]
  %v1823 = vld [vmem:[%s0 + $0x3d] sm:$0xff]
  %v1824 = vld [vmem:[%s0 + $0x45] sm:$0xff]
  %v1825 = vld [vmem:[%s0 + $0x4d] sm:$0xff]
  %v1826 = vld [vmem:[%s0 + $0x55] sm:$0xff]
  %v1827 = vld [vmem:[%s0 + $0x5d] sm:$0xff]
  %v1828 = vld [vmem:[%s0 + $0x65] sm:$0xff]
  %v1829 = vld [vmem:[%s0 + $0x6d] sm:$0xff]
  %v1830 = vld [vmem:[%s0 + $0x75] sm:$0xff]
  %v1831 = vld [vmem:[%s0 + $0x7d] sm:$0xff]
  %v1832 = vld [vmem:[%s0 + $0x85] sm:$0xff]
  %v1833 = vld [vmem:[%s0 + $0x8d] sm:$0xff]
  %v1834 = vld [vmem:[%s0 + $0x95] sm:$0xff]
  %v1835 = vld [vmem:[%s0 + $0x9d] sm:$0xff]
  %v1836 = vld [vmem:[%s0 + $0xa5] sm:$0xff]
  %v1837 = vld [vmem:[%s0 + $0xad] sm:$0xff]
  %v1838 = vld [vmem:[%s0 + $0xb5] sm:$0xff]
  %v1839 = vld [vmem:[%s0 + $0xbd] sm:$0xff]
  %v1840 = vld [vmem:[%s0 + $0xc5] sm:$0xff]
  %v1841 = vld [vmem:[%s0 + $0xcd] sm:$0xff]
  %v1842 = vld [vmem:[%s0 + $0xd5] sm:$0xff]
  %v1843 = vpack.c.bf16 %v1819, %v1818
  %v1844 = vpack.c.bf16 %v1821, %v1820
  %v1845 = vpack.c.bf16 %v1823, %v1822
  %v1846 = vpack.c.bf16 %v1825, %v1824
  %v1847 = vpack.c.bf16 %v1827, %v1826
  %v1848 = vpack.c.bf16 %v1829, %v1828
  %v1849 = vpack.c.bf16 %v1831, %v1830
  %v1850 = vpack.c.bf16 %v1833, %v1832
  %v1851 = vpack.c.bf16 %v1835, %v1834
  %v1852 = vpack.c.bf16 %v1837, %v1836
  %v1853 = vpack.c.bf16 %v1839, %v1838
  %v1854 = vpack.c.bf16 %v1841, %v1840
  %v1855 = vpack.c.bf16 %v1842, %v1842
  %s1856 = scalar_lea.vmem %s1, 448
  %v1857 = vld [vmem:[%s1856] sm:$0xf]
  %v1858 = vld [vmem:[%s1856 + $0x4] sm:$0xf]
  %v1859 = vld [vmem:[%s1856 + $0x8] sm:$0xf]
  %v1860 = vld [vmem:[%s1856 + $0xc] sm:$0xf]
  %v1861 = vld [vmem:[%s1856 + $0x10] sm:$0xf]
  %v1862 = vld [vmem:[%s1856 + $0x14] sm:$0xf]
  %v1863 = vld [vmem:[%s1856 + $0x18] sm:$0xf]
  %v1864 = vld [vmem:[%s1856 + $0x1c] sm:$0xf]
  %v1865 = vld [vmem:[%s1856 + $0x20] sm:$0xf]
  %v1866 = vld [vmem:[%s1856 + $0x24] sm:$0xf]
  %v1867 = vld [vmem:[%s1856 + $0x28] sm:$0xf]
  %v1868 = vld [vmem:[%s1856 + $0x2c] sm:$0xf]
  %v1869 = vld [vmem:[%s1856 + $0x30] sm:$0xf]
  %v1870 = vld [vmem:[%s1856 + $0x34] sm:$0xf]
  %v1871 = vld [vmem:[%s1856 + $0x38] sm:$0xf]
  %v1872 = vld [vmem:[%s1856 + $0x3c] sm:$0xf]
  %v1889 = vunpack.c.l.b16 %v1857
  %v1890 = vunpack.c.l.b16 %v1858
  %v1891 = vunpack.c.l.b16 %v1859
  %v1892 = vunpack.c.l.b16 %v1860
  %v1893 = vunpack.c.l.b16 %v1861
  %v1894 = vunpack.c.l.b16 %v1862
  %v1895 = vunpack.c.l.b16 %v1863
  %v1896 = vunpack.c.l.b16 %v1864
  %v1897 = vunpack.c.l.b16 %v1865
  %v1898 = vunpack.c.l.b16 %v1866
  %v1899 = vunpack.c.l.b16 %v1867
  %v1900 = vunpack.c.l.b16 %v1868
  %v1901 = vunpack.c.l.b16 %v1869
  %v1902 = vunpack.c.l.b16 %v1870
  %v1903 = vunpack.c.l.b16 %v1871
  %v1904 = vunpack.c.l.b16 %v1872
  %v1905 = vpack.c.b16 %v1890, %v1889
  %v1906 = vpack.c.b16 %v1892, %v1891
  %v1907 = vpack.c.b16 %v1894, %v1893
  %v1908 = vpack.c.b16 %v1896, %v1895
  %v1909 = vpack.c.b16 %v1898, %v1897
  %v1910 = vpack.c.b16 %v1900, %v1899
  %v1911 = vpack.c.b16 %v1902, %v1901
  %v1912 = vpack.c.b16 %v1904, %v1903
  %1921 = vmatprep.subr.bf16.mxu0 0
  %1922 = vmatpush1.bf16.msra.mxu0 %v1912
  %1923 = vmatprep.subr.bf16.mxu0 0
  %1924 = vmatpush1.bf16.msra.mxu0 %v1911
  %1925 = vmatprep.subr.bf16.mxu0 0
  %1926 = vmatpush1.bf16.msra.mxu0 %v1910
  %1927 = vmatprep.subr.bf16.mxu0 0
  %1928 = vmatpush1.bf16.msra.mxu0 %v1909
  %1929 = vmatprep.subr.bf16.mxu0 0
  %1930 = vmatpush1.bf16.msra.mxu0 %v1908
  %1931 = vmatprep.subr.bf16.mxu0 0
  %1932 = vmatpush1.bf16.msra.mxu0 %v1907
  %1933 = vmatprep.subr.bf16.mxu0 0
  %1934 = vmatpush1.bf16.msra.mxu0 %v1906
  %1935 = vmatprep.subr.bf16.mxu0 0
  %1936 = vmatpush1.bf16.msra.mxu0 %v1905
  %1937 = vmatprep.subr.bf16.mxu0 0
  %1938 = vmatpush2.bf16.msra.mxu0 0
  %1939 = vmatprep.subr.bf16.mxu0 0
  %1940 = vmatpush2.bf16.msra.mxu0 0
  %1941 = vmatprep.subr.bf16.mxu0 0
  %1942 = vmatpush2.bf16.msra.mxu0 0
  %1943 = vmatprep.subr.bf16.mxu0 0
  %1944 = vmatpush2.bf16.msra.mxu0 0
  %1945 = vmatprep.subr.bf16.mxu0 0
  %1946 = vmatpush2.bf16.msra.mxu0 0
  %1947 = vmatprep.subr.bf16.mxu0 0
  %1948 = vmatpush2.bf16.msra.mxu0 0
  %1949 = vmatprep.subr.bf16.mxu0 0
  %1950 = vmatpush2.bf16.msra.mxu0 0
  %1951 = vmatprep.subr.bf16.mxu0 0
  %1952 = vmatpush2.bf16.msra.mxu0 0
  %1953 = vmatprep.mubr.bf16.mxu0 0
  %1954 = vmatmul.mubr.bf16.gmra.mxu0 %v1843
  %v1955 = vpop.f32.mrf.mxu0
  %v1956 = vadd.f32 0.0, %v1955
  %v1957 = vpop.f32.mrf.mxu0
  %v1958 = vpop.f32.mrf.mxu0
  %v1959 = vadd.f32 0.0, %v1958
  %v1960 = vpop.f32.mrf.mxu0
  %1961 = vmatprep.mubr.bf16.mxu0 0
  %1962 = vmatmul.mubr.bf16.gmra.mxu0 %v1844
  %v1963 = vpop.f32.mrf.mxu0
  %v1964 = vadd.f32 0.0, %v1963
  %v1965 = vpop.f32.mrf.mxu0
  %v1966 = vpop.f32.mrf.mxu0
  %v1967 = vadd.f32 0.0, %v1966
  %v1968 = vpop.f32.mrf.mxu0
  %1969 = vmatprep.mubr.bf16.mxu0 0
  %1970 = vmatmul.mubr.bf16.gmra.mxu0 %v1845
  %v1971 = vpop.f32.mrf.mxu0
  %v1972 = vadd.f32 0.0, %v1971
  %v1973 = vpop.f32.mrf.mxu0
  %v1974 = vpop.f32.mrf.mxu0
  %v1975 = vadd.f32 0.0, %v1974
  %v1976 = vpop.f32.mrf.mxu0
  %1977 = vmatprep.mubr.bf16.mxu0 0
  %1978 = vmatmul.mubr.bf16.gmra.mxu0 %v1846
  %v1979 = vpop.f32.mrf.mxu0
  %v1980 = vadd.f32 0.0, %v1979
  %v1981 = vpop.f32.mrf.mxu0
  %v1982 = vpop.f32.mrf.mxu0
  %v1983 = vadd.f32 0.0, %v1982
  %v1984 = vpop.f32.mrf.mxu0
  %1985 = vmatprep.mubr.bf16.mxu0 0
  %1986 = vmatmul.mubr.bf16.gmra.mxu0 %v1847
  %v1987 = vpop.f32.mrf.mxu0
  %v1988 = vadd.f32 0.0, %v1987
  %v1989 = vpop.f32.mrf.mxu0
  %v1990 = vpop.f32.mrf.mxu0
  %v1991 = vadd.f32 0.0, %v1990
  %v1992 = vpop.f32.mrf.mxu0
  %1993 = vmatprep.mubr.bf16.mxu0 0
  %1994 = vmatmul.mubr.bf16.gmra.mxu0 %v1848
  %v1995 = vpop.f32.mrf.mxu0
  %v1996 = vadd.f32 0.0, %v1995
  %v1997 = vpop.f32.mrf.mxu0
  %v1998 = vpop.f32.mrf.mxu0
  %v1999 = vadd.f32 0.0, %v1998
  %v2000 = vpop.f32.mrf.mxu0
  %2001 = vmatprep.mubr.bf16.mxu0 0
  %2002 = vmatmul.mubr.bf16.gmra.mxu0 %v1849
  %v2003 = vpop.f32.mrf.mxu0
  %v2004 = vadd.f32 0.0, %v2003
  %v2005 = vpop.f32.mrf.mxu0
  %v2006 = vpop.f32.mrf.mxu0
  %v2007 = vadd.f32 0.0, %v2006
  %v2008 = vpop.f32.mrf.mxu0
  %2009 = vmatprep.mubr.bf16.mxu0 0
  %2010 = vmatmul.mubr.bf16.gmra.mxu0 %v1850
  %v2011 = vpop.f32.mrf.mxu0
  %v2012 = vadd.f32 0.0, %v2011
  %v2013 = vpop.f32.mrf.mxu0
  %v2014 = vpop.f32.mrf.mxu0
  %v2015 = vadd.f32 0.0, %v2014
  %v2016 = vpop.f32.mrf.mxu0
  %2017 = vmatprep.mubr.bf16.mxu0 0
  %2018 = vmatmul.mubr.bf16.gmra.mxu0 %v1851
  %v2019 = vpop.f32.mrf.mxu0
  %v2020 = vadd.f32 0.0, %v2019
  %v2021 = vpop.f32.mrf.mxu0
  %v2022 = vpop.f32.mrf.mxu0
  %v2023 = vadd.f32 0.0, %v2022
  %v2024 = vpop.f32.mrf.mxu0
  %2025 = vmatprep.mubr.bf16.mxu0 0
  %2026 = vmatmul.mubr.bf16.gmra.mxu0 %v1852
  %v2027 = vpop.f32.mrf.mxu0
  %v2028 = vadd.f32 0.0, %v2027
  %v2029 = vpop.f32.mrf.mxu0
  %v2030 = vpop.f32.mrf.mxu0
  %v2031 = vadd.f32 0.0, %v2030
  %v2032 = vpop.f32.mrf.mxu0
  %2033 = vmatprep.mubr.bf16.mxu0 0
  %2034 = vmatmul.mubr.bf16.gmra.mxu0 %v1853
  %v2035 = vpop.f32.mrf.mxu0
  %v2036 = vadd.f32 0.0, %v2035
  %v2037 = vpop.f32.mrf.mxu0
  %v2038 = vpop.f32.mrf.mxu0
  %v2039 = vadd.f32 0.0, %v2038
  %v2040 = vpop.f32.mrf.mxu0
  %2041 = vmatprep.mubr.bf16.mxu0 0
  %2042 = vmatmul.mubr.bf16.gmra.mxu0 %v1854
  %v2043 = vpop.f32.mrf.mxu0
  %v2044 = vadd.f32 0.0, %v2043
  %v2045 = vpop.f32.mrf.mxu0
  %v2046 = vpop.f32.mrf.mxu0
  %v2047 = vadd.f32 0.0, %v2046
  %v2048 = vpop.f32.mrf.mxu0
  %2049 = vmatprep.mubr.bf16.mxu0 0
  %2050 = vmatmul.mubr.bf16.gmra.mxu0 %v1855
  %v2051 = vpop.f32.mrf.mxu0
  %v2052 = vadd.f32 0.0, %v2051
  %v2053 = vpop.f32.mrf.mxu0
  %v2054 = vpop.f32.mrf.mxu0
  %v2055 = vpop.f32.mrf.mxu0
  %2056 = vdwg.mxu0
  %v2057 = vadd.f32 %v1793, %v1956
  %v2058 = vadd.f32 %v1794, %v1959
  %v2059 = vadd.f32 %v1795, %v1964
  %v2060 = vadd.f32 %v1796, %v1967
  %v2061 = vadd.f32 %v1797, %v1972
  %v2062 = vadd.f32 %v1798, %v1975
  %v2063 = vadd.f32 %v1799, %v1980
  %v2064 = vadd.f32 %v1800, %v1983
  %v2065 = vadd.f32 %v1801, %v1988
  %v2066 = vadd.f32 %v1802, %v1991
  %v2067 = vadd.f32 %v1803, %v1996
  %v2068 = vadd.f32 %v1804, %v1999
  %v2069 = vadd.f32 %v1805, %v2004
  %v2070 = vadd.f32 %v1806, %v2007
  %v2071 = vadd.f32 %v1807, %v2012
  %v2072 = vadd.f32 %v1808, %v2015
  %v2073 = vadd.f32 %v1809, %v2020
  %v2074 = vadd.f32 %v1810, %v2023
  %v2075 = vadd.f32 %v1811, %v2028
  %v2076 = vadd.f32 %v1812, %v2031
  %v2077 = vadd.f32 %v1813, %v2036
  %v2078 = vadd.f32 %v1814, %v2039
  %v2079 = vadd.f32 %v1815, %v2044
  %v2080 = vadd.f32 %v1816, %v2047
  %v2081 = vadd.f32 %v1817, %v2052
  %v2082 = vld [vmem:[%s0 + $0x16] sm:$0xff]
  %v2083 = vld [vmem:[%s0 + $0x1e] sm:$0xff]
  %v2084 = vld [vmem:[%s0 + $0x26] sm:$0xff]
  %v2085 = vld [vmem:[%s0 + $0x2e] sm:$0xff]
  %v2086 = vld [vmem:[%s0 + $0x36] sm:$0xff]
  %v2087 = vld [vmem:[%s0 + $0x3e] sm:$0xff]
  %v2088 = vld [vmem:[%s0 + $0x46] sm:$0xff]
  %v2089 = vld [vmem:[%s0 + $0x4e] sm:$0xff]
  %v2090 = vld [vmem:[%s0 + $0x56] sm:$0xff]
  %v2091 = vld [vmem:[%s0 + $0x5e] sm:$0xff]
  %v2092 = vld [vmem:[%s0 + $0x66] sm:$0xff]
  %v2093 = vld [vmem:[%s0 + $0x6e] sm:$0xff]
  %v2094 = vld [vmem:[%s0 + $0x76] sm:$0xff]
  %v2095 = vld [vmem:[%s0 + $0x7e] sm:$0xff]
  %v2096 = vld [vmem:[%s0 + $0x86] sm:$0xff]
  %v2097 = vld [vmem:[%s0 + $0x8e] sm:$0xff]
  %v2098 = vld [vmem:[%s0 + $0x96] sm:$0xff]
  %v2099 = vld [vmem:[%s0 + $0x9e] sm:$0xff]
  %v2100 = vld [vmem:[%s0 + $0xa6] sm:$0xff]
  %v2101 = vld [vmem:[%s0 + $0xae] sm:$0xff]
  %v2102 = vld [vmem:[%s0 + $0xb6] sm:$0xff]
  %v2103 = vld [vmem:[%s0 + $0xbe] sm:$0xff]
  %v2104 = vld [vmem:[%s0 + $0xc6] sm:$0xff]
  %v2105 = vld [vmem:[%s0 + $0xce] sm:$0xff]
  %v2106 = vld [vmem:[%s0 + $0xd6] sm:$0xff]
  %v2107 = vpack.c.bf16 %v2083, %v2082
  %v2108 = vpack.c.bf16 %v2085, %v2084
  %v2109 = vpack.c.bf16 %v2087, %v2086
  %v2110 = vpack.c.bf16 %v2089, %v2088
  %v2111 = vpack.c.bf16 %v2091, %v2090
  %v2112 = vpack.c.bf16 %v2093, %v2092
  %v2113 = vpack.c.bf16 %v2095, %v2094
  %v2114 = vpack.c.bf16 %v2097, %v2096
  %v2115 = vpack.c.bf16 %v2099, %v2098
  %v2116 = vpack.c.bf16 %v2101, %v2100
  %v2117 = vpack.c.bf16 %v2103, %v2102
  %v2118 = vpack.c.bf16 %v2105, %v2104
  %v2119 = vpack.c.bf16 %v2106, %v2106
  %s2120 = scalar_lea.vmem %s1, 512
  %v2121 = vld [vmem:[%s2120] sm:$0xf]
  %v2122 = vld [vmem:[%s2120 + $0x4] sm:$0xf]
  %v2123 = vld [vmem:[%s2120 + $0x8] sm:$0xf]
  %v2124 = vld [vmem:[%s2120 + $0xc] sm:$0xf]
  %v2125 = vld [vmem:[%s2120 + $0x10] sm:$0xf]
  %v2126 = vld [vmem:[%s2120 + $0x14] sm:$0xf]
  %v2127 = vld [vmem:[%s2120 + $0x18] sm:$0xf]
  %v2128 = vld [vmem:[%s2120 + $0x1c] sm:$0xf]
  %v2129 = vld [vmem:[%s2120 + $0x20] sm:$0xf]
  %v2130 = vld [vmem:[%s2120 + $0x24] sm:$0xf]
  %v2131 = vld [vmem:[%s2120 + $0x28] sm:$0xf]
  %v2132 = vld [vmem:[%s2120 + $0x2c] sm:$0xf]
  %v2133 = vld [vmem:[%s2120 + $0x30] sm:$0xf]
  %v2134 = vld [vmem:[%s2120 + $0x34] sm:$0xf]
  %v2135 = vld [vmem:[%s2120 + $0x38] sm:$0xf]
  %v2136 = vld [vmem:[%s2120 + $0x3c] sm:$0xf]
  %v2153 = vunpack.c.l.b16 %v2121
  %v2154 = vunpack.c.l.b16 %v2122
  %v2155 = vunpack.c.l.b16 %v2123
  %v2156 = vunpack.c.l.b16 %v2124
  %v2157 = vunpack.c.l.b16 %v2125
  %v2158 = vunpack.c.l.b16 %v2126
  %v2159 = vunpack.c.l.b16 %v2127
  %v2160 = vunpack.c.l.b16 %v2128
  %v2161 = vunpack.c.l.b16 %v2129
  %v2162 = vunpack.c.l.b16 %v2130
  %v2163 = vunpack.c.l.b16 %v2131
  %v2164 = vunpack.c.l.b16 %v2132
  %v2165 = vunpack.c.l.b16 %v2133
  %v2166 = vunpack.c.l.b16 %v2134
  %v2167 = vunpack.c.l.b16 %v2135
  %v2168 = vunpack.c.l.b16 %v2136
  %v2169 = vpack.c.b16 %v2154, %v2153
  %v2170 = vpack.c.b16 %v2156, %v2155
  %v2171 = vpack.c.b16 %v2158, %v2157
  %v2172 = vpack.c.b16 %v2160, %v2159
  %v2173 = vpack.c.b16 %v2162, %v2161
  %v2174 = vpack.c.b16 %v2164, %v2163
  %v2175 = vpack.c.b16 %v2166, %v2165
  %v2176 = vpack.c.b16 %v2168, %v2167
  %2185 = vmatprep.subr.bf16.mxu0 0
  %2186 = vmatpush1.bf16.msra.mxu0 %v2176
  %2187 = vmatprep.subr.bf16.mxu0 0
  %2188 = vmatpush1.bf16.msra.mxu0 %v2175
  %2189 = vmatprep.subr.bf16.mxu0 0
  %2190 = vmatpush1.bf16.msra.mxu0 %v2174
  %2191 = vmatprep.subr.bf16.mxu0 0
  %2192 = vmatpush1.bf16.msra.mxu0 %v2173
  %2193 = vmatprep.subr.bf16.mxu0 0
  %2194 = vmatpush1.bf16.msra.mxu0 %v2172
  %2195 = vmatprep.subr.bf16.mxu0 0
  %2196 = vmatpush1.bf16.msra.mxu0 %v2171
  %2197 = vmatprep.subr.bf16.mxu0 0
  %2198 = vmatpush1.bf16.msra.mxu0 %v2170
  %2199 = vmatprep.subr.bf16.mxu0 0
  %2200 = vmatpush1.bf16.msra.mxu0 %v2169
  %2201 = vmatprep.subr.bf16.mxu0 0
  %2202 = vmatpush2.bf16.msra.mxu0 0
  %2203 = vmatprep.subr.bf16.mxu0 0
  %2204 = vmatpush2.bf16.msra.mxu0 0
  %2205 = vmatprep.subr.bf16.mxu0 0
  %2206 = vmatpush2.bf16.msra.mxu0 0
  %2207 = vmatprep.subr.bf16.mxu0 0
  %2208 = vmatpush2.bf16.msra.mxu0 0
  %2209 = vmatprep.subr.bf16.mxu0 0
  %2210 = vmatpush2.bf16.msra.mxu0 0
  %2211 = vmatprep.subr.bf16.mxu0 0
  %2212 = vmatpush2.bf16.msra.mxu0 0
  %2213 = vmatprep.subr.bf16.mxu0 0
  %2214 = vmatpush2.bf16.msra.mxu0 0
  %2215 = vmatprep.subr.bf16.mxu0 0
  %2216 = vmatpush2.bf16.msra.mxu0 0
  %2217 = vmatprep.mubr.bf16.mxu0 0
  %2218 = vmatmul.mubr.bf16.gmra.mxu0 %v2107
  %v2219 = vpop.f32.mrf.mxu0
  %v2220 = vadd.f32 0.0, %v2219
  %v2221 = vpop.f32.mrf.mxu0
  %v2222 = vpop.f32.mrf.mxu0
  %v2223 = vadd.f32 0.0, %v2222
  %v2224 = vpop.f32.mrf.mxu0
  %2225 = vmatprep.mubr.bf16.mxu0 0
  %2226 = vmatmul.mubr.bf16.gmra.mxu0 %v2108
  %v2227 = vpop.f32.mrf.mxu0
  %v2228 = vadd.f32 0.0, %v2227
  %v2229 = vpop.f32.mrf.mxu0
  %v2230 = vpop.f32.mrf.mxu0
  %v2231 = vadd.f32 0.0, %v2230
  %v2232 = vpop.f32.mrf.mxu0
  %2233 = vmatprep.mubr.bf16.mxu0 0
  %2234 = vmatmul.mubr.bf16.gmra.mxu0 %v2109
  %v2235 = vpop.f32.mrf.mxu0
  %v2236 = vadd.f32 0.0, %v2235
  %v2237 = vpop.f32.mrf.mxu0
  %v2238 = vpop.f32.mrf.mxu0
  %v2239 = vadd.f32 0.0, %v2238
  %v2240 = vpop.f32.mrf.mxu0
  %2241 = vmatprep.mubr.bf16.mxu0 0
  %2242 = vmatmul.mubr.bf16.gmra.mxu0 %v2110
  %v2243 = vpop.f32.mrf.mxu0
  %v2244 = vadd.f32 0.0, %v2243
  %v2245 = vpop.f32.mrf.mxu0
  %v2246 = vpop.f32.mrf.mxu0
  %v2247 = vadd.f32 0.0, %v2246
  %v2248 = vpop.f32.mrf.mxu0
  %2249 = vmatprep.mubr.bf16.mxu0 0
  %2250 = vmatmul.mubr.bf16.gmra.mxu0 %v2111
  %v2251 = vpop.f32.mrf.mxu0
  %v2252 = vadd.f32 0.0, %v2251
  %v2253 = vpop.f32.mrf.mxu0
  %v2254 = vpop.f32.mrf.mxu0
  %v2255 = vadd.f32 0.0, %v2254
  %v2256 = vpop.f32.mrf.mxu0
  %2257 = vmatprep.mubr.bf16.mxu0 0
  %2258 = vmatmul.mubr.bf16.gmra.mxu0 %v2112
  %v2259 = vpop.f32.mrf.mxu0
  %v2260 = vadd.f32 0.0, %v2259
  %v2261 = vpop.f32.mrf.mxu0
  %v2262 = vpop.f32.mrf.mxu0
  %v2263 = vadd.f32 0.0, %v2262
  %v2264 = vpop.f32.mrf.mxu0
  %2265 = vmatprep.mubr.bf16.mxu0 0
  %2266 = vmatmul.mubr.bf16.gmra.mxu0 %v2113
  %v2267 = vpop.f32.mrf.mxu0
  %v2268 = vadd.f32 0.0, %v2267
  %v2269 = vpop.f32.mrf.mxu0
  %v2270 = vpop.f32.mrf.mxu0
  %v2271 = vadd.f32 0.0, %v2270
  %v2272 = vpop.f32.mrf.mxu0
  %2273 = vmatprep.mubr.bf16.mxu0 0
  %2274 = vmatmul.mubr.bf16.gmra.mxu0 %v2114
  %v2275 = vpop.f32.mrf.mxu0
  %v2276 = vadd.f32 0.0, %v2275
  %v2277 = vpop.f32.mrf.mxu0
  %v2278 = vpop.f32.mrf.mxu0
  %v2279 = vadd.f32 0.0, %v2278
  %v2280 = vpop.f32.mrf.mxu0
  %2281 = vmatprep.mubr.bf16.mxu0 0
  %2282 = vmatmul.mubr.bf16.gmra.mxu0 %v2115
  %v2283 = vpop.f32.mrf.mxu0
  %v2284 = vadd.f32 0.0, %v2283
  %v2285 = vpop.f32.mrf.mxu0
  %v2286 = vpop.f32.mrf.mxu0
  %v2287 = vadd.f32 0.0, %v2286
  %v2288 = vpop.f32.mrf.mxu0
  %2289 = vmatprep.mubr.bf16.mxu0 0
  %2290 = vmatmul.mubr.bf16.gmra.mxu0 %v2116
  %v2291 = vpop.f32.mrf.mxu0
  %v2292 = vadd.f32 0.0, %v2291
  %v2293 = vpop.f32.mrf.mxu0
  %v2294 = vpop.f32.mrf.mxu0
  %v2295 = vadd.f32 0.0, %v2294
  %v2296 = vpop.f32.mrf.mxu0
  %2297 = vmatprep.mubr.bf16.mxu0 0
  %2298 = vmatmul.mubr.bf16.gmra.mxu0 %v2117
  %v2299 = vpop.f32.mrf.mxu0
  %v2300 = vadd.f32 0.0, %v2299
  %v2301 = vpop.f32.mrf.mxu0
  %v2302 = vpop.f32.mrf.mxu0
  %v2303 = vadd.f32 0.0, %v2302
  %v2304 = vpop.f32.mrf.mxu0
  %2305 = vmatprep.mubr.bf16.mxu0 0
  %2306 = vmatmul.mubr.bf16.gmra.mxu0 %v2118
  %v2307 = vpop.f32.mrf.mxu0
  %v2308 = vadd.f32 0.0, %v2307
  %v2309 = vpop.f32.mrf.mxu0
  %v2310 = vpop.f32.mrf.mxu0
  %v2311 = vadd.f32 0.0, %v2310
  %v2312 = vpop.f32.mrf.mxu0
  %2313 = vmatprep.mubr.bf16.mxu0 0
  %2314 = vmatmul.mubr.bf16.gmra.mxu0 %v2119
  %v2315 = vpop.f32.mrf.mxu0
  %v2316 = vadd.f32 0.0, %v2315
  %v2317 = vpop.f32.mrf.mxu0
  %v2318 = vpop.f32.mrf.mxu0
  %v2319 = vpop.f32.mrf.mxu0
  %2320 = vdwg.mxu0
  %v2321 = vadd.f32 %v2057, %v2220
  %v2322 = vadd.f32 %v2058, %v2223
  %v2323 = vadd.f32 %v2059, %v2228
  %v2324 = vadd.f32 %v2060, %v2231
  %v2325 = vadd.f32 %v2061, %v2236
  %v2326 = vadd.f32 %v2062, %v2239
  %v2327 = vadd.f32 %v2063, %v2244
  %v2328 = vadd.f32 %v2064, %v2247
  %v2329 = vadd.f32 %v2065, %v2252
  %v2330 = vadd.f32 %v2066, %v2255
  %v2331 = vadd.f32 %v2067, %v2260
  %v2332 = vadd.f32 %v2068, %v2263
  %v2333 = vadd.f32 %v2069, %v2268
  %v2334 = vadd.f32 %v2070, %v2271
  %v2335 = vadd.f32 %v2071, %v2276
  %v2336 = vadd.f32 %v2072, %v2279
  %v2337 = vadd.f32 %v2073, %v2284
  %v2338 = vadd.f32 %v2074, %v2287
  %v2339 = vadd.f32 %v2075, %v2292
  %v2340 = vadd.f32 %v2076, %v2295
  %v2341 = vadd.f32 %v2077, %v2300
  %v2342 = vadd.f32 %v2078, %v2303
  %v2343 = vadd.f32 %v2079, %v2308
  %v2344 = vadd.f32 %v2080, %v2311
  %v2345 = vadd.f32 %v2081, %v2316
  %v2346 = vld [vmem:[%s2] sm:$0xff]
  %v2347 = vld [vmem:[%s2 + $0x8] sm:$0xff]
  %v2348 = vld [vmem:[%s2 + $0x10] sm:$0xff]
  %v2349 = vld [vmem:[%s2 + $0x18] sm:$0xff]
  %v2350 = vld [vmem:[%s2 + $0x20] sm:$0xff]
  %v2351 = vld [vmem:[%s2 + $0x28] sm:$0xff]
  %v2352 = vld [vmem:[%s2 + $0x30] sm:$0xff]
  %v2353 = vld [vmem:[%s2 + $0x38] sm:$0xff]
  %v2354 = vld [vmem:[%s2 + $0x40] sm:$0xff]
  %v2355 = vld [vmem:[%s2 + $0x48] sm:$0xff]
  %v2356 = vld [vmem:[%s2 + $0x50] sm:$0xff]
  %v2357 = vld [vmem:[%s2 + $0x58] sm:$0xff]
  %v2358 = vld [vmem:[%s2 + $0x60] sm:$0xff]
  %v2359 = vld [vmem:[%s2 + $0x68] sm:$0xff]
  %v2360 = vld [vmem:[%s2 + $0x70] sm:$0xff]
  %v2361 = vld [vmem:[%s2 + $0x78] sm:$0xff]
  %v2362 = vld [vmem:[%s2 + $0x80] sm:$0xff]
  %v2363 = vld [vmem:[%s2 + $0x88] sm:$0xff]
  %v2364 = vld [vmem:[%s2 + $0x90] sm:$0xff]
  %v2365 = vld [vmem:[%s2 + $0x98] sm:$0xff]
  %v2366 = vld [vmem:[%s2 + $0xa0] sm:$0xff]
  %v2367 = vld [vmem:[%s2 + $0xa8] sm:$0xff]
  %v2368 = vld [vmem:[%s2 + $0xb0] sm:$0xff]
  %v2369 = vld [vmem:[%s2 + $0xb8] sm:$0xff]
  %v2370 = vld [vmem:[%s2 + $0xc0] sm:$0xff]
  %2372 = vset.pattern.permute.xlu0 0
  %2373 = vperm.xlu0 %2372, %v2346
  %v2374 = vpop.permute.xlu0 %2373
  %2377 = vset.pattern.permute.xlu0 0
  %2378 = vperm.xlu0 %2377, %v2347
  %v2379 = vpop.permute.xlu0 %2378
  %2382 = vset.pattern.permute.xlu0 0
  %2383 = vperm.xlu0 %2382, %v2348
  %v2384 = vpop.permute.xlu0 %2383
  %2387 = vset.pattern.permute.xlu0 0
  %2388 = vperm.xlu0 %2387, %v2349
  %v2389 = vpop.permute.xlu0 %2388
  %2392 = vset.pattern.permute.xlu0 0
  %2393 = vperm.xlu0 %2392, %v2350
  %v2394 = vpop.permute.xlu0 %2393
  %2397 = vset.pattern.permute.xlu0 0
  %2398 = vperm.xlu0 %2397, %v2351
  %v2399 = vpop.permute.xlu0 %2398
  %2402 = vset.pattern.permute.xlu0 0
  %2403 = vperm.xlu0 %2402, %v2352
  %v2404 = vpop.permute.xlu0 %2403
  %2407 = vset.pattern.permute.xlu0 0
  %2408 = vperm.xlu0 %2407, %v2353
  %v2409 = vpop.permute.xlu0 %2408
  %2412 = vset.pattern.permute.xlu0 0
  %2413 = vperm.xlu0 %2412, %v2354
  %v2414 = vpop.permute.xlu0 %2413
  %2417 = vset.pattern.permute.xlu0 0
  %2418 = vperm.xlu0 %2417, %v2355
  %v2419 = vpop.permute.xlu0 %2418
  %2422 = vset.pattern.permute.xlu0 0
  %2423 = vperm.xlu0 %2422, %v2356
  %v2424 = vpop.permute.xlu0 %2423
  %2427 = vset.pattern.permute.xlu0 0
  %2428 = vperm.xlu0 %2427, %v2357
  %v2429 = vpop.permute.xlu0 %2428
  %2432 = vset.pattern.permute.xlu0 0
  %2433 = vperm.xlu0 %2432, %v2358
  %v2434 = vpop.permute.xlu0 %2433
  %2437 = vset.pattern.permute.xlu0 0
  %2438 = vperm.xlu0 %2437, %v2359
  %v2439 = vpop.permute.xlu0 %2438
  %2442 = vset.pattern.permute.xlu0 0
  %2443 = vperm.xlu0 %2442, %v2360
  %v2444 = vpop.permute.xlu0 %2443
  %2447 = vset.pattern.permute.xlu0 0
  %2448 = vperm.xlu0 %2447, %v2361
  %v2449 = vpop.permute.xlu0 %2448
  %2452 = vset.pattern.permute.xlu0 0
  %2453 = vperm.xlu0 %2452, %v2362
  %v2454 = vpop.permute.xlu0 %2453
  %2457 = vset.pattern.permute.xlu0 0
  %2458 = vperm.xlu0 %2457, %v2363
  %v2459 = vpop.permute.xlu0 %2458
  %2462 = vset.pattern.permute.xlu0 0
  %2463 = vperm.xlu0 %2462, %v2364
  %v2464 = vpop.permute.xlu0 %2463
  %2467 = vset.pattern.permute.xlu0 0
  %2468 = vperm.xlu0 %2467, %v2365
  %v2469 = vpop.permute.xlu0 %2468
  %2472 = vset.pattern.permute.xlu0 0
  %2473 = vperm.xlu0 %2472, %v2366
  %v2474 = vpop.permute.xlu0 %2473
  %2477 = vset.pattern.permute.xlu0 0
  %2478 = vperm.xlu0 %2477, %v2367
  %v2479 = vpop.permute.xlu0 %2478
  %2482 = vset.pattern.permute.xlu0 0
  %2483 = vperm.xlu0 %2482, %v2368
  %v2484 = vpop.permute.xlu0 %2483
  %2487 = vset.pattern.permute.xlu0 0
  %2488 = vperm.xlu0 %2487, %v2369
  %v2489 = vpop.permute.xlu0 %2488
  %2492 = vset.pattern.permute.xlu0 0
  %2493 = vperm.xlu0 %2492, %v2370
  %v2494 = vpop.permute.xlu0 %2493
  %v2496 = vmul.f32 %v2321, %v2374
  %v2497 = vmul.f32 %v2322, %v2379
  %v2498 = vmul.f32 %v2323, %v2384
  %v2499 = vmul.f32 %v2324, %v2389
  %v2500 = vmul.f32 %v2325, %v2394
  %v2501 = vmul.f32 %v2326, %v2399
  %v2502 = vmul.f32 %v2327, %v2404
  %v2503 = vmul.f32 %v2328, %v2409
  %v2504 = vmul.f32 %v2329, %v2414
  %v2505 = vmul.f32 %v2330, %v2419
  %v2506 = vmul.f32 %v2331, %v2424
  %v2507 = vmul.f32 %v2332, %v2429
  %v2508 = vmul.f32 %v2333, %v2434
  %v2509 = vmul.f32 %v2334, %v2439
  %v2510 = vmul.f32 %v2335, %v2444
  %v2511 = vmul.f32 %v2336, %v2449
  %v2512 = vmul.f32 %v2337, %v2454
  %v2513 = vmul.f32 %v2338, %v2459
  %v2514 = vmul.f32 %v2339, %v2464
  %v2515 = vmul.f32 %v2340, %v2469
  %v2516 = vmul.f32 %v2341, %v2474
  %v2517 = vmul.f32 %v2342, %v2479
  %v2518 = vmul.f32 %v2343, %v2484
  %v2519 = vmul.f32 %v2344, %v2489
  %v2520 = vmul.f32 %v2345, %v2494
  %vm2521 = vcmask 64512
  %v2522 = vsel %vm2521, %v2496, 0.0
  %v2523 = vsel %vm2521, %v2497, 0.0
  %v2524 = vadd.f32 %v2522, %v2523
  %v2525 = vsel %vm2521, %v2498, 0.0
  %v2526 = vadd.f32 %v2524, %v2525
  %v2527 = vsel %vm2521, %v2499, 0.0
  %v2528 = vadd.f32 %v2526, %v2527
  %v2529 = vsel %vm2521, %v2500, 0.0
  %v2530 = vadd.f32 %v2528, %v2529
  %v2531 = vsel %vm2521, %v2501, 0.0
  %v2532 = vadd.f32 %v2530, %v2531
  %v2533 = vsel %vm2521, %v2502, 0.0
  %v2534 = vadd.f32 %v2532, %v2533
  %v2535 = vsel %vm2521, %v2503, 0.0
  %v2536 = vadd.f32 %v2534, %v2535
  %v2537 = vsel %vm2521, %v2504, 0.0
  %v2538 = vadd.f32 %v2536, %v2537
  %v2539 = vsel %vm2521, %v2505, 0.0
  %v2540 = vadd.f32 %v2538, %v2539
  %v2541 = vsel %vm2521, %v2506, 0.0
  %v2542 = vadd.f32 %v2540, %v2541
  %v2543 = vsel %vm2521, %v2507, 0.0
  %v2544 = vadd.f32 %v2542, %v2543
  %v2545 = vsel %vm2521, %v2508, 0.0
  %v2546 = vadd.f32 %v2544, %v2545
  %v2547 = vsel %vm2521, %v2509, 0.0
  %v2548 = vadd.f32 %v2546, %v2547
  %v2549 = vsel %vm2521, %v2510, 0.0
  %v2550 = vadd.f32 %v2548, %v2549
  %v2551 = vsel %vm2521, %v2511, 0.0
  %v2552 = vadd.f32 %v2550, %v2551
  %v2553 = vsel %vm2521, %v2512, 0.0
  %v2554 = vadd.f32 %v2552, %v2553
  %v2555 = vsel %vm2521, %v2513, 0.0
  %v2556 = vadd.f32 %v2554, %v2555
  %v2557 = vsel %vm2521, %v2514, 0.0
  %v2558 = vadd.f32 %v2556, %v2557
  %v2559 = vsel %vm2521, %v2515, 0.0
  %v2560 = vadd.f32 %v2558, %v2559
  %v2561 = vsel %vm2521, %v2516, 0.0
  %v2562 = vadd.f32 %v2560, %v2561
  %v2563 = vsel %vm2521, %v2517, 0.0
  %v2564 = vadd.f32 %v2562, %v2563
  %v2565 = vsel %vm2521, %v2518, 0.0
  %v2566 = vadd.f32 %v2564, %v2565
  %v2567 = vsel %vm2521, %v2519, 0.0
  %v2568 = vadd.f32 %v2566, %v2567
  %v2569 = vsel %vm2521, %v2520, 0.0
  %v2570 = vadd.f32 %v2568, %v2569
  %v2571 = vrot.slane %v2570, 4
  %v2572 = vadd.f32 %v2570, %v2571
  %v2573 = vrot.slane %v2572, 2
  %v2574 = vadd.f32 %v2572, %v2573
  %v2575 = vrot.slane %v2574, 1
  %v2576 = vadd.f32 %v2574, %v2575
  %v2577 = vmul.f32 %v2576, 0.0078125
  %v2578 = vsub.f32 %v2321, %v2577
  %v2579 = vsub.f32 %v2322, %v2577
  %v2580 = vsub.f32 %v2323, %v2577
  %v2581 = vsub.f32 %v2324, %v2577
  %v2582 = vsub.f32 %v2325, %v2577
  %v2583 = vsub.f32 %v2326, %v2577
  %v2584 = vsub.f32 %v2327, %v2577
  %v2585 = vsub.f32 %v2328, %v2577
  %v2586 = vsub.f32 %v2329, %v2577
  %v2587 = vsub.f32 %v2330, %v2577
  %v2588 = vsub.f32 %v2331, %v2577
  %v2589 = vsub.f32 %v2332, %v2577
  %v2590 = vsub.f32 %v2333, %v2577
  %v2591 = vsub.f32 %v2334, %v2577
  %v2592 = vsub.f32 %v2335, %v2577
  %v2593 = vsub.f32 %v2336, %v2577
  %v2594 = vsub.f32 %v2337, %v2577
  %v2595 = vsub.f32 %v2338, %v2577
  %v2596 = vsub.f32 %v2339, %v2577
  %v2597 = vsub.f32 %v2340, %v2577
  %v2598 = vsub.f32 %v2341, %v2577
  %v2599 = vsub.f32 %v2342, %v2577
  %v2600 = vsub.f32 %v2343, %v2577
  %v2601 = vsub.f32 %v2344, %v2577
  %v2602 = vsub.f32 %v2345, %v2577
  %v2603 = vmul.f32 %v2578, %v2578
  %v2604 = vmul.f32 %v2579, %v2579
  %v2605 = vmul.f32 %v2580, %v2580
  %v2606 = vmul.f32 %v2581, %v2581
  %v2607 = vmul.f32 %v2582, %v2582
  %v2608 = vmul.f32 %v2583, %v2583
  %v2609 = vmul.f32 %v2584, %v2584
  %v2610 = vmul.f32 %v2585, %v2585
  %v2611 = vmul.f32 %v2586, %v2586
  %v2612 = vmul.f32 %v2587, %v2587
  %v2613 = vmul.f32 %v2588, %v2588
  %v2614 = vmul.f32 %v2589, %v2589
  %v2615 = vmul.f32 %v2590, %v2590
  %v2616 = vmul.f32 %v2591, %v2591
  %v2617 = vmul.f32 %v2592, %v2592
  %v2618 = vmul.f32 %v2593, %v2593
  %v2619 = vmul.f32 %v2594, %v2594
  %v2620 = vmul.f32 %v2595, %v2595
  %v2621 = vmul.f32 %v2596, %v2596
  %v2622 = vmul.f32 %v2597, %v2597
  %v2623 = vmul.f32 %v2598, %v2598
  %v2624 = vmul.f32 %v2599, %v2599
  %v2625 = vmul.f32 %v2600, %v2600
  %v2626 = vmul.f32 %v2601, %v2601
  %v2627 = vmul.f32 %v2602, %v2602
  %v2628 = vmul.f32 %v2603, %v2374
  %v2629 = vmul.f32 %v2604, %v2379
  %v2630 = vmul.f32 %v2605, %v2384
  %v2631 = vmul.f32 %v2606, %v2389
  %v2632 = vmul.f32 %v2607, %v2394
  %v2633 = vmul.f32 %v2608, %v2399
  %v2634 = vmul.f32 %v2609, %v2404
  %v2635 = vmul.f32 %v2610, %v2409
  %v2636 = vmul.f32 %v2611, %v2414
  %v2637 = vmul.f32 %v2612, %v2419
  %v2638 = vmul.f32 %v2613, %v2424
  %v2639 = vmul.f32 %v2614, %v2429
  %v2640 = vmul.f32 %v2615, %v2434
  %v2641 = vmul.f32 %v2616, %v2439
  %v2642 = vmul.f32 %v2617, %v2444
  %v2643 = vmul.f32 %v2618, %v2449
  %v2644 = vmul.f32 %v2619, %v2454
  %v2645 = vmul.f32 %v2620, %v2459
  %v2646 = vmul.f32 %v2621, %v2464
  %v2647 = vmul.f32 %v2622, %v2469
  %v2648 = vmul.f32 %v2623, %v2474
  %v2649 = vmul.f32 %v2624, %v2479
  %v2650 = vmul.f32 %v2625, %v2484
  %v2651 = vmul.f32 %v2626, %v2489
  %v2652 = vmul.f32 %v2627, %v2494
  %v2653 = vsel %vm2521, %v2628, 0.0
  %v2654 = vsel %vm2521, %v2629, 0.0
  %v2655 = vadd.f32 %v2653, %v2654
  %v2656 = vsel %vm2521, %v2630, 0.0
  %v2657 = vadd.f32 %v2655, %v2656
  %v2658 = vsel %vm2521, %v2631, 0.0
  %v2659 = vadd.f32 %v2657, %v2658
  %v2660 = vsel %vm2521, %v2632, 0.0
  %v2661 = vadd.f32 %v2659, %v2660
  %v2662 = vsel %vm2521, %v2633, 0.0
  %v2663 = vadd.f32 %v2661, %v2662
  %v2664 = vsel %vm2521, %v2634, 0.0
  %v2665 = vadd.f32 %v2663, %v2664
  %v2666 = vsel %vm2521, %v2635, 0.0
  %v2667 = vadd.f32 %v2665, %v2666
  %v2668 = vsel %vm2521, %v2636, 0.0
  %v2669 = vadd.f32 %v2667, %v2668
  %v2670 = vsel %vm2521, %v2637, 0.0
  %v2671 = vadd.f32 %v2669, %v2670
  %v2672 = vsel %vm2521, %v2638, 0.0
  %v2673 = vadd.f32 %v2671, %v2672
  %v2674 = vsel %vm2521, %v2639, 0.0
  %v2675 = vadd.f32 %v2673, %v2674
  %v2676 = vsel %vm2521, %v2640, 0.0
  %v2677 = vadd.f32 %v2675, %v2676
  %v2678 = vsel %vm2521, %v2641, 0.0
  %v2679 = vadd.f32 %v2677, %v2678
  %v2680 = vsel %vm2521, %v2642, 0.0
  %v2681 = vadd.f32 %v2679, %v2680
  %v2682 = vsel %vm2521, %v2643, 0.0
  %v2683 = vadd.f32 %v2681, %v2682
  %v2684 = vsel %vm2521, %v2644, 0.0
  %v2685 = vadd.f32 %v2683, %v2684
  %v2686 = vsel %vm2521, %v2645, 0.0
  %v2687 = vadd.f32 %v2685, %v2686
  %v2688 = vsel %vm2521, %v2646, 0.0
  %v2689 = vadd.f32 %v2687, %v2688
  %v2690 = vsel %vm2521, %v2647, 0.0
  %v2691 = vadd.f32 %v2689, %v2690
  %v2692 = vsel %vm2521, %v2648, 0.0
  %v2693 = vadd.f32 %v2691, %v2692
  %v2694 = vsel %vm2521, %v2649, 0.0
  %v2695 = vadd.f32 %v2693, %v2694
  %v2696 = vsel %vm2521, %v2650, 0.0
  %v2697 = vadd.f32 %v2695, %v2696
  %v2698 = vsel %vm2521, %v2651, 0.0
  %v2699 = vadd.f32 %v2697, %v2698
  %v2700 = vsel %vm2521, %v2652, 0.0
  %v2701 = vadd.f32 %v2699, %v2700
  %v2702 = vrot.slane %v2701, 4
  %v2703 = vadd.f32 %v2701, %v2702
  %v2704 = vrot.slane %v2703, 2
  %v2705 = vadd.f32 %v2703, %v2704
  %v2706 = vrot.slane %v2705, 1
  %v2707 = vadd.f32 %v2705, %v2706
  %v2708 = vmul.f32 %v2707, 0.0078125
  %v2709 = vld [vmem:[%s3] sm:$0x1]
  %v2710 = vadd.f32 %v2708, 1e-05
  %v2711 = vrsqrt.pop %v2710
  %v2712 = vmul.f32 %v2709, %v2711
  %v2714 = vlaneseq
  %v2715 = vshrl.u32 %v2714, 7
  %v2716 = vsub.s32 0, %v2715
  %v2717 = vrot.slane %v2712, %v2716
  %v2719 = vmul.f32 %v2578, %v2717
  %v2720 = vmul.f32 %v2579, %v2717
  %v2721 = vmul.f32 %v2580, %v2717
  %v2722 = vmul.f32 %v2581, %v2717
  %v2723 = vmul.f32 %v2582, %v2717
  %v2724 = vmul.f32 %v2583, %v2717
  %v2725 = vmul.f32 %v2584, %v2717
  %v2726 = vmul.f32 %v2585, %v2717
  %v2727 = vmul.f32 %v2586, %v2717
  %v2728 = vmul.f32 %v2587, %v2717
  %v2729 = vmul.f32 %v2588, %v2717
  %v2730 = vmul.f32 %v2589, %v2717
  %v2731 = vmul.f32 %v2590, %v2717
  %v2732 = vmul.f32 %v2591, %v2717
  %v2733 = vmul.f32 %v2592, %v2717
  %v2734 = vmul.f32 %v2593, %v2717
  %v2735 = vmul.f32 %v2594, %v2717
  %v2736 = vmul.f32 %v2595, %v2717
  %v2737 = vmul.f32 %v2596, %v2717
  %v2738 = vmul.f32 %v2597, %v2717
  %v2739 = vmul.f32 %v2598, %v2717
  %v2740 = vmul.f32 %v2599, %v2717
  %v2741 = vmul.f32 %v2600, %v2717
  %v2742 = vmul.f32 %v2601, %v2717
  %v2743 = vmul.f32 %v2602, %v2717
  %v2744 = vld [vmem:[%s4] sm:$0x1]
  %v2746 = vlaneseq
  %v2747 = vshrl.u32 %v2746, 7
  %v2748 = vsub.s32 0, %v2747
  %v2749 = vrot.slane %v2744, %v2748
  %v2751 = vadd.f32 %v2719, %v2749
  %v2752 = vadd.f32 %v2720, %v2749
  %v2753 = vadd.f32 %v2721, %v2749
  %v2754 = vadd.f32 %v2722, %v2749
  %v2755 = vadd.f32 %v2723, %v2749
  %v2756 = vadd.f32 %v2724, %v2749
  %v2757 = vadd.f32 %v2725, %v2749
  %v2758 = vadd.f32 %v2726, %v2749
  %v2759 = vadd.f32 %v2727, %v2749
  %v2760 = vadd.f32 %v2728, %v2749
  %v2761 = vadd.f32 %v2729, %v2749
  %v2762 = vadd.f32 %v2730, %v2749
  %v2763 = vadd.f32 %v2731, %v2749
  %v2764 = vadd.f32 %v2732, %v2749
  %v2765 = vadd.f32 %v2733, %v2749
  %v2766 = vadd.f32 %v2734, %v2749
  %v2767 = vadd.f32 %v2735, %v2749
  %v2768 = vadd.f32 %v2736, %v2749
  %v2769 = vadd.f32 %v2737, %v2749
  %v2770 = vadd.f32 %v2738, %v2749
  %v2771 = vadd.f32 %v2739, %v2749
  %v2772 = vadd.f32 %v2740, %v2749
  %v2773 = vadd.f32 %v2741, %v2749
  %v2774 = vadd.f32 %v2742, %v2749
  %v2775 = vadd.f32 %v2743, %v2749
  %v2776 = vmax.f32 %v2751, 0.0
  %v2777 = vmax.f32 %v2752, 0.0
  %v2778 = vmax.f32 %v2753, 0.0
  %v2779 = vmax.f32 %v2754, 0.0
  %v2780 = vmax.f32 %v2755, 0.0
  %v2781 = vmax.f32 %v2756, 0.0
  %v2782 = vmax.f32 %v2757, 0.0
  %v2783 = vmax.f32 %v2758, 0.0
  %v2784 = vmax.f32 %v2759, 0.0
  %v2785 = vmax.f32 %v2760, 0.0
  %v2786 = vmax.f32 %v2761, 0.0
  %v2787 = vmax.f32 %v2762, 0.0
  %v2788 = vmax.f32 %v2763, 0.0
  %v2789 = vmax.f32 %v2764, 0.0
  %v2790 = vmax.f32 %v2765, 0.0
  %v2791 = vmax.f32 %v2766, 0.0
  %v2792 = vmax.f32 %v2767, 0.0
  %v2793 = vmax.f32 %v2768, 0.0
  %v2794 = vmax.f32 %v2769, 0.0
  %v2795 = vmax.f32 %v2770, 0.0
  %v2796 = vmax.f32 %v2771, 0.0
  %v2797 = vmax.f32 %v2772, 0.0
  %v2798 = vmax.f32 %v2773, 0.0
  %v2799 = vmax.f32 %v2774, 0.0
  %v2800 = vmax.f32 %v2775, 0.0
  %v2801 = vpack.c.bf16 %v2777, %v2776
  %v2802 = vpack.c.bf16 %v2779, %v2778
  %v2803 = vpack.c.bf16 %v2781, %v2780
  %v2804 = vpack.c.bf16 %v2783, %v2782
  %v2805 = vpack.c.bf16 %v2785, %v2784
  %v2806 = vpack.c.bf16 %v2787, %v2786
  %v2807 = vpack.c.bf16 %v2789, %v2788
  %v2808 = vpack.c.bf16 %v2791, %v2790
  %v2809 = vpack.c.bf16 %v2793, %v2792
  %v2810 = vpack.c.bf16 %v2795, %v2794
  %v2811 = vpack.c.bf16 %v2797, %v2796
  %v2812 = vpack.c.bf16 %v2799, %v2798
  %v2813 = vpack.c.bf16 %v2800, %v2800
  %v2827 = vunpack.c.l.b16 %v2801
  %v2828 = vunpack.c.h.b16 %v2801
  %v2829 = vunpack.c.l.b16 %v2802
  %v2830 = vunpack.c.h.b16 %v2802
  %v2831 = vunpack.c.l.b16 %v2803
  %v2832 = vunpack.c.h.b16 %v2803
  %v2833 = vunpack.c.l.b16 %v2804
  %v2834 = vunpack.c.h.b16 %v2804
  %v2835 = vunpack.c.l.b16 %v2805
  %v2836 = vunpack.c.h.b16 %v2805
  %v2837 = vunpack.c.l.b16 %v2806
  %v2838 = vunpack.c.h.b16 %v2806
  %v2839 = vunpack.c.l.b16 %v2807
  %v2840 = vunpack.c.h.b16 %v2807
  %v2841 = vunpack.c.l.b16 %v2808
  %v2842 = vunpack.c.h.b16 %v2808
  %v2843 = vunpack.c.l.b16 %v2809
  %v2844 = vunpack.c.h.b16 %v2809
  %v2845 = vunpack.c.l.b16 %v2810
  %v2846 = vunpack.c.h.b16 %v2810
  %v2847 = vunpack.c.l.b16 %v2811
  %v2848 = vunpack.c.h.b16 %v2811
  %v2849 = vunpack.c.l.b16 %v2812
  %v2850 = vunpack.c.h.b16 %v2812
  %v2851 = vunpack.c.l.b16 %v2813
  %v2852 = vpack.c.b16 %v2827, %v2827
  %v2853 = vpack.c.b16 %v2828, %v2828
  %v2854 = vpack.c.b16 %v2829, %v2829
  %v2855 = vpack.c.b16 %v2830, %v2830
  %v2856 = vpack.c.b16 %v2831, %v2831
  %v2857 = vpack.c.b16 %v2832, %v2832
  %v2858 = vpack.c.b16 %v2833, %v2833
  %v2859 = vpack.c.b16 %v2834, %v2834
  %v2860 = vpack.c.b16 %v2835, %v2835
  %v2861 = vpack.c.b16 %v2836, %v2836
  %v2862 = vpack.c.b16 %v2837, %v2837
  %v2863 = vpack.c.b16 %v2838, %v2838
  %v2864 = vpack.c.b16 %v2839, %v2839
  %v2865 = vpack.c.b16 %v2840, %v2840
  %v2866 = vpack.c.b16 %v2841, %v2841
  %v2867 = vpack.c.b16 %v2842, %v2842
  %v2868 = vpack.c.b16 %v2843, %v2843
  %v2869 = vpack.c.b16 %v2844, %v2844
  %v2870 = vpack.c.b16 %v2845, %v2845
  %v2871 = vpack.c.b16 %v2846, %v2846
  %v2872 = vpack.c.b16 %v2847, %v2847
  %v2873 = vpack.c.b16 %v2848, %v2848
  %v2874 = vpack.c.b16 %v2849, %v2849
  %v2875 = vpack.c.b16 %v2850, %v2850
  %v2876 = vpack.c.b16 %v2851, %v2851
  %vm2902 = vcmask 60416
  %2903 = vst.msk [vmem:[%s5] sm:$0xf] %vm2902, %v2852
  %2904 = vst.msk [vmem:[%s5 + $0x4] sm:$0xf] %vm2902, %v2853
  %2905 = vst.msk [vmem:[%s5 + $0x8] sm:$0xf] %vm2902, %v2854
  %2906 = vst.msk [vmem:[%s5 + $0xc] sm:$0xf] %vm2902, %v2855
  %2907 = vst.msk [vmem:[%s5 + $0x10] sm:$0xf] %vm2902, %v2856
  %2908 = vst.msk [vmem:[%s5 + $0x14] sm:$0xf] %vm2902, %v2857
  %2909 = vst.msk [vmem:[%s5 + $0x18] sm:$0xf] %vm2902, %v2858
  %2910 = vst.msk [vmem:[%s5 + $0x1c] sm:$0xf] %vm2902, %v2859
  %2911 = vst.msk [vmem:[%s5 + $0x20] sm:$0xf] %vm2902, %v2860
  %2912 = vst.msk [vmem:[%s5 + $0x24] sm:$0xf] %vm2902, %v2861
  %2913 = vst.msk [vmem:[%s5 + $0x28] sm:$0xf] %vm2902, %v2862
  %2914 = vst.msk [vmem:[%s5 + $0x2c] sm:$0xf] %vm2902, %v2863
  %2915 = vst.msk [vmem:[%s5 + $0x30] sm:$0xf] %vm2902, %v2864
  %2916 = vst.msk [vmem:[%s5 + $0x34] sm:$0xf] %vm2902, %v2865
  %2917 = vst.msk [vmem:[%s5 + $0x38] sm:$0xf] %vm2902, %v2866
  %2918 = vst.msk [vmem:[%s5 + $0x3c] sm:$0xf] %vm2902, %v2867
  %2919 = vst.msk [vmem:[%s5 + $0x40] sm:$0xf] %vm2902, %v2868
  %2920 = vst.msk [vmem:[%s5 + $0x44] sm:$0xf] %vm2902, %v2869
  %2921 = vst.msk [vmem:[%s5 + $0x48] sm:$0xf] %vm2902, %v2870
  %2922 = vst.msk [vmem:[%s5 + $0x4c] sm:$0xf] %vm2902, %v2871
  %2923 = vst.msk [vmem:[%s5 + $0x50] sm:$0xf] %vm2902, %v2872
  %2924 = vst.msk [vmem:[%s5 + $0x54] sm:$0xf] %vm2902, %v2873
  %2925 = vst.msk [vmem:[%s5 + $0x58] sm:$0xf] %vm2902, %v2874
  %2926 = vst.msk [vmem:[%s5 + $0x5c] sm:$0xf] %vm2902, %v2875
  %2927 = vst.msk [vmem:[%s5 + $0x60] sm:$0xf] %vm2902, %v2876
  // Predicated region
  $region22: #{conv_encoder_forward.3} parent=0 // pred_check
    _
  $region23: #{conv_encoder_forward.3} parent=0 // pred_check_branch
    %2929 = sbr.rel (0) target = $region25
  $region24: #{conv_encoder_forward.3} parent=0 // pred_region
    _
  $region25: #{conv_encoder_forward.3} parent=0 // pred_fallthru
    _
  // Predicated region
  $region26: #{conv_encoder_forward.3} parent=0 // pred_check
    _
  $region27: #{conv_encoder_forward.3} parent=0 // pred_check_branch
    %2931 = sbr.rel (0) target = $region29
  $region28: #{conv_encoder_forward.3} parent=0 // pred_region
    _
  $region29: #{conv_encoder_forward.3} parent=0 // pred_fallthru
    _

// kernel: conv_encoder_forward.4
$region0: #{conv_encoder_forward.4}
  #allocation0 [shape = 'u32[]', space=smem, size = 0x4, offset = 0x4, fixed_abs, tag = 'smem constant byte address 0x4 - core index']
  #allocation1 [shape = 'u32[144,128]{1,0:T(1,128)}', space=vmem, size = 0x12000, scoped, tag = 'internal scratch']
  %s0 = inlined_call_operand.vmem [shape: f32[86,128], index: 0, kind: input, shape index: {}]
  %s1 = inlined_call_operand.vmem [shape: bf16[9,128,16], index: 1, kind: input, shape index: {}]
  %s2 = inlined_call_operand.vmem [shape: f32[72,1], index: 2, kind: input, shape index: {}]
  %s3 = inlined_call_operand.vmem [shape: f32[1,16], index: 3, kind: input, shape index: {}]
  %s4 = inlined_call_operand.vmem [shape: f32[1,16], index: 4, kind: input, shape index: {}]
  %s5 = inlined_call_operand.vmem [shape: bf16[72,16], index: 5, kind: output, shape index: {}]
  %s6 = sld [smem:[#allocation0]]
  $region30: #{conv_encoder_forward.4} parent=0
    _
  %s8 = ssub.s32 1, %s6
  %s9 = scalar_select 0, %s8, %s6
  // Predicated region
  $region2: #{conv_encoder_forward.4} parent=0 // pred_check
    _
  $region3: #{conv_encoder_forward.4} parent=0 // pred_check_branch
    %11 = sbr.rel (0) target = $region5
  $region4: #{conv_encoder_forward.4} parent=0 // pred_region
    _
  $region5: #{conv_encoder_forward.4} parent=0 // pred_fallthru
    _
  // Predicated region
  $region6: #{conv_encoder_forward.4} parent=0 // pred_check
    _
  $region7: #{conv_encoder_forward.4} parent=0 // pred_check_branch
    %13 = sbr.rel (0) target = $region9
  $region8: #{conv_encoder_forward.4} parent=0 // pred_region
    _
  $region9: #{conv_encoder_forward.4} parent=0 // pred_fallthru
    _
  // Predicated region
  $region10: #{conv_encoder_forward.4} parent=0 // pred_check
    _
  $region11: #{conv_encoder_forward.4} parent=0 // pred_check_branch
    %15 = sbr.rel (0) target = $region13
  $region12: #{conv_encoder_forward.4} parent=0 // pred_region
    _
  $region13: #{conv_encoder_forward.4} parent=0 // pred_fallthru
    _
  // Predicated region
  $region14: #{conv_encoder_forward.4} parent=0 // pred_check
    _
  $region15: #{conv_encoder_forward.4} parent=0 // pred_check_branch
    %17 = sbr.rel (0) target = $region17
  $region16: #{conv_encoder_forward.4} parent=0 // pred_region
    _
  $region17: #{conv_encoder_forward.4} parent=0 // pred_fallthru
    _
  // Predicated region
  $region18: #{conv_encoder_forward.4} parent=0 // pred_check
    _
  $region19: #{conv_encoder_forward.4} parent=0 // pred_check_branch
    %19 = sbr.rel (0) target = $region21
  $region20: #{conv_encoder_forward.4} parent=0 // pred_region
    _
  $region21: #{conv_encoder_forward.4} parent=0 // pred_fallthru
    _
  %v21 = vld [vmem:[%s0] sm:$0xff]
  %v22 = vld [vmem:[%s0 + $0x8] sm:$0xff]
  %v23 = vld [vmem:[%s0 + $0x10] sm:$0xff]
  %v24 = vld [vmem:[%s0 + $0x18] sm:$0xff]
  %v25 = vld [vmem:[%s0 + $0x20] sm:$0xff]
  %v26 = vld [vmem:[%s0 + $0x28] sm:$0xff]
  %v27 = vld [vmem:[%s0 + $0x30] sm:$0xff]
  %v28 = vld [vmem:[%s0 + $0x38] sm:$0xff]
  %v29 = vld [vmem:[%s0 + $0x40] sm:$0xff]
  %v30 = vpack.c.bf16 %v22, %v21
  %v31 = vpack.c.bf16 %v24, %v23
  %v32 = vpack.c.bf16 %v26, %v25
  %v33 = vpack.c.bf16 %v28, %v27
  %v34 = vpack.c.bf16 %v29, %v29
  %v35 = vld [vmem:[%s1] sm:$0xf]
  %v36 = vld [vmem:[%s1 + $0x4] sm:$0xf]
  %v37 = vld [vmem:[%s1 + $0x8] sm:$0xf]
  %v38 = vld [vmem:[%s1 + $0xc] sm:$0xf]
  %v39 = vld [vmem:[%s1 + $0x10] sm:$0xf]
  %v40 = vld [vmem:[%s1 + $0x14] sm:$0xf]
  %v41 = vld [vmem:[%s1 + $0x18] sm:$0xf]
  %v42 = vld [vmem:[%s1 + $0x1c] sm:$0xf]
  %v43 = vld [vmem:[%s1 + $0x20] sm:$0xf]
  %v44 = vld [vmem:[%s1 + $0x24] sm:$0xf]
  %v45 = vld [vmem:[%s1 + $0x28] sm:$0xf]
  %v46 = vld [vmem:[%s1 + $0x2c] sm:$0xf]
  %v47 = vld [vmem:[%s1 + $0x30] sm:$0xf]
  %v48 = vld [vmem:[%s1 + $0x34] sm:$0xf]
  %v49 = vld [vmem:[%s1 + $0x38] sm:$0xf]
  %v50 = vld [vmem:[%s1 + $0x3c] sm:$0xf]
  %v51 = vld [vmem:[%s0 + $0x1] sm:$0xff]
  %v52 = vld [vmem:[%s0 + $0x9] sm:$0xff]
  %v53 = vld [vmem:[%s0 + $0x11] sm:$0xff]
  %v54 = vld [vmem:[%s0 + $0x19] sm:$0xff]
  %v55 = vld [vmem:[%s0 + $0x21] sm:$0xff]
  %v56 = vld [vmem:[%s0 + $0x29] sm:$0xff]
  %v57 = vld [vmem:[%s0 + $0x31] sm:$0xff]
  %v58 = vld [vmem:[%s0 + $0x39] sm:$0xff]
  %v59 = vld [vmem:[%s0 + $0x41] sm:$0xff]
  %v60 = vpack.c.bf16 %v52, %v51
  %v61 = vpack.c.bf16 %v54, %v53
  %v62 = vpack.c.bf16 %v56, %v55
  %v63 = vpack.c.bf16 %v58, %v57
  %v64 = vpack.c.bf16 %v59, %v59
  %s65 = scalar_lea.vmem %s1, 64
  %v66 = vld [vmem:[%s65] sm:$0xf]
  %v67 = vld [vmem:[%s65 + $0x4] sm:$0xf]
  %v68 = vld [vmem:[%s65 + $0x8] sm:$0xf]
  %v69 = vld [vmem:[%s65 + $0xc] sm:$0xf]
  %v70 = vld [vmem:[%s65 + $0x10] sm:$0xf]
  %v71 = vld [vmem:[%s65 + $0x14] sm:$0xf]
  %v72 = vld [vmem:[%s65 + $0x18] sm:$0xf]
  %v73 = vld [vmem:[%s65 + $0x1c] sm:$0xf]
  %v74 = vld [vmem:[%s65 + $0x20] sm:$0xf]
  %v75 = vld [vmem:[%s65 + $0x24] sm:$0xf]
  %v76 = vld [vmem:[%s65 + $0x28] sm:$0xf]
  %v77 = vld [vmem:[%s65 + $0x2c] sm:$0xf]
  %v78 = vld [vmem:[%s65 + $0x30] sm:$0xf]
  %v79 = vld [vmem:[%s65 + $0x34] sm:$0xf]
  %v80 = vld [vmem:[%s65 + $0x38] sm:$0xf]
  %v81 = vld [vmem:[%s65 + $0x3c] sm:$0xf]
  %v98 = vunpack.c.l.b16 %v66
  %v99 = vunpack.c.l.b16 %v67
  %v100 = vunpack.c.l.b16 %v68
  %v101 = vunpack.c.l.b16 %v69
  %v102 = vunpack.c.l.b16 %v70
  %v103 = vunpack.c.l.b16 %v71
  %v104 = vunpack.c.l.b16 %v72
  %v105 = vunpack.c.l.b16 %v73
  %v106 = vunpack.c.l.b16 %v74
  %v107 = vunpack.c.l.b16 %v75
  %v108 = vunpack.c.l.b16 %v76
  %v109 = vunpack.c.l.b16 %v77
  %v110 = vunpack.c.l.b16 %v78
  %v111 = vunpack.c.l.b16 %v79
  %v112 = vunpack.c.l.b16 %v80
  %v113 = vunpack.c.l.b16 %v81
  %v114 = vpack.c.b16 %v99, %v98
  %v115 = vpack.c.b16 %v101, %v100
  %v116 = vpack.c.b16 %v103, %v102
  %v117 = vpack.c.b16 %v105, %v104
  %v118 = vpack.c.b16 %v107, %v106
  %v119 = vpack.c.b16 %v109, %v108
  %v120 = vpack.c.b16 %v111, %v110
  %v121 = vpack.c.b16 %v113, %v112
  %130 = vmatprep.subr.bf16.mxu0 0
  %131 = vmatpush1.bf16.msra.mxu0 %v121
  %132 = vmatprep.subr.bf16.mxu0 0
  %133 = vmatpush1.bf16.msra.mxu0 %v120
  %134 = vmatprep.subr.bf16.mxu0 0
  %135 = vmatpush1.bf16.msra.mxu0 %v119
  %136 = vmatprep.subr.bf16.mxu0 0
  %137 = vmatpush1.bf16.msra.mxu0 %v118
  %138 = vmatprep.subr.bf16.mxu0 0
  %139 = vmatpush1.bf16.msra.mxu0 %v117
  %140 = vmatprep.subr.bf16.mxu0 0
  %141 = vmatpush1.bf16.msra.mxu0 %v116
  %142 = vmatprep.subr.bf16.mxu0 0
  %143 = vmatpush1.bf16.msra.mxu0 %v115
  %144 = vmatprep.subr.bf16.mxu0 0
  %145 = vmatpush1.bf16.msra.mxu0 %v114
  %146 = vmatprep.subr.bf16.mxu0 0
  %147 = vmatpush2.bf16.msra.mxu0 0
  %148 = vmatprep.subr.bf16.mxu0 0
  %149 = vmatpush2.bf16.msra.mxu0 0
  %150 = vmatprep.subr.bf16.mxu0 0
  %151 = vmatpush2.bf16.msra.mxu0 0
  %152 = vmatprep.subr.bf16.mxu0 0
  %153 = vmatpush2.bf16.msra.mxu0 0
  %154 = vmatprep.subr.bf16.mxu0 0
  %155 = vmatpush2.bf16.msra.mxu0 0
  %156 = vmatprep.subr.bf16.mxu0 0
  %157 = vmatpush2.bf16.msra.mxu0 0
  %158 = vmatprep.subr.bf16.mxu0 0
  %159 = vmatpush2.bf16.msra.mxu0 0
  %160 = vmatprep.subr.bf16.mxu0 0
  %161 = vmatpush2.bf16.msra.mxu0 0
  %162 = vmatprep.mubr.bf16.mxu0 0
  %163 = vmatmul.mubr.bf16.gmra.mxu0 %v60
  %v164 = vpop.f32.mrf.mxu0
  %v165 = vadd.f32 0.0, %v164
  %v166 = vpop.f32.mrf.mxu0
  %v167 = vpop.f32.mrf.mxu0
  %v168 = vadd.f32 0.0, %v167
  %v169 = vpop.f32.mrf.mxu0
  %170 = vmatprep.mubr.bf16.mxu0 0
  %171 = vmatmul.mubr.bf16.gmra.mxu0 %v61
  %v172 = vpop.f32.mrf.mxu0
  %v173 = vadd.f32 0.0, %v172
  %v174 = vpop.f32.mrf.mxu0
  %v175 = vpop.f32.mrf.mxu0
  %v176 = vadd.f32 0.0, %v175
  %v177 = vpop.f32.mrf.mxu0
  %178 = vmatprep.mubr.bf16.mxu0 0
  %179 = vmatmul.mubr.bf16.gmra.mxu0 %v62
  %v180 = vpop.f32.mrf.mxu0
  %v181 = vadd.f32 0.0, %v180
  %v182 = vpop.f32.mrf.mxu0
  %v183 = vpop.f32.mrf.mxu0
  %v184 = vadd.f32 0.0, %v183
  %v185 = vpop.f32.mrf.mxu0
  %186 = vmatprep.mubr.bf16.mxu0 0
  %187 = vmatmul.mubr.bf16.gmra.mxu0 %v63
  %v188 = vpop.f32.mrf.mxu0
  %v189 = vadd.f32 0.0, %v188
  %v190 = vpop.f32.mrf.mxu0
  %v191 = vpop.f32.mrf.mxu0
  %v192 = vadd.f32 0.0, %v191
  %v193 = vpop.f32.mrf.mxu0
  %194 = vmatprep.mubr.bf16.mxu0 0
  %195 = vmatmul.mubr.bf16.gmra.mxu0 %v64
  %v196 = vpop.f32.mrf.mxu0
  %v197 = vadd.f32 0.0, %v196
  %v198 = vpop.f32.mrf.mxu0
  %v199 = vpop.f32.mrf.mxu0
  %v200 = vpop.f32.mrf.mxu0
  %201 = vdwg.mxu0
  %v218 = vunpack.c.l.b16 %v35
  %v219 = vunpack.c.l.b16 %v36
  %v220 = vunpack.c.l.b16 %v37
  %v221 = vunpack.c.l.b16 %v38
  %v222 = vunpack.c.l.b16 %v39
  %v223 = vunpack.c.l.b16 %v40
  %v224 = vunpack.c.l.b16 %v41
  %v225 = vunpack.c.l.b16 %v42
  %v226 = vunpack.c.l.b16 %v43
  %v227 = vunpack.c.l.b16 %v44
  %v228 = vunpack.c.l.b16 %v45
  %v229 = vunpack.c.l.b16 %v46
  %v230 = vunpack.c.l.b16 %v47
  %v231 = vunpack.c.l.b16 %v48
  %v232 = vunpack.c.l.b16 %v49
  %v233 = vunpack.c.l.b16 %v50
  %v234 = vpack.c.b16 %v219, %v218
  %v235 = vpack.c.b16 %v221, %v220
  %v236 = vpack.c.b16 %v223, %v222
  %v237 = vpack.c.b16 %v225, %v224
  %v238 = vpack.c.b16 %v227, %v226
  %v239 = vpack.c.b16 %v229, %v228
  %v240 = vpack.c.b16 %v231, %v230
  %v241 = vpack.c.b16 %v233, %v232
  %250 = vmatprep.subr.bf16.mxu0 0
  %251 = vmatpush1.bf16.msra.mxu0 %v241
  %252 = vmatprep.subr.bf16.mxu0 0
  %253 = vmatpush1.bf16.msra.mxu0 %v240
  %254 = vmatprep.subr.bf16.mxu0 0
  %255 = vmatpush1.bf16.msra.mxu0 %v239
  %256 = vmatprep.subr.bf16.mxu0 0
  %257 = vmatpush1.bf16.msra.mxu0 %v238
  %258 = vmatprep.subr.bf16.mxu0 0
  %259 = vmatpush1.bf16.msra.mxu0 %v237
  %260 = vmatprep.subr.bf16.mxu0 0
  %261 = vmatpush1.bf16.msra.mxu0 %v236
  %262 = vmatprep.subr.bf16.mxu0 0
  %263 = vmatpush1.bf16.msra.mxu0 %v235
  %264 = vmatprep.subr.bf16.mxu0 0
  %265 = vmatpush1.bf16.msra.mxu0 %v234
  %266 = vmatprep.subr.bf16.mxu0 0
  %267 = vmatpush2.bf16.msra.mxu0 0
  %268 = vmatprep.subr.bf16.mxu0 0
  %269 = vmatpush2.bf16.msra.mxu0 0
  %270 = vmatprep.subr.bf16.mxu0 0
  %271 = vmatpush2.bf16.msra.mxu0 0
  %272 = vmatprep.subr.bf16.mxu0 0
  %273 = vmatpush2.bf16.msra.mxu0 0
  %274 = vmatprep.subr.bf16.mxu0 0
  %275 = vmatpush2.bf16.msra.mxu0 0
  %276 = vmatprep.subr.bf16.mxu0 0
  %277 = vmatpush2.bf16.msra.mxu0 0
  %278 = vmatprep.subr.bf16.mxu0 0
  %279 = vmatpush2.bf16.msra.mxu0 0
  %280 = vmatprep.subr.bf16.mxu0 0
  %281 = vmatpush2.bf16.msra.mxu0 0
  %282 = vmatprep.mubr.bf16.mxu0 0
  %283 = vmatmul.mubr.bf16.gmra.mxu0 %v30
  %v284 = vpop.f32.mrf.mxu0
  %v285 = vadd.f32 %v165, %v284
  %v286 = vpop.f32.mrf.mxu0
  %v287 = vpop.f32.mrf.mxu0
  %v288 = vadd.f32 %v168, %v287
  %v289 = vpop.f32.mrf.mxu0
  %290 = vmatprep.mubr.bf16.mxu0 0
  %291 = vmatmul.mubr.bf16.gmra.mxu0 %v31
  %v292 = vpop.f32.mrf.mxu0
  %v293 = vadd.f32 %v173, %v292
  %v294 = vpop.f32.mrf.mxu0
  %v295 = vpop.f32.mrf.mxu0
  %v296 = vadd.f32 %v176, %v295
  %v297 = vpop.f32.mrf.mxu0
  %298 = vmatprep.mubr.bf16.mxu0 0
  %299 = vmatmul.mubr.bf16.gmra.mxu0 %v32
  %v300 = vpop.f32.mrf.mxu0
  %v301 = vadd.f32 %v181, %v300
  %v302 = vpop.f32.mrf.mxu0
  %v303 = vpop.f32.mrf.mxu0
  %v304 = vadd.f32 %v184, %v303
  %v305 = vpop.f32.mrf.mxu0
  %306 = vmatprep.mubr.bf16.mxu0 0
  %307 = vmatmul.mubr.bf16.gmra.mxu0 %v33
  %v308 = vpop.f32.mrf.mxu0
  %v309 = vadd.f32 %v189, %v308
  %v310 = vpop.f32.mrf.mxu0
  %v311 = vpop.f32.mrf.mxu0
  %v312 = vadd.f32 %v192, %v311
  %v313 = vpop.f32.mrf.mxu0
  %314 = vmatprep.mubr.bf16.mxu0 0
  %315 = vmatmul.mubr.bf16.gmra.mxu0 %v34
  %v316 = vpop.f32.mrf.mxu0
  %v317 = vadd.f32 %v197, %v316
  %v318 = vpop.f32.mrf.mxu0
  %v319 = vpop.f32.mrf.mxu0
  %v320 = vpop.f32.mrf.mxu0
  %321 = vdwg.mxu0
  %v322 = vld [vmem:[%s0 + $0x2] sm:$0xff]
  %v323 = vld [vmem:[%s0 + $0xa] sm:$0xff]
  %v324 = vld [vmem:[%s0 + $0x12] sm:$0xff]
  %v325 = vld [vmem:[%s0 + $0x1a] sm:$0xff]
  %v326 = vld [vmem:[%s0 + $0x22] sm:$0xff]
  %v327 = vld [vmem:[%s0 + $0x2a] sm:$0xff]
  %v328 = vld [vmem:[%s0 + $0x32] sm:$0xff]
  %v329 = vld [vmem:[%s0 + $0x3a] sm:$0xff]
  %v330 = vld [vmem:[%s0 + $0x42] sm:$0xff]
  %v331 = vpack.c.bf16 %v323, %v322
  %v332 = vpack.c.bf16 %v325, %v324
  %v333 = vpack.c.bf16 %v327, %v326
  %v334 = vpack.c.bf16 %v329, %v328
  %v335 = vpack.c.bf16 %v330, %v330
  %s336 = scalar_lea.vmem %s1, 128
  %v337 = vld [vmem:[%s336] sm:$0xf]
  %v338 = vld [vmem:[%s336 + $0x4] sm:$0xf]
  %v339 = vld [vmem:[%s336 + $0x8] sm:$0xf]
  %v340 = vld [vmem:[%s336 + $0xc] sm:$0xf]
  %v341 = vld [vmem:[%s336 + $0x10] sm:$0xf]
  %v342 = vld [vmem:[%s336 + $0x14] sm:$0xf]
  %v343 = vld [vmem:[%s336 + $0x18] sm:$0xf]
  %v344 = vld [vmem:[%s336 + $0x1c] sm:$0xf]
  %v345 = vld [vmem:[%s336 + $0x20] sm:$0xf]
  %v346 = vld [vmem:[%s336 + $0x24] sm:$0xf]
  %v347 = vld [vmem:[%s336 + $0x28] sm:$0xf]
  %v348 = vld [vmem:[%s336 + $0x2c] sm:$0xf]
  %v349 = vld [vmem:[%s336 + $0x30] sm:$0xf]
  %v350 = vld [vmem:[%s336 + $0x34] sm:$0xf]
  %v351 = vld [vmem:[%s336 + $0x38] sm:$0xf]
  %v352 = vld [vmem:[%s336 + $0x3c] sm:$0xf]
  %v369 = vunpack.c.l.b16 %v337
  %v370 = vunpack.c.l.b16 %v338
  %v371 = vunpack.c.l.b16 %v339
  %v372 = vunpack.c.l.b16 %v340
  %v373 = vunpack.c.l.b16 %v341
  %v374 = vunpack.c.l.b16 %v342
  %v375 = vunpack.c.l.b16 %v343
  %v376 = vunpack.c.l.b16 %v344
  %v377 = vunpack.c.l.b16 %v345
  %v378 = vunpack.c.l.b16 %v346
  %v379 = vunpack.c.l.b16 %v347
  %v380 = vunpack.c.l.b16 %v348
  %v381 = vunpack.c.l.b16 %v349
  %v382 = vunpack.c.l.b16 %v350
  %v383 = vunpack.c.l.b16 %v351
  %v384 = vunpack.c.l.b16 %v352
  %v385 = vpack.c.b16 %v370, %v369
  %v386 = vpack.c.b16 %v372, %v371
  %v387 = vpack.c.b16 %v374, %v373
  %v388 = vpack.c.b16 %v376, %v375
  %v389 = vpack.c.b16 %v378, %v377
  %v390 = vpack.c.b16 %v380, %v379
  %v391 = vpack.c.b16 %v382, %v381
  %v392 = vpack.c.b16 %v384, %v383
  %401 = vmatprep.subr.bf16.mxu0 0
  %402 = vmatpush1.bf16.msra.mxu0 %v392
  %403 = vmatprep.subr.bf16.mxu0 0
  %404 = vmatpush1.bf16.msra.mxu0 %v391
  %405 = vmatprep.subr.bf16.mxu0 0
  %406 = vmatpush1.bf16.msra.mxu0 %v390
  %407 = vmatprep.subr.bf16.mxu0 0
  %408 = vmatpush1.bf16.msra.mxu0 %v389
  %409 = vmatprep.subr.bf16.mxu0 0
  %410 = vmatpush1.bf16.msra.mxu0 %v388
  %411 = vmatprep.subr.bf16.mxu0 0
  %412 = vmatpush1.bf16.msra.mxu0 %v387
  %413 = vmatprep.subr.bf16.mxu0 0
  %414 = vmatpush1.bf16.msra.mxu0 %v386
  %415 = vmatprep.subr.bf16.mxu0 0
  %416 = vmatpush1.bf16.msra.mxu0 %v385
  %417 = vmatprep.subr.bf16.mxu0 0
  %418 = vmatpush2.bf16.msra.mxu0 0
  %419 = vmatprep.subr.bf16.mxu0 0
  %420 = vmatpush2.bf16.msra.mxu0 0
  %421 = vmatprep.subr.bf16.mxu0 0
  %422 = vmatpush2.bf16.msra.mxu0 0
  %423 = vmatprep.subr.bf16.mxu0 0
  %424 = vmatpush2.bf16.msra.mxu0 0
  %425 = vmatprep.subr.bf16.mxu0 0
  %426 = vmatpush2.bf16.msra.mxu0 0
  %427 = vmatprep.subr.bf16.mxu0 0
  %428 = vmatpush2.bf16.msra.mxu0 0
  %429 = vmatprep.subr.bf16.mxu0 0
  %430 = vmatpush2.bf16.msra.mxu0 0
  %431 = vmatprep.subr.bf16.mxu0 0
  %432 = vmatpush2.bf16.msra.mxu0 0
  %433 = vmatprep.mubr.bf16.mxu0 0
  %434 = vmatmul.mubr.bf16.gmra.mxu0 %v331
  %v435 = vpop.f32.mrf.mxu0
  %v436 = vadd.f32 0.0, %v435
  %v437 = vpop.f32.mrf.mxu0
  %v438 = vpop.f32.mrf.mxu0
  %v439 = vadd.f32 0.0, %v438
  %v440 = vpop.f32.mrf.mxu0
  %441 = vmatprep.mubr.bf16.mxu0 0
  %442 = vmatmul.mubr.bf16.gmra.mxu0 %v332
  %v443 = vpop.f32.mrf.mxu0
  %v444 = vadd.f32 0.0, %v443
  %v445 = vpop.f32.mrf.mxu0
  %v446 = vpop.f32.mrf.mxu0
  %v447 = vadd.f32 0.0, %v446
  %v448 = vpop.f32.mrf.mxu0
  %449 = vmatprep.mubr.bf16.mxu0 0
  %450 = vmatmul.mubr.bf16.gmra.mxu0 %v333
  %v451 = vpop.f32.mrf.mxu0
  %v452 = vadd.f32 0.0, %v451
  %v453 = vpop.f32.mrf.mxu0
  %v454 = vpop.f32.mrf.mxu0
  %v455 = vadd.f32 0.0, %v454
  %v456 = vpop.f32.mrf.mxu0
  %457 = vmatprep.mubr.bf16.mxu0 0
  %458 = vmatmul.mubr.bf16.gmra.mxu0 %v334
  %v459 = vpop.f32.mrf.mxu0
  %v460 = vadd.f32 0.0, %v459
  %v461 = vpop.f32.mrf.mxu0
  %v462 = vpop.f32.mrf.mxu0
  %v463 = vadd.f32 0.0, %v462
  %v464 = vpop.f32.mrf.mxu0
  %465 = vmatprep.mubr.bf16.mxu0 0
  %466 = vmatmul.mubr.bf16.gmra.mxu0 %v335
  %v467 = vpop.f32.mrf.mxu0
  %v468 = vadd.f32 0.0, %v467
  %v469 = vpop.f32.mrf.mxu0
  %v470 = vpop.f32.mrf.mxu0
  %v471 = vpop.f32.mrf.mxu0
  %472 = vdwg.mxu0
  %v473 = vadd.f32 %v285, %v436
  %v474 = vadd.f32 %v288, %v439
  %v475 = vadd.f32 %v293, %v444
  %v476 = vadd.f32 %v296, %v447
  %v477 = vadd.f32 %v301, %v452
  %v478 = vadd.f32 %v304, %v455
  %v479 = vadd.f32 %v309, %v460
  %v480 = vadd.f32 %v312, %v463
  %v481 = vadd.f32 %v317, %v468
  %v482 = vld [vmem:[%s0 + $0x6] sm:$0xff]
  %v483 = vld [vmem:[%s0 + $0xe] sm:$0xff]
  %v484 = vld [vmem:[%s0 + $0x16] sm:$0xff]
  %v485 = vld [vmem:[%s0 + $0x1e] sm:$0xff]
  %v486 = vld [vmem:[%s0 + $0x26] sm:$0xff]
  %v487 = vld [vmem:[%s0 + $0x2e] sm:$0xff]
  %v488 = vld [vmem:[%s0 + $0x36] sm:$0xff]
  %v489 = vld [vmem:[%s0 + $0x3e] sm:$0xff]
  %v490 = vld [vmem:[%s0 + $0x46] sm:$0xff]
  %v491 = vpack.c.bf16 %v483, %v482
  %v492 = vpack.c.bf16 %v485, %v484
  %v493 = vpack.c.bf16 %v487, %v486
  %v494 = vpack.c.bf16 %v489, %v488
  %v495 = vpack.c.bf16 %v490, %v490
  %s496 = scalar_lea.vmem %s1, 192
  %v497 = vld [vmem:[%s496] sm:$0xf]
  %v498 = vld [vmem:[%s496 + $0x4] sm:$0xf]
  %v499 = vld [vmem:[%s496 + $0x8] sm:$0xf]
  %v500 = vld [vmem:[%s496 + $0xc] sm:$0xf]
  %v501 = vld [vmem:[%s496 + $0x10] sm:$0xf]
  %v502 = vld [vmem:[%s496 + $0x14] sm:$0xf]
  %v503 = vld [vmem:[%s496 + $0x18] sm:$0xf]
  %v504 = vld [vmem:[%s496 + $0x1c] sm:$0xf]
  %v505 = vld [vmem:[%s496 + $0x20] sm:$0xf]
  %v506 = vld [vmem:[%s496 + $0x24] sm:$0xf]
  %v507 = vld [vmem:[%s496 + $0x28] sm:$0xf]
  %v508 = vld [vmem:[%s496 + $0x2c] sm:$0xf]
  %v509 = vld [vmem:[%s496 + $0x30] sm:$0xf]
  %v510 = vld [vmem:[%s496 + $0x34] sm:$0xf]
  %v511 = vld [vmem:[%s496 + $0x38] sm:$0xf]
  %v512 = vld [vmem:[%s496 + $0x3c] sm:$0xf]
  %v529 = vunpack.c.l.b16 %v497
  %v530 = vunpack.c.l.b16 %v498
  %v531 = vunpack.c.l.b16 %v499
  %v532 = vunpack.c.l.b16 %v500
  %v533 = vunpack.c.l.b16 %v501
  %v534 = vunpack.c.l.b16 %v502
  %v535 = vunpack.c.l.b16 %v503
  %v536 = vunpack.c.l.b16 %v504
  %v537 = vunpack.c.l.b16 %v505
  %v538 = vunpack.c.l.b16 %v506
  %v539 = vunpack.c.l.b16 %v507
  %v540 = vunpack.c.l.b16 %v508
  %v541 = vunpack.c.l.b16 %v509
  %v542 = vunpack.c.l.b16 %v510
  %v543 = vunpack.c.l.b16 %v511
  %v544 = vunpack.c.l.b16 %v512
  %v545 = vpack.c.b16 %v530, %v529
  %v546 = vpack.c.b16 %v532, %v531
  %v547 = vpack.c.b16 %v534, %v533
  %v548 = vpack.c.b16 %v536, %v535
  %v549 = vpack.c.b16 %v538, %v537
  %v550 = vpack.c.b16 %v540, %v539
  %v551 = vpack.c.b16 %v542, %v541
  %v552 = vpack.c.b16 %v544, %v543
  %561 = vmatprep.subr.bf16.mxu0 0
  %562 = vmatpush1.bf16.msra.mxu0 %v552
  %563 = vmatprep.subr.bf16.mxu0 0
  %564 = vmatpush1.bf16.msra.mxu0 %v551
  %565 = vmatprep.subr.bf16.mxu0 0
  %566 = vmatpush1.bf16.msra.mxu0 %v550
  %567 = vmatprep.subr.bf16.mxu0 0
  %568 = vmatpush1.bf16.msra.mxu0 %v549
  %569 = vmatprep.subr.bf16.mxu0 0
  %570 = vmatpush1.bf16.msra.mxu0 %v548
  %571 = vmatprep.subr.bf16.mxu0 0
  %572 = vmatpush1.bf16.msra.mxu0 %v547
  %573 = vmatprep.subr.bf16.mxu0 0
  %574 = vmatpush1.bf16.msra.mxu0 %v546
  %575 = vmatprep.subr.bf16.mxu0 0
  %576 = vmatpush1.bf16.msra.mxu0 %v545
  %577 = vmatprep.subr.bf16.mxu0 0
  %578 = vmatpush2.bf16.msra.mxu0 0
  %579 = vmatprep.subr.bf16.mxu0 0
  %580 = vmatpush2.bf16.msra.mxu0 0
  %581 = vmatprep.subr.bf16.mxu0 0
  %582 = vmatpush2.bf16.msra.mxu0 0
  %583 = vmatprep.subr.bf16.mxu0 0
  %584 = vmatpush2.bf16.msra.mxu0 0
  %585 = vmatprep.subr.bf16.mxu0 0
  %586 = vmatpush2.bf16.msra.mxu0 0
  %587 = vmatprep.subr.bf16.mxu0 0
  %588 = vmatpush2.bf16.msra.mxu0 0
  %589 = vmatprep.subr.bf16.mxu0 0
  %590 = vmatpush2.bf16.msra.mxu0 0
  %591 = vmatprep.subr.bf16.mxu0 0
  %592 = vmatpush2.bf16.msra.mxu0 0
  %593 = vmatprep.mubr.bf16.mxu0 0
  %594 = vmatmul.mubr.bf16.gmra.mxu0 %v491
  %v595 = vpop.f32.mrf.mxu0
  %v596 = vadd.f32 0.0, %v595
  %v597 = vpop.f32.mrf.mxu0
  %v598 = vpop.f32.mrf.mxu0
  %v599 = vadd.f32 0.0, %v598
  %v600 = vpop.f32.mrf.mxu0
  %601 = vmatprep.mubr.bf16.mxu0 0
  %602 = vmatmul.mubr.bf16.gmra.mxu0 %v492
  %v603 = vpop.f32.mrf.mxu0
  %v604 = vadd.f32 0.0, %v603
  %v605 = vpop.f32.mrf.mxu0
  %v606 = vpop.f32.mrf.mxu0
  %v607 = vadd.f32 0.0, %v606
  %v608 = vpop.f32.mrf.mxu0
  %609 = vmatprep.mubr.bf16.mxu0 0
  %610 = vmatmul.mubr.bf16.gmra.mxu0 %v493
  %v611 = vpop.f32.mrf.mxu0
  %v612 = vadd.f32 0.0, %v611
  %v613 = vpop.f32.mrf.mxu0
  %v614 = vpop.f32.mrf.mxu0
  %v615 = vadd.f32 0.0, %v614
  %v616 = vpop.f32.mrf.mxu0
  %617 = vmatprep.mubr.bf16.mxu0 0
  %618 = vmatmul.mubr.bf16.gmra.mxu0 %v494
  %v619 = vpop.f32.mrf.mxu0
  %v620 = vadd.f32 0.0, %v619
  %v621 = vpop.f32.mrf.mxu0
  %v622 = vpop.f32.mrf.mxu0
  %v623 = vadd.f32 0.0, %v622
  %v624 = vpop.f32.mrf.mxu0
  %625 = vmatprep.mubr.bf16.mxu0 0
  %626 = vmatmul.mubr.bf16.gmra.mxu0 %v495
  %v627 = vpop.f32.mrf.mxu0
  %v628 = vadd.f32 0.0, %v627
  %v629 = vpop.f32.mrf.mxu0
  %v630 = vpop.f32.mrf.mxu0
  %v631 = vpop.f32.mrf.mxu0
  %632 = vdwg.mxu0
  %v633 = vadd.f32 %v473, %v596
  %v634 = vadd.f32 %v474, %v599
  %v635 = vadd.f32 %v475, %v604
  %v636 = vadd.f32 %v476, %v607
  %v637 = vadd.f32 %v477, %v612
  %v638 = vadd.f32 %v478, %v615
  %v639 = vadd.f32 %v479, %v620
  %v640 = vadd.f32 %v480, %v623
  %v641 = vadd.f32 %v481, %v628
  %v642 = vld [vmem:[%s0 + $0x7] sm:$0xff]
  %v643 = vld [vmem:[%s0 + $0xf] sm:$0xff]
  %v644 = vld [vmem:[%s0 + $0x17] sm:$0xff]
  %v645 = vld [vmem:[%s0 + $0x1f] sm:$0xff]
  %v646 = vld [vmem:[%s0 + $0x27] sm:$0xff]
  %v647 = vld [vmem:[%s0 + $0x2f] sm:$0xff]
  %v648 = vld [vmem:[%s0 + $0x37] sm:$0xff]
  %v649 = vld [vmem:[%s0 + $0x3f] sm:$0xff]
  %v650 = vld [vmem:[%s0 + $0x47] sm:$0xff]
  %v651 = vpack.c.bf16 %v643, %v642
  %v652 = vpack.c.bf16 %v645, %v644
  %v653 = vpack.c.bf16 %v647, %v646
  %v654 = vpack.c.bf16 %v649, %v648
  %v655 = vpack.c.bf16 %v650, %v650
  %s656 = scalar_lea.vmem %s1, 256
  %v657 = vld [vmem:[%s656] sm:$0xf]
  %v658 = vld [vmem:[%s656 + $0x4] sm:$0xf]
  %v659 = vld [vmem:[%s656 + $0x8] sm:$0xf]
  %v660 = vld [vmem:[%s656 + $0xc] sm:$0xf]
  %v661 = vld [vmem:[%s656 + $0x10] sm:$0xf]
  %v662 = vld [vmem:[%s656 + $0x14] sm:$0xf]
  %v663 = vld [vmem:[%s656 + $0x18] sm:$0xf]
  %v664 = vld [vmem:[%s656 + $0x1c] sm:$0xf]
  %v665 = vld [vmem:[%s656 + $0x20] sm:$0xf]
  %v666 = vld [vmem:[%s656 + $0x24] sm:$0xf]
  %v667 = vld [vmem:[%s656 + $0x28] sm:$0xf]
  %v668 = vld [vmem:[%s656 + $0x2c] sm:$0xf]
  %v669 = vld [vmem:[%s656 + $0x30] sm:$0xf]
  %v670 = vld [vmem:[%s656 + $0x34] sm:$0xf]
  %v671 = vld [vmem:[%s656 + $0x38] sm:$0xf]
  %v672 = vld [vmem:[%s656 + $0x3c] sm:$0xf]
  %v689 = vunpack.c.l.b16 %v657
  %v690 = vunpack.c.l.b16 %v658
  %v691 = vunpack.c.l.b16 %v659
  %v692 = vunpack.c.l.b16 %v660
  %v693 = vunpack.c.l.b16 %v661
  %v694 = vunpack.c.l.b16 %v662
  %v695 = vunpack.c.l.b16 %v663
  %v696 = vunpack.c.l.b16 %v664
  %v697 = vunpack.c.l.b16 %v665
  %v698 = vunpack.c.l.b16 %v666
  %v699 = vunpack.c.l.b16 %v667
  %v700 = vunpack.c.l.b16 %v668
  %v701 = vunpack.c.l.b16 %v669
  %v702 = vunpack.c.l.b16 %v670
  %v703 = vunpack.c.l.b16 %v671
  %v704 = vunpack.c.l.b16 %v672
  %v705 = vpack.c.b16 %v690, %v689
  %v706 = vpack.c.b16 %v692, %v691
  %v707 = vpack.c.b16 %v694, %v693
  %v708 = vpack.c.b16 %v696, %v695
  %v709 = vpack.c.b16 %v698, %v697
  %v710 = vpack.c.b16 %v700, %v699
  %v711 = vpack.c.b16 %v702, %v701
  %v712 = vpack.c.b16 %v704, %v703
  %721 = vmatprep.subr.bf16.mxu0 0
  %722 = vmatpush1.bf16.msra.mxu0 %v712
  %723 = vmatprep.subr.bf16.mxu0 0
  %724 = vmatpush1.bf16.msra.mxu0 %v711
  %725 = vmatprep.subr.bf16.mxu0 0
  %726 = vmatpush1.bf16.msra.mxu0 %v710
  %727 = vmatprep.subr.bf16.mxu0 0
  %728 = vmatpush1.bf16.msra.mxu0 %v709
  %729 = vmatprep.subr.bf16.mxu0 0
  %730 = vmatpush1.bf16.msra.mxu0 %v708
  %731 = vmatprep.subr.bf16.mxu0 0
  %732 = vmatpush1.bf16.msra.mxu0 %v707
  %733 = vmatprep.subr.bf16.mxu0 0
  %734 = vmatpush1.bf16.msra.mxu0 %v706
  %735 = vmatprep.subr.bf16.mxu0 0
  %736 = vmatpush1.bf16.msra.mxu0 %v705
  %737 = vmatprep.subr.bf16.mxu0 0
  %738 = vmatpush2.bf16.msra.mxu0 0
  %739 = vmatprep.subr.bf16.mxu0 0
  %740 = vmatpush2.bf16.msra.mxu0 0
  %741 = vmatprep.subr.bf16.mxu0 0
  %742 = vmatpush2.bf16.msra.mxu0 0
  %743 = vmatprep.subr.bf16.mxu0 0
  %744 = vmatpush2.bf16.msra.mxu0 0
  %745 = vmatprep.subr.bf16.mxu0 0
  %746 = vmatpush2.bf16.msra.mxu0 0
  %747 = vmatprep.subr.bf16.mxu0 0
  %748 = vmatpush2.bf16.msra.mxu0 0
  %749 = vmatprep.subr.bf16.mxu0 0
  %750 = vmatpush2.bf16.msra.mxu0 0
  %751 = vmatprep.subr.bf16.mxu0 0
  %752 = vmatpush2.bf16.msra.mxu0 0
  %753 = vmatprep.mubr.bf16.mxu0 0
  %754 = vmatmul.mubr.bf16.gmra.mxu0 %v651
  %v755 = vpop.f32.mrf.mxu0
  %v756 = vadd.f32 0.0, %v755
  %v757 = vpop.f32.mrf.mxu0
  %v758 = vpop.f32.mrf.mxu0
  %v759 = vadd.f32 0.0, %v758
  %v760 = vpop.f32.mrf.mxu0
  %761 = vmatprep.mubr.bf16.mxu0 0
  %762 = vmatmul.mubr.bf16.gmra.mxu0 %v652
  %v763 = vpop.f32.mrf.mxu0
  %v764 = vadd.f32 0.0, %v763
  %v765 = vpop.f32.mrf.mxu0
  %v766 = vpop.f32.mrf.mxu0
  %v767 = vadd.f32 0.0, %v766
  %v768 = vpop.f32.mrf.mxu0
  %769 = vmatprep.mubr.bf16.mxu0 0
  %770 = vmatmul.mubr.bf16.gmra.mxu0 %v653
  %v771 = vpop.f32.mrf.mxu0
  %v772 = vadd.f32 0.0, %v771
  %v773 = vpop.f32.mrf.mxu0
  %v774 = vpop.f32.mrf.mxu0
  %v775 = vadd.f32 0.0, %v774
  %v776 = vpop.f32.mrf.mxu0
  %777 = vmatprep.mubr.bf16.mxu0 0
  %778 = vmatmul.mubr.bf16.gmra.mxu0 %v654
  %v779 = vpop.f32.mrf.mxu0
  %v780 = vadd.f32 0.0, %v779
  %v781 = vpop.f32.mrf.mxu0
  %v782 = vpop.f32.mrf.mxu0
  %v783 = vadd.f32 0.0, %v782
  %v784 = vpop.f32.mrf.mxu0
  %785 = vmatprep.mubr.bf16.mxu0 0
  %786 = vmatmul.mubr.bf16.gmra.mxu0 %v655
  %v787 = vpop.f32.mrf.mxu0
  %v788 = vadd.f32 0.0, %v787
  %v789 = vpop.f32.mrf.mxu0
  %v790 = vpop.f32.mrf.mxu0
  %v791 = vpop.f32.mrf.mxu0
  %792 = vdwg.mxu0
  %v793 = vadd.f32 %v633, %v756
  %v794 = vadd.f32 %v634, %v759
  %v795 = vadd.f32 %v635, %v764
  %v796 = vadd.f32 %v636, %v767
  %v797 = vadd.f32 %v637, %v772
  %v798 = vadd.f32 %v638, %v775
  %v799 = vadd.f32 %v639, %v780
  %v800 = vadd.f32 %v640, %v783
  %v801 = vadd.f32 %v641, %v788
  %v802 = vld [vmem:[%s0 + $0x8] sm:$0xff]
  %v803 = vld [vmem:[%s0 + $0x10] sm:$0xff]
  %v804 = vld [vmem:[%s0 + $0x18] sm:$0xff]
  %v805 = vld [vmem:[%s0 + $0x20] sm:$0xff]
  %v806 = vld [vmem:[%s0 + $0x28] sm:$0xff]
  %v807 = vld [vmem:[%s0 + $0x30] sm:$0xff]
  %v808 = vld [vmem:[%s0 + $0x38] sm:$0xff]
  %v809 = vld [vmem:[%s0 + $0x40] sm:$0xff]
  %v810 = vld [vmem:[%s0 + $0x48] sm:$0xff]
  %v811 = vpack.c.bf16 %v803, %v802
  %v812 = vpack.c.bf16 %v805, %v804
  %v813 = vpack.c.bf16 %v807, %v806
  %v814 = vpack.c.bf16 %v809, %v808
  %v815 = vpack.c.bf16 %v810, %v810
  %s816 = scalar_lea.vmem %s1, 320
  %v817 = vld [vmem:[%s816] sm:$0xf]
  %v818 = vld [vmem:[%s816 + $0x4] sm:$0xf]
  %v819 = vld [vmem:[%s816 + $0x8] sm:$0xf]
  %v820 = vld [vmem:[%s816 + $0xc] sm:$0xf]
  %v821 = vld [vmem:[%s816 + $0x10] sm:$0xf]
  %v822 = vld [vmem:[%s816 + $0x14] sm:$0xf]
  %v823 = vld [vmem:[%s816 + $0x18] sm:$0xf]
  %v824 = vld [vmem:[%s816 + $0x1c] sm:$0xf]
  %v825 = vld [vmem:[%s816 + $0x20] sm:$0xf]
  %v826 = vld [vmem:[%s816 + $0x24] sm:$0xf]
  %v827 = vld [vmem:[%s816 + $0x28] sm:$0xf]
  %v828 = vld [vmem:[%s816 + $0x2c] sm:$0xf]
  %v829 = vld [vmem:[%s816 + $0x30] sm:$0xf]
  %v830 = vld [vmem:[%s816 + $0x34] sm:$0xf]
  %v831 = vld [vmem:[%s816 + $0x38] sm:$0xf]
  %v832 = vld [vmem:[%s816 + $0x3c] sm:$0xf]
  %v849 = vunpack.c.l.b16 %v817
  %v850 = vunpack.c.l.b16 %v818
  %v851 = vunpack.c.l.b16 %v819
  %v852 = vunpack.c.l.b16 %v820
  %v853 = vunpack.c.l.b16 %v821
  %v854 = vunpack.c.l.b16 %v822
  %v855 = vunpack.c.l.b16 %v823
  %v856 = vunpack.c.l.b16 %v824
  %v857 = vunpack.c.l.b16 %v825
  %v858 = vunpack.c.l.b16 %v826
  %v859 = vunpack.c.l.b16 %v827
  %v860 = vunpack.c.l.b16 %v828
  %v861 = vunpack.c.l.b16 %v829
  %v862 = vunpack.c.l.b16 %v830
  %v863 = vunpack.c.l.b16 %v831
  %v864 = vunpack.c.l.b16 %v832
  %v865 = vpack.c.b16 %v850, %v849
  %v866 = vpack.c.b16 %v852, %v851
  %v867 = vpack.c.b16 %v854, %v853
  %v868 = vpack.c.b16 %v856, %v855
  %v869 = vpack.c.b16 %v858, %v857
  %v870 = vpack.c.b16 %v860, %v859
  %v871 = vpack.c.b16 %v862, %v861
  %v872 = vpack.c.b16 %v864, %v863
  %881 = vmatprep.subr.bf16.mxu0 0
  %882 = vmatpush1.bf16.msra.mxu0 %v872
  %883 = vmatprep.subr.bf16.mxu0 0
  %884 = vmatpush1.bf16.msra.mxu0 %v871
  %885 = vmatprep.subr.bf16.mxu0 0
  %886 = vmatpush1.bf16.msra.mxu0 %v870
  %887 = vmatprep.subr.bf16.mxu0 0
  %888 = vmatpush1.bf16.msra.mxu0 %v869
  %889 = vmatprep.subr.bf16.mxu0 0
  %890 = vmatpush1.bf16.msra.mxu0 %v868
  %891 = vmatprep.subr.bf16.mxu0 0
  %892 = vmatpush1.bf16.msra.mxu0 %v867
  %893 = vmatprep.subr.bf16.mxu0 0
  %894 = vmatpush1.bf16.msra.mxu0 %v866
  %895 = vmatprep.subr.bf16.mxu0 0
  %896 = vmatpush1.bf16.msra.mxu0 %v865
  %897 = vmatprep.subr.bf16.mxu0 0
  %898 = vmatpush2.bf16.msra.mxu0 0
  %899 = vmatprep.subr.bf16.mxu0 0
  %900 = vmatpush2.bf16.msra.mxu0 0
  %901 = vmatprep.subr.bf16.mxu0 0
  %902 = vmatpush2.bf16.msra.mxu0 0
  %903 = vmatprep.subr.bf16.mxu0 0
  %904 = vmatpush2.bf16.msra.mxu0 0
  %905 = vmatprep.subr.bf16.mxu0 0
  %906 = vmatpush2.bf16.msra.mxu0 0
  %907 = vmatprep.subr.bf16.mxu0 0
  %908 = vmatpush2.bf16.msra.mxu0 0
  %909 = vmatprep.subr.bf16.mxu0 0
  %910 = vmatpush2.bf16.msra.mxu0 0
  %911 = vmatprep.subr.bf16.mxu0 0
  %912 = vmatpush2.bf16.msra.mxu0 0
  %913 = vmatprep.mubr.bf16.mxu0 0
  %914 = vmatmul.mubr.bf16.gmra.mxu0 %v811
  %v915 = vpop.f32.mrf.mxu0
  %v916 = vadd.f32 0.0, %v915
  %v917 = vpop.f32.mrf.mxu0
  %v918 = vpop.f32.mrf.mxu0
  %v919 = vadd.f32 0.0, %v918
  %v920 = vpop.f32.mrf.mxu0
  %921 = vmatprep.mubr.bf16.mxu0 0
  %922 = vmatmul.mubr.bf16.gmra.mxu0 %v812
  %v923 = vpop.f32.mrf.mxu0
  %v924 = vadd.f32 0.0, %v923
  %v925 = vpop.f32.mrf.mxu0
  %v926 = vpop.f32.mrf.mxu0
  %v927 = vadd.f32 0.0, %v926
  %v928 = vpop.f32.mrf.mxu0
  %929 = vmatprep.mubr.bf16.mxu0 0
  %930 = vmatmul.mubr.bf16.gmra.mxu0 %v813
  %v931 = vpop.f32.mrf.mxu0
  %v932 = vadd.f32 0.0, %v931
  %v933 = vpop.f32.mrf.mxu0
  %v934 = vpop.f32.mrf.mxu0
  %v935 = vadd.f32 0.0, %v934
  %v936 = vpop.f32.mrf.mxu0
  %937 = vmatprep.mubr.bf16.mxu0 0
  %938 = vmatmul.mubr.bf16.gmra.mxu0 %v814
  %v939 = vpop.f32.mrf.mxu0
  %v940 = vadd.f32 0.0, %v939
  %v941 = vpop.f32.mrf.mxu0
  %v942 = vpop.f32.mrf.mxu0
  %v943 = vadd.f32 0.0, %v942
  %v944 = vpop.f32.mrf.mxu0
  %945 = vmatprep.mubr.bf16.mxu0 0
  %946 = vmatmul.mubr.bf16.gmra.mxu0 %v815
  %v947 = vpop.f32.mrf.mxu0
  %v948 = vadd.f32 0.0, %v947
  %v949 = vpop.f32.mrf.mxu0
  %v950 = vpop.f32.mrf.mxu0
  %v951 = vpop.f32.mrf.mxu0
  %952 = vdwg.mxu0
  %v953 = vadd.f32 %v793, %v916
  %v954 = vadd.f32 %v794, %v919
  %v955 = vadd.f32 %v795, %v924
  %v956 = vadd.f32 %v796, %v927
  %v957 = vadd.f32 %v797, %v932
  %v958 = vadd.f32 %v798, %v935
  %v959 = vadd.f32 %v799, %v940
  %v960 = vadd.f32 %v800, %v943
  %v961 = vadd.f32 %v801, %v948
  %v962 = vld [vmem:[%s0 + $0xc] sm:$0xff]
  %v963 = vld [vmem:[%s0 + $0x14] sm:$0xff]
  %v964 = vld [vmem:[%s0 + $0x1c] sm:$0xff]
  %v965 = vld [vmem:[%s0 + $0x24] sm:$0xff]
  %v966 = vld [vmem:[%s0 + $0x2c] sm:$0xff]
  %v967 = vld [vmem:[%s0 + $0x34] sm:$0xff]
  %v968 = vld [vmem:[%s0 + $0x3c] sm:$0xff]
  %v969 = vld [vmem:[%s0 + $0x44] sm:$0xff]
  %v970 = vld [vmem:[%s0 + $0x4c] sm:$0xff]
  %v971 = vpack.c.bf16 %v963, %v962
  %v972 = vpack.c.bf16 %v965, %v964
  %v973 = vpack.c.bf16 %v967, %v966
  %v974 = vpack.c.bf16 %v969, %v968
  %v975 = vpack.c.bf16 %v970, %v970
  %s976 = scalar_lea.vmem %s1, 384
  %v977 = vld [vmem:[%s976] sm:$0xf]
  %v978 = vld [vmem:[%s976 + $0x4] sm:$0xf]
  %v979 = vld [vmem:[%s976 + $0x8] sm:$0xf]
  %v980 = vld [vmem:[%s976 + $0xc] sm:$0xf]
  %v981 = vld [vmem:[%s976 + $0x10] sm:$0xf]
  %v982 = vld [vmem:[%s976 + $0x14] sm:$0xf]
  %v983 = vld [vmem:[%s976 + $0x18] sm:$0xf]
  %v984 = vld [vmem:[%s976 + $0x1c] sm:$0xf]
  %v985 = vld [vmem:[%s976 + $0x20] sm:$0xf]
  %v986 = vld [vmem:[%s976 + $0x24] sm:$0xf]
  %v987 = vld [vmem:[%s976 + $0x28] sm:$0xf]
  %v988 = vld [vmem:[%s976 + $0x2c] sm:$0xf]
  %v989 = vld [vmem:[%s976 + $0x30] sm:$0xf]
  %v990 = vld [vmem:[%s976 + $0x34] sm:$0xf]
  %v991 = vld [vmem:[%s976 + $0x38] sm:$0xf]
  %v992 = vld [vmem:[%s976 + $0x3c] sm:$0xf]
  %v1009 = vunpack.c.l.b16 %v977
  %v1010 = vunpack.c.l.b16 %v978
  %v1011 = vunpack.c.l.b16 %v979
  %v1012 = vunpack.c.l.b16 %v980
  %v1013 = vunpack.c.l.b16 %v981
  %v1014 = vunpack.c.l.b16 %v982
  %v1015 = vunpack.c.l.b16 %v983
  %v1016 = vunpack.c.l.b16 %v984
  %v1017 = vunpack.c.l.b16 %v985
  %v1018 = vunpack.c.l.b16 %v986
  %v1019 = vunpack.c.l.b16 %v987
  %v1020 = vunpack.c.l.b16 %v988
  %v1021 = vunpack.c.l.b16 %v989
  %v1022 = vunpack.c.l.b16 %v990
  %v1023 = vunpack.c.l.b16 %v991
  %v1024 = vunpack.c.l.b16 %v992
  %v1025 = vpack.c.b16 %v1010, %v1009
  %v1026 = vpack.c.b16 %v1012, %v1011
  %v1027 = vpack.c.b16 %v1014, %v1013
  %v1028 = vpack.c.b16 %v1016, %v1015
  %v1029 = vpack.c.b16 %v1018, %v1017
  %v1030 = vpack.c.b16 %v1020, %v1019
  %v1031 = vpack.c.b16 %v1022, %v1021
  %v1032 = vpack.c.b16 %v1024, %v1023
  %1041 = vmatprep.subr.bf16.mxu0 0
  %1042 = vmatpush1.bf16.msra.mxu0 %v1032
  %1043 = vmatprep.subr.bf16.mxu0 0
  %1044 = vmatpush1.bf16.msra.mxu0 %v1031
  %1045 = vmatprep.subr.bf16.mxu0 0
  %1046 = vmatpush1.bf16.msra.mxu0 %v1030
  %1047 = vmatprep.subr.bf16.mxu0 0
  %1048 = vmatpush1.bf16.msra.mxu0 %v1029
  %1049 = vmatprep.subr.bf16.mxu0 0
  %1050 = vmatpush1.bf16.msra.mxu0 %v1028
  %1051 = vmatprep.subr.bf16.mxu0 0
  %1052 = vmatpush1.bf16.msra.mxu0 %v1027
  %1053 = vmatprep.subr.bf16.mxu0 0
  %1054 = vmatpush1.bf16.msra.mxu0 %v1026
  %1055 = vmatprep.subr.bf16.mxu0 0
  %1056 = vmatpush1.bf16.msra.mxu0 %v1025
  %1057 = vmatprep.subr.bf16.mxu0 0
  %1058 = vmatpush2.bf16.msra.mxu0 0
  %1059 = vmatprep.subr.bf16.mxu0 0
  %1060 = vmatpush2.bf16.msra.mxu0 0
  %1061 = vmatprep.subr.bf16.mxu0 0
  %1062 = vmatpush2.bf16.msra.mxu0 0
  %1063 = vmatprep.subr.bf16.mxu0 0
  %1064 = vmatpush2.bf16.msra.mxu0 0
  %1065 = vmatprep.subr.bf16.mxu0 0
  %1066 = vmatpush2.bf16.msra.mxu0 0
  %1067 = vmatprep.subr.bf16.mxu0 0
  %1068 = vmatpush2.bf16.msra.mxu0 0
  %1069 = vmatprep.subr.bf16.mxu0 0
  %1070 = vmatpush2.bf16.msra.mxu0 0
  %1071 = vmatprep.subr.bf16.mxu0 0
  %1072 = vmatpush2.bf16.msra.mxu0 0
  %1073 = vmatprep.mubr.bf16.mxu0 0
  %1074 = vmatmul.mubr.bf16.gmra.mxu0 %v971
  %v1075 = vpop.f32.mrf.mxu0
  %v1076 = vadd.f32 0.0, %v1075
  %v1077 = vpop.f32.mrf.mxu0
  %v1078 = vpop.f32.mrf.mxu0
  %v1079 = vadd.f32 0.0, %v1078
  %v1080 = vpop.f32.mrf.mxu0
  %1081 = vmatprep.mubr.bf16.mxu0 0
  %1082 = vmatmul.mubr.bf16.gmra.mxu0 %v972
  %v1083 = vpop.f32.mrf.mxu0
  %v1084 = vadd.f32 0.0, %v1083
  %v1085 = vpop.f32.mrf.mxu0
  %v1086 = vpop.f32.mrf.mxu0
  %v1087 = vadd.f32 0.0, %v1086
  %v1088 = vpop.f32.mrf.mxu0
  %1089 = vmatprep.mubr.bf16.mxu0 0
  %1090 = vmatmul.mubr.bf16.gmra.mxu0 %v973
  %v1091 = vpop.f32.mrf.mxu0
  %v1092 = vadd.f32 0.0, %v1091
  %v1093 = vpop.f32.mrf.mxu0
  %v1094 = vpop.f32.mrf.mxu0
  %v1095 = vadd.f32 0.0, %v1094
  %v1096 = vpop.f32.mrf.mxu0
  %1097 = vmatprep.mubr.bf16.mxu0 0
  %1098 = vmatmul.mubr.bf16.gmra.mxu0 %v974
  %v1099 = vpop.f32.mrf.mxu0
  %v1100 = vadd.f32 0.0, %v1099
  %v1101 = vpop.f32.mrf.mxu0
  %v1102 = vpop.f32.mrf.mxu0
  %v1103 = vadd.f32 0.0, %v1102
  %v1104 = vpop.f32.mrf.mxu0
  %1105 = vmatprep.mubr.bf16.mxu0 0
  %1106 = vmatmul.mubr.bf16.gmra.mxu0 %v975
  %v1107 = vpop.f32.mrf.mxu0
  %v1108 = vadd.f32 0.0, %v1107
  %v1109 = vpop.f32.mrf.mxu0
  %v1110 = vpop.f32.mrf.mxu0
  %v1111 = vpop.f32.mrf.mxu0
  %1112 = vdwg.mxu0
  %v1113 = vadd.f32 %v953, %v1076
  %v1114 = vadd.f32 %v954, %v1079
  %v1115 = vadd.f32 %v955, %v1084
  %v1116 = vadd.f32 %v956, %v1087
  %v1117 = vadd.f32 %v957, %v1092
  %v1118 = vadd.f32 %v958, %v1095
  %v1119 = vadd.f32 %v959, %v1100
  %v1120 = vadd.f32 %v960, %v1103
  %v1121 = vadd.f32 %v961, %v1108
  %v1122 = vld [vmem:[%s0 + $0xd] sm:$0xff]
  %v1123 = vld [vmem:[%s0 + $0x15] sm:$0xff]
  %v1124 = vld [vmem:[%s0 + $0x1d] sm:$0xff]
  %v1125 = vld [vmem:[%s0 + $0x25] sm:$0xff]
  %v1126 = vld [vmem:[%s0 + $0x2d] sm:$0xff]
  %v1127 = vld [vmem:[%s0 + $0x35] sm:$0xff]
  %v1128 = vld [vmem:[%s0 + $0x3d] sm:$0xff]
  %v1129 = vld [vmem:[%s0 + $0x45] sm:$0xff]
  %v1130 = vld [vmem:[%s0 + $0x4d] sm:$0xff]
  %v1131 = vpack.c.bf16 %v1123, %v1122
  %v1132 = vpack.c.bf16 %v1125, %v1124
  %v1133 = vpack.c.bf16 %v1127, %v1126
  %v1134 = vpack.c.bf16 %v1129, %v1128
  %v1135 = vpack.c.bf16 %v1130, %v1130
  %s1136 = scalar_lea.vmem %s1, 448
  %v1137 = vld [vmem:[%s1136] sm:$0xf]
  %v1138 = vld [vmem:[%s1136 + $0x4] sm:$0xf]
  %v1139 = vld [vmem:[%s1136 + $0x8] sm:$0xf]
  %v1140 = vld [vmem:[%s1136 + $0xc] sm:$0xf]
  %v1141 = vld [vmem:[%s1136 + $0x10] sm:$0xf]
  %v1142 = vld [vmem:[%s1136 + $0x14] sm:$0xf]
  %v1143 = vld [vmem:[%s1136 + $0x18] sm:$0xf]
  %v1144 = vld [vmem:[%s1136 + $0x1c] sm:$0xf]
  %v1145 = vld [vmem:[%s1136 + $0x20] sm:$0xf]
  %v1146 = vld [vmem:[%s1136 + $0x24] sm:$0xf]
  %v1147 = vld [vmem:[%s1136 + $0x28] sm:$0xf]
  %v1148 = vld [vmem:[%s1136 + $0x2c] sm:$0xf]
  %v1149 = vld [vmem:[%s1136 + $0x30] sm:$0xf]
  %v1150 = vld [vmem:[%s1136 + $0x34] sm:$0xf]
  %v1151 = vld [vmem:[%s1136 + $0x38] sm:$0xf]
  %v1152 = vld [vmem:[%s1136 + $0x3c] sm:$0xf]
  %v1169 = vunpack.c.l.b16 %v1137
  %v1170 = vunpack.c.l.b16 %v1138
  %v1171 = vunpack.c.l.b16 %v1139
  %v1172 = vunpack.c.l.b16 %v1140
  %v1173 = vunpack.c.l.b16 %v1141
  %v1174 = vunpack.c.l.b16 %v1142
  %v1175 = vunpack.c.l.b16 %v1143
  %v1176 = vunpack.c.l.b16 %v1144
  %v1177 = vunpack.c.l.b16 %v1145
  %v1178 = vunpack.c.l.b16 %v1146
  %v1179 = vunpack.c.l.b16 %v1147
  %v1180 = vunpack.c.l.b16 %v1148
  %v1181 = vunpack.c.l.b16 %v1149
  %v1182 = vunpack.c.l.b16 %v1150
  %v1183 = vunpack.c.l.b16 %v1151
  %v1184 = vunpack.c.l.b16 %v1152
  %v1185 = vpack.c.b16 %v1170, %v1169
  %v1186 = vpack.c.b16 %v1172, %v1171
  %v1187 = vpack.c.b16 %v1174, %v1173
  %v1188 = vpack.c.b16 %v1176, %v1175
  %v1189 = vpack.c.b16 %v1178, %v1177
  %v1190 = vpack.c.b16 %v1180, %v1179
  %v1191 = vpack.c.b16 %v1182, %v1181
  %v1192 = vpack.c.b16 %v1184, %v1183
  %1201 = vmatprep.subr.bf16.mxu0 0
  %1202 = vmatpush1.bf16.msra.mxu0 %v1192
  %1203 = vmatprep.subr.bf16.mxu0 0
  %1204 = vmatpush1.bf16.msra.mxu0 %v1191
  %1205 = vmatprep.subr.bf16.mxu0 0
  %1206 = vmatpush1.bf16.msra.mxu0 %v1190
  %1207 = vmatprep.subr.bf16.mxu0 0
  %1208 = vmatpush1.bf16.msra.mxu0 %v1189
  %1209 = vmatprep.subr.bf16.mxu0 0
  %1210 = vmatpush1.bf16.msra.mxu0 %v1188
  %1211 = vmatprep.subr.bf16.mxu0 0
  %1212 = vmatpush1.bf16.msra.mxu0 %v1187
  %1213 = vmatprep.subr.bf16.mxu0 0
  %1214 = vmatpush1.bf16.msra.mxu0 %v1186
  %1215 = vmatprep.subr.bf16.mxu0 0
  %1216 = vmatpush1.bf16.msra.mxu0 %v1185
  %1217 = vmatprep.subr.bf16.mxu0 0
  %1218 = vmatpush2.bf16.msra.mxu0 0
  %1219 = vmatprep.subr.bf16.mxu0 0
  %1220 = vmatpush2.bf16.msra.mxu0 0
  %1221 = vmatprep.subr.bf16.mxu0 0
  %1222 = vmatpush2.bf16.msra.mxu0 0
  %1223 = vmatprep.subr.bf16.mxu0 0
  %1224 = vmatpush2.bf16.msra.mxu0 0
  %1225 = vmatprep.subr.bf16.mxu0 0
  %1226 = vmatpush2.bf16.msra.mxu0 0
  %1227 = vmatprep.subr.bf16.mxu0 0
  %1228 = vmatpush2.bf16.msra.mxu0 0
  %1229 = vmatprep.subr.bf16.mxu0 0
  %1230 = vmatpush2.bf16.msra.mxu0 0
  %1231 = vmatprep.subr.bf16.mxu0 0
  %1232 = vmatpush2.bf16.msra.mxu0 0
  %1233 = vmatprep.mubr.bf16.mxu0 0
  %1234 = vmatmul.mubr.bf16.gmra.mxu0 %v1131
  %v1235 = vpop.f32.mrf.mxu0
  %v1236 = vadd.f32 0.0, %v1235
  %v1237 = vpop.f32.mrf.mxu0
  %v1238 = vpop.f32.mrf.mxu0
  %v1239 = vadd.f32 0.0, %v1238
  %v1240 = vpop.f32.mrf.mxu0
  %1241 = vmatprep.mubr.bf16.mxu0 0
  %1242 = vmatmul.mubr.bf16.gmra.mxu0 %v1132
  %v1243 = vpop.f32.mrf.mxu0
  %v1244 = vadd.f32 0.0, %v1243
  %v1245 = vpop.f32.mrf.mxu0
  %v1246 = vpop.f32.mrf.mxu0
  %v1247 = vadd.f32 0.0, %v1246
  %v1248 = vpop.f32.mrf.mxu0
  %1249 = vmatprep.mubr.bf16.mxu0 0
  %1250 = vmatmul.mubr.bf16.gmra.mxu0 %v1133
  %v1251 = vpop.f32.mrf.mxu0
  %v1252 = vadd.f32 0.0, %v1251
  %v1253 = vpop.f32.mrf.mxu0
  %v1254 = vpop.f32.mrf.mxu0
  %v1255 = vadd.f32 0.0, %v1254
  %v1256 = vpop.f32.mrf.mxu0
  %1257 = vmatprep.mubr.bf16.mxu0 0
  %1258 = vmatmul.mubr.bf16.gmra.mxu0 %v1134
  %v1259 = vpop.f32.mrf.mxu0
  %v1260 = vadd.f32 0.0, %v1259
  %v1261 = vpop.f32.mrf.mxu0
  %v1262 = vpop.f32.mrf.mxu0
  %v1263 = vadd.f32 0.0, %v1262
  %v1264 = vpop.f32.mrf.mxu0
  %1265 = vmatprep.mubr.bf16.mxu0 0
  %1266 = vmatmul.mubr.bf16.gmra.mxu0 %v1135
  %v1267 = vpop.f32.mrf.mxu0
  %v1268 = vadd.f32 0.0, %v1267
  %v1269 = vpop.f32.mrf.mxu0
  %v1270 = vpop.f32.mrf.mxu0
  %v1271 = vpop.f32.mrf.mxu0
  %1272 = vdwg.mxu0
  %v1273 = vadd.f32 %v1113, %v1236
  %v1274 = vadd.f32 %v1114, %v1239
  %v1275 = vadd.f32 %v1115, %v1244
  %v1276 = vadd.f32 %v1116, %v1247
  %v1277 = vadd.f32 %v1117, %v1252
  %v1278 = vadd.f32 %v1118, %v1255
  %v1279 = vadd.f32 %v1119, %v1260
  %v1280 = vadd.f32 %v1120, %v1263
  %v1281 = vadd.f32 %v1121, %v1268
  %v1282 = vld [vmem:[%s0 + $0xe] sm:$0xff]
  %v1283 = vld [vmem:[%s0 + $0x16] sm:$0xff]
  %v1284 = vld [vmem:[%s0 + $0x1e] sm:$0xff]
  %v1285 = vld [vmem:[%s0 + $0x26] sm:$0xff]
  %v1286 = vld [vmem:[%s0 + $0x2e] sm:$0xff]
  %v1287 = vld [vmem:[%s0 + $0x36] sm:$0xff]
  %v1288 = vld [vmem:[%s0 + $0x3e] sm:$0xff]
  %v1289 = vld [vmem:[%s0 + $0x46] sm:$0xff]
  %v1290 = vld [vmem:[%s0 + $0x4e] sm:$0xff]
  %v1291 = vpack.c.bf16 %v1283, %v1282
  %v1292 = vpack.c.bf16 %v1285, %v1284
  %v1293 = vpack.c.bf16 %v1287, %v1286
  %v1294 = vpack.c.bf16 %v1289, %v1288
  %v1295 = vpack.c.bf16 %v1290, %v1290
  %s1296 = scalar_lea.vmem %s1, 512
  %v1297 = vld [vmem:[%s1296] sm:$0xf]
  %v1298 = vld [vmem:[%s1296 + $0x4] sm:$0xf]
  %v1299 = vld [vmem:[%s1296 + $0x8] sm:$0xf]
  %v1300 = vld [vmem:[%s1296 + $0xc] sm:$0xf]
  %v1301 = vld [vmem:[%s1296 + $0x10] sm:$0xf]
  %v1302 = vld [vmem:[%s1296 + $0x14] sm:$0xf]
  %v1303 = vld [vmem:[%s1296 + $0x18] sm:$0xf]
  %v1304 = vld [vmem:[%s1296 + $0x1c] sm:$0xf]
  %v1305 = vld [vmem:[%s1296 + $0x20] sm:$0xf]
  %v1306 = vld [vmem:[%s1296 + $0x24] sm:$0xf]
  %v1307 = vld [vmem:[%s1296 + $0x28] sm:$0xf]
  %v1308 = vld [vmem:[%s1296 + $0x2c] sm:$0xf]
  %v1309 = vld [vmem:[%s1296 + $0x30] sm:$0xf]
  %v1310 = vld [vmem:[%s1296 + $0x34] sm:$0xf]
  %v1311 = vld [vmem:[%s1296 + $0x38] sm:$0xf]
  %v1312 = vld [vmem:[%s1296 + $0x3c] sm:$0xf]
  %v1329 = vunpack.c.l.b16 %v1297
  %v1330 = vunpack.c.l.b16 %v1298
  %v1331 = vunpack.c.l.b16 %v1299
  %v1332 = vunpack.c.l.b16 %v1300
  %v1333 = vunpack.c.l.b16 %v1301
  %v1334 = vunpack.c.l.b16 %v1302
  %v1335 = vunpack.c.l.b16 %v1303
  %v1336 = vunpack.c.l.b16 %v1304
  %v1337 = vunpack.c.l.b16 %v1305
  %v1338 = vunpack.c.l.b16 %v1306
  %v1339 = vunpack.c.l.b16 %v1307
  %v1340 = vunpack.c.l.b16 %v1308
  %v1341 = vunpack.c.l.b16 %v1309
  %v1342 = vunpack.c.l.b16 %v1310
  %v1343 = vunpack.c.l.b16 %v1311
  %v1344 = vunpack.c.l.b16 %v1312
  %v1345 = vpack.c.b16 %v1330, %v1329
  %v1346 = vpack.c.b16 %v1332, %v1331
  %v1347 = vpack.c.b16 %v1334, %v1333
  %v1348 = vpack.c.b16 %v1336, %v1335
  %v1349 = vpack.c.b16 %v1338, %v1337
  %v1350 = vpack.c.b16 %v1340, %v1339
  %v1351 = vpack.c.b16 %v1342, %v1341
  %v1352 = vpack.c.b16 %v1344, %v1343
  %1361 = vmatprep.subr.bf16.mxu0 0
  %1362 = vmatpush1.bf16.msra.mxu0 %v1352
  %1363 = vmatprep.subr.bf16.mxu0 0
  %1364 = vmatpush1.bf16.msra.mxu0 %v1351
  %1365 = vmatprep.subr.bf16.mxu0 0
  %1366 = vmatpush1.bf16.msra.mxu0 %v1350
  %1367 = vmatprep.subr.bf16.mxu0 0
  %1368 = vmatpush1.bf16.msra.mxu0 %v1349
  %1369 = vmatprep.subr.bf16.mxu0 0
  %1370 = vmatpush1.bf16.msra.mxu0 %v1348
  %1371 = vmatprep.subr.bf16.mxu0 0
  %1372 = vmatpush1.bf16.msra.mxu0 %v1347
  %1373 = vmatprep.subr.bf16.mxu0 0
  %1374 = vmatpush1.bf16.msra.mxu0 %v1346
  %1375 = vmatprep.subr.bf16.mxu0 0
  %1376 = vmatpush1.bf16.msra.mxu0 %v1345
  %1377 = vmatprep.subr.bf16.mxu0 0
  %1378 = vmatpush2.bf16.msra.mxu0 0
  %1379 = vmatprep.subr.bf16.mxu0 0
  %1380 = vmatpush2.bf16.msra.mxu0 0
  %1381 = vmatprep.subr.bf16.mxu0 0
  %1382 = vmatpush2.bf16.msra.mxu0 0
  %1383 = vmatprep.subr.bf16.mxu0 0
  %1384 = vmatpush2.bf16.msra.mxu0 0
  %1385 = vmatprep.subr.bf16.mxu0 0
  %1386 = vmatpush2.bf16.msra.mxu0 0
  %1387 = vmatprep.subr.bf16.mxu0 0
  %1388 = vmatpush2.bf16.msra.mxu0 0
  %1389 = vmatprep.subr.bf16.mxu0 0
  %1390 = vmatpush2.bf16.msra.mxu0 0
  %1391 = vmatprep.subr.bf16.mxu0 0
  %1392 = vmatpush2.bf16.msra.mxu0 0
  %1393 = vmatprep.mubr.bf16.mxu0 0
  %1394 = vmatmul.mubr.bf16.gmra.mxu0 %v1291
  %v1395 = vpop.f32.mrf.mxu0
  %v1396 = vadd.f32 0.0, %v1395
  %v1397 = vpop.f32.mrf.mxu0
  %v1398 = vpop.f32.mrf.mxu0
  %v1399 = vadd.f32 0.0, %v1398
  %v1400 = vpop.f32.mrf.mxu0
  %1401 = vmatprep.mubr.bf16.mxu0 0
  %1402 = vmatmul.mubr.bf16.gmra.mxu0 %v1292
  %v1403 = vpop.f32.mrf.mxu0
  %v1404 = vadd.f32 0.0, %v1403
  %v1405 = vpop.f32.mrf.mxu0
  %v1406 = vpop.f32.mrf.mxu0
  %v1407 = vadd.f32 0.0, %v1406
  %v1408 = vpop.f32.mrf.mxu0
  %1409 = vmatprep.mubr.bf16.mxu0 0
  %1410 = vmatmul.mubr.bf16.gmra.mxu0 %v1293
  %v1411 = vpop.f32.mrf.mxu0
  %v1412 = vadd.f32 0.0, %v1411
  %v1413 = vpop.f32.mrf.mxu0
  %v1414 = vpop.f32.mrf.mxu0
  %v1415 = vadd.f32 0.0, %v1414
  %v1416 = vpop.f32.mrf.mxu0
  %1417 = vmatprep.mubr.bf16.mxu0 0
  %1418 = vmatmul.mubr.bf16.gmra.mxu0 %v1294
  %v1419 = vpop.f32.mrf.mxu0
  %v1420 = vadd.f32 0.0, %v1419
  %v1421 = vpop.f32.mrf.mxu0
  %v1422 = vpop.f32.mrf.mxu0
  %v1423 = vadd.f32 0.0, %v1422
  %v1424 = vpop.f32.mrf.mxu0
  %1425 = vmatprep.mubr.bf16.mxu0 0
  %1426 = vmatmul.mubr.bf16.gmra.mxu0 %v1295
  %v1427 = vpop.f32.mrf.mxu0
  %v1428 = vadd.f32 0.0, %v1427
  %v1429 = vpop.f32.mrf.mxu0
  %v1430 = vpop.f32.mrf.mxu0
  %v1431 = vpop.f32.mrf.mxu0
  %1432 = vdwg.mxu0
  %v1433 = vadd.f32 %v1273, %v1396
  %v1434 = vadd.f32 %v1274, %v1399
  %v1435 = vadd.f32 %v1275, %v1404
  %v1436 = vadd.f32 %v1276, %v1407
  %v1437 = vadd.f32 %v1277, %v1412
  %v1438 = vadd.f32 %v1278, %v1415
  %v1439 = vadd.f32 %v1279, %v1420
  %v1440 = vadd.f32 %v1280, %v1423
  %v1441 = vadd.f32 %v1281, %v1428
  %v1442 = vld [vmem:[%s2] sm:$0xff]
  %v1443 = vld [vmem:[%s2 + $0x8] sm:$0xff]
  %v1444 = vld [vmem:[%s2 + $0x10] sm:$0xff]
  %v1445 = vld [vmem:[%s2 + $0x18] sm:$0xff]
  %v1446 = vld [vmem:[%s2 + $0x20] sm:$0xff]
  %v1447 = vld [vmem:[%s2 + $0x28] sm:$0xff]
  %v1448 = vld [vmem:[%s2 + $0x30] sm:$0xff]
  %v1449 = vld [vmem:[%s2 + $0x38] sm:$0xff]
  %v1450 = vld [vmem:[%s2 + $0x40] sm:$0xff]
  %1452 = vset.pattern.permute.xlu0 0
  %1453 = vperm.xlu0 %1452, %v1442
  %v1454 = vpop.permute.xlu0 %1453
  %1457 = vset.pattern.permute.xlu0 0
  %1458 = vperm.xlu0 %1457, %v1443
  %v1459 = vpop.permute.xlu0 %1458
  %1462 = vset.pattern.permute.xlu0 0
  %1463 = vperm.xlu0 %1462, %v1444
  %v1464 = vpop.permute.xlu0 %1463
  %1467 = vset.pattern.permute.xlu0 0
  %1468 = vperm.xlu0 %1467, %v1445
  %v1469 = vpop.permute.xlu0 %1468
  %1472 = vset.pattern.permute.xlu0 0
  %1473 = vperm.xlu0 %1472, %v1446
  %v1474 = vpop.permute.xlu0 %1473
  %1477 = vset.pattern.permute.xlu0 0
  %1478 = vperm.xlu0 %1477, %v1447
  %v1479 = vpop.permute.xlu0 %1478
  %1482 = vset.pattern.permute.xlu0 0
  %1483 = vperm.xlu0 %1482, %v1448
  %v1484 = vpop.permute.xlu0 %1483
  %1487 = vset.pattern.permute.xlu0 0
  %1488 = vperm.xlu0 %1487, %v1449
  %v1489 = vpop.permute.xlu0 %1488
  %1492 = vset.pattern.permute.xlu0 0
  %1493 = vperm.xlu0 %1492, %v1450
  %v1494 = vpop.permute.xlu0 %1493
  %v1496 = vmul.f32 %v1433, %v1454
  %v1497 = vmul.f32 %v1434, %v1459
  %v1498 = vmul.f32 %v1435, %v1464
  %v1499 = vmul.f32 %v1436, %v1469
  %v1500 = vmul.f32 %v1437, %v1474
  %v1501 = vmul.f32 %v1438, %v1479
  %v1502 = vmul.f32 %v1439, %v1484
  %v1503 = vmul.f32 %v1440, %v1489
  %v1504 = vmul.f32 %v1441, %v1494
  %vm1505 = vcmask 130048
  %v1506 = vsel %vm1505, %v1496, 0.0
  %v1507 = vsel %vm1505, %v1497, 0.0
  %v1508 = vadd.f32 %v1506, %v1507
  %v1509 = vsel %vm1505, %v1498, 0.0
  %v1510 = vadd.f32 %v1508, %v1509
  %v1511 = vsel %vm1505, %v1499, 0.0
  %v1512 = vadd.f32 %v1510, %v1511
  %v1513 = vsel %vm1505, %v1500, 0.0
  %v1514 = vadd.f32 %v1512, %v1513
  %v1515 = vsel %vm1505, %v1501, 0.0
  %v1516 = vadd.f32 %v1514, %v1515
  %v1517 = vsel %vm1505, %v1502, 0.0
  %v1518 = vadd.f32 %v1516, %v1517
  %v1519 = vsel %vm1505, %v1503, 0.0
  %v1520 = vadd.f32 %v1518, %v1519
  %v1521 = vsel %vm1505, %v1504, 0.0
  %v1522 = vadd.f32 %v1520, %v1521
  %v1523 = vrot.slane %v1522, 4
  %v1524 = vadd.f32 %v1522, %v1523
  %v1525 = vrot.slane %v1524, 2
  %v1526 = vadd.f32 %v1524, %v1525
  %v1527 = vrot.slane %v1526, 1
  %v1528 = vadd.f32 %v1526, %v1527
  %v1529 = vmul.f32 %v1528, 0.03125
  %v1530 = vsub.f32 %v1433, %v1529
  %v1531 = vsub.f32 %v1434, %v1529
  %v1532 = vsub.f32 %v1435, %v1529
  %v1533 = vsub.f32 %v1436, %v1529
  %v1534 = vsub.f32 %v1437, %v1529
  %v1535 = vsub.f32 %v1438, %v1529
  %v1536 = vsub.f32 %v1439, %v1529
  %v1537 = vsub.f32 %v1440, %v1529
  %v1538 = vsub.f32 %v1441, %v1529
  %v1539 = vmul.f32 %v1530, %v1530
  %v1540 = vmul.f32 %v1531, %v1531
  %v1541 = vmul.f32 %v1532, %v1532
  %v1542 = vmul.f32 %v1533, %v1533
  %v1543 = vmul.f32 %v1534, %v1534
  %v1544 = vmul.f32 %v1535, %v1535
  %v1545 = vmul.f32 %v1536, %v1536
  %v1546 = vmul.f32 %v1537, %v1537
  %v1547 = vmul.f32 %v1538, %v1538
  %v1548 = vmul.f32 %v1539, %v1454
  %v1549 = vmul.f32 %v1540, %v1459
  %v1550 = vmul.f32 %v1541, %v1464
  %v1551 = vmul.f32 %v1542, %v1469
  %v1552 = vmul.f32 %v1543, %v1474
  %v1553 = vmul.f32 %v1544, %v1479
  %v1554 = vmul.f32 %v1545, %v1484
  %v1555 = vmul.f32 %v1546, %v1489
  %v1556 = vmul.f32 %v1547, %v1494
  %v1557 = vsel %vm1505, %v1548, 0.0
  %v1558 = vsel %vm1505, %v1549, 0.0
  %v1559 = vadd.f32 %v1557, %v1558
  %v1560 = vsel %vm1505, %v1550, 0.0
  %v1561 = vadd.f32 %v1559, %v1560
  %v1562 = vsel %vm1505, %v1551, 0.0
  %v1563 = vadd.f32 %v1561, %v1562
  %v1564 = vsel %vm1505, %v1552, 0.0
  %v1565 = vadd.f32 %v1563, %v1564
  %v1566 = vsel %vm1505, %v1553, 0.0
  %v1567 = vadd.f32 %v1565, %v1566
  %v1568 = vsel %vm1505, %v1554, 0.0
  %v1569 = vadd.f32 %v1567, %v1568
  %v1570 = vsel %vm1505, %v1555, 0.0
  %v1571 = vadd.f32 %v1569, %v1570
  %v1572 = vsel %vm1505, %v1556, 0.0
  %v1573 = vadd.f32 %v1571, %v1572
  %v1574 = vrot.slane %v1573, 4
  %v1575 = vadd.f32 %v1573, %v1574
  %v1576 = vrot.slane %v1575, 2
  %v1577 = vadd.f32 %v1575, %v1576
  %v1578 = vrot.slane %v1577, 1
  %v1579 = vadd.f32 %v1577, %v1578
  %v1580 = vmul.f32 %v1579, 0.03125
  %v1581 = vld [vmem:[%s3] sm:$0x1]
  %v1582 = vadd.f32 %v1580, 1e-05
  %v1583 = vrsqrt.pop %v1582
  %v1584 = vmul.f32 %v1581, %v1583
  %v1586 = vlaneseq
  %v1587 = vshrl.u32 %v1586, 7
  %v1588 = vsub.s32 0, %v1587
  %v1589 = vrot.slane %v1584, %v1588
  %v1591 = vmul.f32 %v1530, %v1589
  %v1592 = vmul.f32 %v1531, %v1589
  %v1593 = vmul.f32 %v1532, %v1589
  %v1594 = vmul.f32 %v1533, %v1589
  %v1595 = vmul.f32 %v1534, %v1589
  %v1596 = vmul.f32 %v1535, %v1589
  %v1597 = vmul.f32 %v1536, %v1589
  %v1598 = vmul.f32 %v1537, %v1589
  %v1599 = vmul.f32 %v1538, %v1589
  %v1600 = vld [vmem:[%s4] sm:$0x1]
  %v1602 = vlaneseq
  %v1603 = vshrl.u32 %v1602, 7
  %v1604 = vsub.s32 0, %v1603
  %v1605 = vrot.slane %v1600, %v1604
  %v1607 = vadd.f32 %v1591, %v1605
  %v1608 = vadd.f32 %v1592, %v1605
  %v1609 = vadd.f32 %v1593, %v1605
  %v1610 = vadd.f32 %v1594, %v1605
  %v1611 = vadd.f32 %v1595, %v1605
  %v1612 = vadd.f32 %v1596, %v1605
  %v1613 = vadd.f32 %v1597, %v1605
  %v1614 = vadd.f32 %v1598, %v1605
  %v1615 = vadd.f32 %v1599, %v1605
  %v1616 = vmax.f32 %v1607, 0.0
  %v1617 = vmax.f32 %v1608, 0.0
  %v1618 = vmax.f32 %v1609, 0.0
  %v1619 = vmax.f32 %v1610, 0.0
  %v1620 = vmax.f32 %v1611, 0.0
  %v1621 = vmax.f32 %v1612, 0.0
  %v1622 = vmax.f32 %v1613, 0.0
  %v1623 = vmax.f32 %v1614, 0.0
  %v1624 = vmax.f32 %v1615, 0.0
  %v1625 = vpack.c.bf16 %v1617, %v1616
  %v1626 = vpack.c.bf16 %v1619, %v1618
  %v1627 = vpack.c.bf16 %v1621, %v1620
  %v1628 = vpack.c.bf16 %v1623, %v1622
  %v1629 = vpack.c.bf16 %v1624, %v1624
  %v1635 = vunpack.c.l.b16 %v1625
  %v1636 = vunpack.c.h.b16 %v1625
  %v1637 = vunpack.c.l.b16 %v1626
  %v1638 = vunpack.c.h.b16 %v1626
  %v1639 = vunpack.c.l.b16 %v1627
  %v1640 = vunpack.c.h.b16 %v1627
  %v1641 = vunpack.c.l.b16 %v1628
  %v1642 = vunpack.c.h.b16 %v1628
  %v1643 = vunpack.c.l.b16 %v1629
  %v1644 = vpack.c.b16 %v1635, %v1635
  %v1645 = vpack.c.b16 %v1636, %v1636
  %v1646 = vpack.c.b16 %v1637, %v1637
  %v1647 = vpack.c.b16 %v1638, %v1638
  %v1648 = vpack.c.b16 %v1639, %v1639
  %v1649 = vpack.c.b16 %v1640, %v1640
  %v1650 = vpack.c.b16 %v1641, %v1641
  %v1651 = vpack.c.b16 %v1642, %v1642
  %v1652 = vpack.c.b16 %v1643, %v1643
  %vm1662 = vcmask 125952
  %1663 = vst.msk [vmem:[%s5] sm:$0xf] %vm1662, %v1644
  %1664 = vst.msk [vmem:[%s5 + $0x4] sm:$0xf] %vm1662, %v1645
  %1665 = vst.msk [vmem:[%s5 + $0x8] sm:$0xf] %vm1662, %v1646
  %1666 = vst.msk [vmem:[%s5 + $0xc] sm:$0xf] %vm1662, %v1647
  %1667 = vst.msk [vmem:[%s5 + $0x10] sm:$0xf] %vm1662, %v1648
  %1668 = vst.msk [vmem:[%s5 + $0x14] sm:$0xf] %vm1662, %v1649
  %1669 = vst.msk [vmem:[%s5 + $0x18] sm:$0xf] %vm1662, %v1650
  %1670 = vst.msk [vmem:[%s5 + $0x1c] sm:$0xf] %vm1662, %v1651
  %1671 = vst.msk [vmem:[%s5 + $0x20] sm:$0xf] %vm1662, %v1652
  // Predicated region
  $region22: #{conv_encoder_forward.4} parent=0 // pred_check
    _
  $region23: #{conv_encoder_forward.4} parent=0 // pred_check_branch
    %1673 = sbr.rel (0) target = $region25
  $region24: #{conv_encoder_forward.4} parent=0 // pred_region
    _
  $region25: #{conv_encoder_forward.4} parent=0 // pred_fallthru
    _
  // Predicated region
  $region26: #{conv_encoder_forward.4} parent=0 // pred_check
    _
  $region27: #{conv_encoder_forward.4} parent=0 // pred_check_branch
    %1675 = sbr.rel (0) target = $region29
  $region28: #{conv_encoder_forward.4} parent=0 // pred_region
    _
  $region29: #{conv_encoder_forward.4} parent=0 // pred_fallthru
    _

</llo_original>
